<compile_context>
chip_gen: v7x
topology: tpu7x:2x2x1
jax: 0.10.0
libtpu: 0.0.40
codegen_flags: <defaults>
</compile_context>

<pallas_src>
import functools
import math

import numpy as np
import jax
import jax.numpy as jnp
from jax import lax
from jax.experimental import pallas as pl
from jax.experimental.pallas import tpu as pltpu


_INV_SQRT_2PI = 0.3989422804014327


def _round_up(x, m):
    return (x + m - 1) // m * m


def _pad_cout(cout):
    """Lane-dense (multiple-of-128) output only when it at most doubles HBM bytes."""
    p128 = _round_up(cout, 128)
    if p128 <= 2 * cout:
        return p128
    return _round_up(cout, 8)


# ----------------------------------------------------------------------------
# Pallas kernels
# ----------------------------------------------------------------------------
def _fused_matmul_kernel(x_ref, w_ref, s_ref, b_ref, o_ref, *, relu):
    """bf16 (TM, K) @ (K, Cout_p) -> f32 acc -> * scale + shift -> ReLU -> bf16."""
    acc = jnp.dot(x_ref[...], w_ref[...], preferred_element_type=jnp.float32)
    y = acc * s_ref[...] + b_ref[...]
    if relu:
        y = jnp.maximum(y, 0.0)
    o_ref[...] = y.astype(o_ref.dtype)


def fused_matmul(x, w, scale, shift, relu):
    """x: (P, K), w: (K, Cout_p).  Rows padded to a multiple of TM, no asserts."""
    P, K = x.shape
    Cout_p = w.shape[1]
    TM = min(2048, _round_up(P, 16))          # bigger tiles amortize per-step cost
    Ppad = _round_up(P, TM)
    if Ppad != P:
        x = jnp.pad(x, ((0, Ppad - P), (0, 0)))
    kernel = functools.partial(_fused_matmul_kernel, relu=relu)
    out = pl.pallas_call(
        kernel,
        out_shape=jax.ShapeDtypeStruct((Ppad, Cout_p), jnp.bfloat16),
        grid=(Ppad // TM,),
        in_specs=[
            pl.BlockSpec((TM, K), lambda i: (i, 0)),
            pl.BlockSpec((K, Cout_p), lambda i: (0, 0)),
            pl.BlockSpec((1, Cout_p), lambda i: (0, 0)),
            pl.BlockSpec((1, Cout_p), lambda i: (0, 0)),
        ],
        out_specs=pl.BlockSpec((TM, Cout_p), lambda i: (i, 0)),
        compiler_params=pltpu.CompilerParams(dimension_semantics=("parallel",)),
    )(x.astype(jnp.bfloat16), w.astype(jnp.bfloat16),
      scale.reshape(1, Cout_p).astype(jnp.float32),
      shift.reshape(1, Cout_p).astype(jnp.float32))
    return out[:P]


def _conv_s1_kernel(x_ref, w_ref, s_ref, b_ref, o_ref, *, kh, kw, Wp, relu):
    """Stride-1 conv, taps accumulated in-kernel over flattened padded spatial axis.

    x_ref: (1, Hp*Wp + kw - 1, Cin)  bf16   (zero-padded NHWC, spatially flattened)
    w_ref: (kh*kw, Cin, Cout_p)      bf16
    o_ref: (1, Ho*Wp, Cout_p)        bf16   (over-wide rows; wrap columns cropped outside)
    """
    L_out = o_ref.shape[1]
    Cout_p = o_ref.shape[2]
    acc = jnp.zeros((L_out, Cout_p), jnp.float32)
    for i in range(kh):
        for j in range(kw):
            off = i * Wp + j
            patch = x_ref[0, off:off + L_out, :]
            acc = acc + jnp.dot(patch, w_ref[i * kw + j],
                                preferred_element_type=jnp.float32)
    y = acc * s_ref[...] + b_ref[...]
    if relu:
        y = jnp.maximum(y, 0.0)
    o_ref[0] = y.astype(o_ref.dtype)


def _depth_outer_kernel(ds_ref, feat_ref, loc_ref, scl_ref, dref_ref, o_ref, *,
                        dbound, loc_c, scale_c):
    """sigmoid/clamp -> Normal pdf over a depth-bin tile -> outer product (bf16)."""
    loc = jax.nn.sigmoid(loc_ref[0].astype(jnp.float32)) * loc_c - 0.5 * loc_c \
        + dref_ref[0].astype(jnp.float32)                                     # (1, S)
    loc = jnp.clip(loc, dbound[0], dbound[1])
    scale = jax.nn.sigmoid(scl_ref[0].astype(jnp.float32)) * scale_c          # (1, S)
    scale = jnp.clip(scale, 1e-6, dbound[1] - dbound[0])
    inv_scale = pl.reciprocal(scale, approx=True)                             # EUP slot
    ds = ds_ref[...]                                                          # (TD, 1)
    z = (ds - loc) * inv_scale                                                # (TD, S)
    pdf = jnp.exp(-0.5 * z * z) * (inv_scale * _INV_SQRT_2PI)                 # (TD, S)
    pdf_b = pdf.astype(jnp.bfloat16)
    feat = feat_ref[0]                                                        # (S, C) bf16
    o_ref[0] = pdf_b[:, :, None] * feat[None, :, :]                           # (TD, S, C)


def _choose_td(D, S, C, budget_bytes=2 << 20):
    """Depth-bin tile so the bf16 output block stays well under scoped VMEM."""
    if D * S * C * 2 <= budget_bytes:
        return D, D
    td = max(8, (budget_bytes // (S * C * 2)) // 8 * 8)
    return td, _round_up(D, td)


def depth_outer(feat, loc_raw, scale_raw, d_ref, ds_bins, D, dbound, loc_c, scale_c):
    """feat (BN,S,C), loc/scale/d_ref (BN,1,S), ds_bins (D,1) -> (BN,D,S,C) bf16."""
    BN, S, C = feat.shape
    TD, D_pad = _choose_td(D, S, C)
    if D_pad > D:
        ds_bins = jnp.pad(ds_bins, ((0, D_pad - D), (0, 0)),
                          constant_values=float(dbound[0]))
    kernel = functools.partial(
        _depth_outer_kernel, dbound=(float(dbound[0]), float(dbound[1])),
        loc_c=float(loc_c), scale_c=float(scale_c))
    out = pl.pallas_call(
        kernel,
        out_shape=jax.ShapeDtypeStruct((BN, D_pad, S, C), jnp.bfloat16),
        grid=(BN, D_pad // TD),
        in_specs=[
            pl.BlockSpec((TD, 1), lambda n, dt: (dt, 0)),
            pl.BlockSpec((1, S, C), lambda n, dt: (n, 0, 0)),
            pl.BlockSpec((1, 1, S), lambda n, dt: (n, 0, 0)),
            pl.BlockSpec((1, 1, S), lambda n, dt: (n, 0, 0)),
            pl.BlockSpec((1, 1, S), lambda n, dt: (n, 0, 0)),
        ],
        out_specs=pl.BlockSpec((1, TD, S, C), lambda n, dt: (n, dt, 0, 0)),
        compiler_params=pltpu.CompilerParams(
            dimension_semantics=("parallel", "parallel")),
    )(ds_bins.astype(jnp.float32), feat.astype(jnp.bfloat16),
      loc_raw.astype(jnp.bfloat16), scale_raw.astype(jnp.bfloat16),
      d_ref.astype(jnp.float32))
    if D_pad > D:
        out = out[:, :D]
    return out


# ----------------------------------------------------------------------------
# Conv layer wrappers (NHWC everywhere)
# ----------------------------------------------------------------------------
def _im2col_nhwc(x, kh, kw, stride, pad):
    B, H, W, C = x.shape
    Ho = (H + 2 * pad - kh) // stride + 1
    Wo = (W + 2 * pad - kw) // stride + 1
    xp = jnp.pad(x, ((0, 0), (pad, pad), (pad, pad), (0, 0)))
    cols = []
    for i in range(kh):
        for j in range(kw):
            cols.append(xp[:, i:i + stride * Ho:stride, j:j + stride * Wo:stride, :])
    cols = jnp.stack(cols, axis=3)                    # (B, Ho, Wo, kh*kw, C)
    return cols.reshape(B * Ho * Wo, kh * kw * C), Ho, Wo


def conv_1x1(x, layer):
    B, H, W, Cin = x.shape
    w = layer['w']
    Cout = w.shape[0]
    Cout_p = _pad_cout(Cout)
    wmat = jnp.pad(w.reshape(Cout, Cin).T, ((0, 0), (0, Cout_p - Cout)))
    scale = jnp.pad(layer['scale'], (0, Cout_p - Cout))
    shift = jnp.pad(layer['shift'], (0, Cout_p - Cout))
    y = fused_matmul(x.reshape(B * H * W, Cin), wmat, scale, shift, layer['relu'])
    return y[:, :Cout].reshape(B, H, W, Cout)


def conv_strided_im2col(x, layer):
    # TODO(synk): strided 5x5 convs still read kh*kw x the input via im2col;
    # channel counts here are small so the blow-up is modest.
    w = layer['w']
    Cout, Cin, k, _ = w.shape
    cols, Ho, Wo = _im2col_nhwc(x, k, k, layer['stride'], layer['pad'])
    Cout_p = _pad_cout(Cout)
    wmat = jnp.pad(w.transpose(2, 3, 1, 0).reshape(k * k * Cin, Cout),
                   ((0, 0), (0, Cout_p - Cout)))
    scale = jnp.pad(layer['scale'], (0, Cout_p - Cout))
    shift = jnp.pad(layer['shift'], (0, Cout_p - Cout))
    y = fused_matmul(cols, wmat, scale, shift, layer['relu'])
    B = x.shape[0]
    return y[:, :Cout].reshape(B, Ho, Wo, Cout)


def conv_s1_fused(x, layer):
    """Stride-1 kxk conv: per-sample Pallas kernel, taps accumulated in VMEM."""
    w = layer['w']
    Cout, Cin, kh, kw = w.shape
    pad = layer['pad']
    B, H, W, _ = x.shape
    Ho = H + 2 * pad - kh + 1
    Wo = W + 2 * pad - kw + 1
    Hp, Wp = H + 2 * pad, W + 2 * pad
    xp = jnp.pad(x, ((0, 0), (pad, pad), (pad, pad), (0, 0)))
    xf = xp.reshape(B, Hp * Wp, Cin)
    if kw > 1:
        xf = jnp.pad(xf, ((0, 0), (0, kw - 1), (0, 0)))   # last-tap overrun guard
    L = xf.shape[1]
    Cout_p = _pad_cout(Cout)
    wk = jnp.pad(w.transpose(2, 3, 1, 0).reshape(kh * kw, Cin, Cout),
                 ((0, 0), (0, 0), (0, Cout_p - Cout))).astype(jnp.bfloat16)
    scale = jnp.pad(layer['scale'], (0, Cout_p - Cout)).reshape(1, Cout_p).astype(jnp.float32)
    shift = jnp.pad(layer['shift'], (0, Cout_p - Cout)).reshape(1, Cout_p).astype(jnp.float32)
    kernel = functools.partial(_conv_s1_kernel, kh=kh, kw=kw, Wp=Wp, relu=layer['relu'])
    out = pl.pallas_call(
        kernel,
        out_shape=jax.ShapeDtypeStruct((B, Ho * Wp, Cout_p), jnp.bfloat16),
        grid=(B,),
        in_specs=[
            pl.BlockSpec((1, L, Cin), lambda b: (b, 0, 0)),
            pl.BlockSpec((kh * kw, Cin, Cout_p), lambda b: (0, 0, 0)),
            pl.BlockSpec((1, Cout_p), lambda b: (0, 0)),
            pl.BlockSpec((1, Cout_p), lambda b: (0, 0)),
        ],
        out_specs=pl.BlockSpec((1, Ho * Wp, Cout_p), lambda b: (b, 0, 0)),
        compiler_params=pltpu.CompilerParams(dimension_semantics=("parallel",)),
    )(xf.astype(jnp.bfloat16), wk, scale, shift)
    out = out.reshape(B, Ho, Wp, Cout_p)
    return out[:, :, :Wo, :Cout]


def conv_layer_nhwc(x, layer):
    k = layer['w'].shape[2]
    if k == 1 and layer['stride'] == 1:
        return conv_1x1(x, layer)
    if layer['stride'] == 1:
        return conv_s1_fused(x, layer)
    return conv_strided_im2col(x, layer)


def _fold_bn(bias, gamma, beta, mean, var, eps=1e-5):
    a = gamma / jnp.sqrt(var + eps)
    return a, (bias - mean) * a + beta


def make_conv_layer(key, cin, cout, k, stride, pad, bn=True, relu=True):
    kw, kb, kg, kbe, km, kv = jax.random.split(key, 6)
    w = jax.random.normal(kw, (cout, cin, k, k), jnp.float32) * (0.3 / np.sqrt(cin * k * k))
    b = 0.05 * jax.random.normal(kb, (cout,), jnp.float32)
    if bn:  # inference-mode BatchNorm (running stats) folded into scale/shift
        gamma = 1.0 + 0.1 * jax.random.normal(kg, (cout,), jnp.float32)
        beta = 0.05 * jax.random.normal(kbe, (cout,), jnp.float32)
        mean = 0.05 * jax.random.normal(km, (cout,), jnp.float32)
        var = 1.0 + 0.2 * jax.random.uniform(kv, (cout,), jnp.float32)
        scale, shift = _fold_bn(b, gamma, beta, mean, var)
    else:
        scale, shift = jnp.ones((cout,), jnp.float32), b
    return dict(w=w, scale=scale, shift=shift, stride=stride, pad=pad, relu=relu)


# ----------------------------------------------------------------------------
# Geometry / depth-painting glue (plain JAX)
# ----------------------------------------------------------------------------
def gen_dx_bx(xbound, ybound, zbound):
    dx = jnp.array([row[2] for row in (xbound, ybound, zbound)], jnp.float32)
    bx = jnp.array([row[0] + row[2] / 2.0 for row in (xbound, ybound, zbound)], jnp.float32)
    nx = tuple(int((row[1] - row[0]) / row[2]) for row in (xbound, ybound, zbound))
    return dx, bx, nx


def create_frustum(image_size, feature_size, dbound):
    iH, iW = image_size
    fH, fW = feature_size
    ds = jnp.arange(dbound[0], dbound[1], dbound[2], dtype=jnp.float32).reshape(-1, 1, 1)
    D = ds.shape[0]
    ds = jnp.broadcast_to(ds, (D, fH, fW))
    xs = jnp.broadcast_to(jnp.linspace(0.0, iW - 1, fW, dtype=jnp.float32).reshape(1, 1, fW), (D, fH, fW))
    ys = jnp.broadcast_to(jnp.linspace(0.0, iH - 1, fH, dtype=jnp.float32).reshape(1, fH, 1), (D, fH, fW))
    return jnp.stack([xs, ys, ds], axis=-1)  # (D, fH, fW, 3)


def project_pixels_to_ground(cam_intrinsic, img_aug, lidar_aug, l2i, image_size, ground_height):
    del cam_intrinsic  # unused, as in the reference
    iH, iW = image_size
    xs = jnp.arange(iW, dtype=jnp.float32)
    ys = jnp.arange(iH, dtype=jnp.float32)
    x, y = jnp.meshgrid(xs, ys, indexing='xy')                              # (iH, iW)
    pts = jnp.stack([x, y, jnp.ones_like(x)], axis=-1).reshape(-1, 3).T     # (3, iH*iW)
    pts = pts - img_aug[:3, 3].reshape(3, 1)
    pts = jnp.linalg.inv(img_aug[:3, :3]) @ pts
    pts = pts - l2i[:3, 3].reshape(3, 1)
    pts = jnp.linalg.inv(l2i[:3, :3]) @ pts
    valid = pts[2] < -1e-6
    scale = ground_height / pts[2]
    pts = pts * scale
    pts = lidar_aug[:3, :3] @ pts
    pts = pts + lidar_aug[:3, 3].reshape(3, 1)
    pts = pts.T.reshape(iH, iW, 3)
    return valid.reshape(iH, iW), pts


# ----------------------------------------------------------------------------
# The module
# ----------------------------------------------------------------------------
class DepthNLSSTransformPallas:
    def __init__(self, in_channels, out_channels, image_size, feature_size,
                 xbound, ybound, zbound, dbound, downsample=1,
                 depth_norm_loc=20.0, depth_norm_scale=10.0, key=None):
        self.in_channels = in_channels
        self.C = out_channels
        self.image_size = image_size
        self.feature_size = feature_size
        self.dbound = dbound
        self.depth_norm_loc = depth_norm_loc
        self.depth_norm_scale = depth_norm_scale
        self.dx, self.bx, self.nx = gen_dx_bx(xbound, ybound, zbound)
        self.frustum = create_frustum(image_size, feature_size, dbound)
        self.D = self.frustum.shape[0]
        # Precompute depth-bin centers host-side (fed to depth_outer as input).
        self.ds_bins = jnp.arange(dbound[0], dbound[1], dbound[2],
                                  dtype=jnp.float32).reshape(-1, 1)
        # TODO(synk): downsample > 1 conv stack not implemented; default downsample=1 is Identity.
        assert downsample == 1
        if key is None:
            key = jax.random.PRNGKey(42)
        k = jax.random.split(key, 6)
        self.dtransform = [
            make_conv_layer(k[0], 2, 8, 1, 1, 0),
            make_conv_layer(k[1], 8, 32, 5, 4, 2),
            make_conv_layer(k[2], 32, 64, 5, 2, 2),
        ]
        self.depthnet = [
            make_conv_layer(k[3], in_channels + 64, in_channels, 3, 1, 1),
            make_conv_layer(k[4], in_channels, in_channels, 3, 1, 1),
            make_conv_layer(k[5], in_channels, 2 + out_channels, 1, 1, 0, bn=False, relu=False),
        ]

    # ---- geometry ----
    def get_geometry(self, c2l_rots, c2l_trans, intrins, post_rots, post_trans,
                     extra_rots, extra_trans):
        B, N, _ = c2l_trans.shape
        pts = self.frustum - post_trans.reshape(B, N, 1, 1, 1, 3)
        pts = jnp.linalg.inv(post_rots).reshape(B, N, 1, 1, 1, 3, 3) @ pts[..., None]
        pts = jnp.concatenate([pts[..., :2, :] * pts[..., 2:3, :], pts[..., 2:3, :]], axis=-2)
        combine = c2l_rots @ jnp.linalg.inv(intrins)
        pts = (combine.reshape(B, N, 1, 1, 1, 3, 3) @ pts)[..., 0]
        pts = pts + c2l_trans.reshape(B, N, 1, 1, 1, 3)
        pts = (extra_rots.reshape(B, 1, 1, 1, 1, 3, 3) @ pts[..., None])[..., 0]
        pts = pts + extra_trans.reshape(B, 1, 1, 1, 1, 3)
        return pts  # (B, N, D, fH, fW, 3)

    # ---- depth painting (sparse lidar depth + ground depth), channels-last ----
    # TODO(synk): data-dependent scatter; done with jnp .at[] glue (no clean Pallas equivalent).
    def build_depth(self, points, lidar2image, cam_intrinsic, img_aug_matrix,
                    lidar_aug_matrix, metas):
        B = len(points)
        N = lidar2image.shape[1]
        iH, iW = self.image_size
        depth = jnp.zeros((B, N, iH, iW, 2), jnp.float32)
        for b in range(B):
            cur = points[b][:, :3]
            ground_height = -float(metas[b]['lidar2ego'][2][3])
            img_aug = img_aug_matrix[b]
            lid_aug = lidar_aug_matrix[b]
            l2i = lidar2image[b]
            cc = cur - lid_aug[:3, 3]
            cc = jnp.linalg.inv(lid_aug[:3, :3]) @ cc.T                       # (3, P)
            cc = l2i[:, :3, :3] @ cc                                          # (N, 3, P)
            cc = cc + l2i[:, :3, 3][..., None]
            z = jnp.clip(cc[:, 2, :], 1e-5, 1e5)
            dist = z  # reference aliases dist to the (clamped-in-place) z row
            xy = cc[:, :2, :] / z[:, None, :]
            cc = jnp.concatenate([xy, z[:, None, :]], axis=1)
            cc = img_aug[:, :3, :3] @ cc
            cc = cc + img_aug[:, :3, 3][..., None]
            cc = cc[:, :2, :].transpose(0, 2, 1)[..., ::-1]                   # (N, P, 2) = [row, col]
            on_img = (cc[..., 0] < iH) & (cc[..., 0] >= 0) & (cc[..., 1] < iW) & (cc[..., 1] >= 0)
            for c in range(N):
                m = on_img[c]
                rows = jnp.where(m, cc[c, :, 0], jnp.float32(iH)).astype(jnp.int32)
                cols = jnp.where(m, cc[c, :, 1], jnp.float32(iW)).astype(jnp.int32)
                depth = depth.at[b, c, rows, cols, 0].set(dist[c], mode='drop')
                valid, gpts = project_pixels_to_ground(
                    cam_intrinsic[b, c], img_aug[c], lid_aug, l2i[c],
                    self.image_size, ground_height)
                d_ground = jnp.sqrt(gpts[..., 0] ** 2 + gpts[..., 1] ** 2)
                d_ground = jnp.clip(d_ground, self.dbound[0], self.dbound[1])
                depth = depth.at[b, c, :, :, 1].set(jnp.where(valid, d_ground, 0.0))
        return depth  # (B, N, iH, iW, 2)

    # ---- camera feature lifting (Pallas hot path, NHWC) ----
    def get_cam_feats(self, img, depth):
        B, N, Cin, fH, fW = img.shape
        BN = B * N
        iH, iW = self.image_size
        d = depth.reshape(BN, iH, iW, 2)
        x = img.reshape(BN, Cin, fH, fW).transpose(0, 2, 3, 1)   # single NCHW->NHWC at entry
        h = d
        for layer in self.dtransform:
            h = conv_layer_nhwc(h, layer)
        x = jnp.concatenate([h, x.astype(h.dtype)], axis=-1)     # (BN, fH, fW, 64+Cin) bf16
        for layer in self.depthnet:
            x = conv_layer_nhwc(x, layer)                        # (BN, fH, fW, 2+C) bf16
        S = fH * fW
        loc_raw = x[..., 0].reshape(BN, 1, S)
        scale_raw = x[..., 1].reshape(BN, 1, S)
        feat = x[..., 2:2 + self.C].reshape(BN, S, self.C)
        rh, rw = iH // fH, iW // fW
        d_ref = d[..., 1].reshape(BN, fH, rh, fW, rw).mean(axis=(2, 4)).reshape(BN, 1, S)
        out = depth_outer(feat, loc_raw, scale_raw, d_ref, self.ds_bins, self.D,
                          self.dbound, self.depth_norm_loc, self.depth_norm_scale)
        # (BN, D, S, C) bf16 — already in the row order bev_pool consumes (no transpose).
        return out

    # ---- BEV pooling ----
    # TODO(synk): voxel scatter-add is data-dependent; done with jnp .at[].add glue.
    def bev_pool(self, geom, x):
        B = geom.shape[0]
        C = x.shape[-1]
        Nprime = x.shape[0] * x.shape[1] * x.shape[2]            # BN * D * S
        xf = x.reshape(Nprime, C).astype(jnp.float32)            # accumulate in f32
        gi = jnp.trunc((geom - (self.bx - self.dx / 2.0)) / self.dx).astype(jnp.int32)
        gi = gi.reshape(Nprime, 3)
        batch_ix = jnp.repeat(jnp.arange(B, dtype=jnp.int32), Nprime // B)
        kept = ((gi[:, 0] >= 0) & (gi[:, 0] < self.nx[0]) &
                (gi[:, 1] >= 0) & (gi[:, 1] < self.nx[1]) &
                (gi[:, 2] >= 0) & (gi[:, 2] < self.nx[2]))
        xk = jnp.where(kept[:, None], xf, 0.0)
        gs = jnp.where(kept[:, None], gi, 0)
        out = jnp.zeros((B, self.nx[2], self.nx[0], self.nx[1], C), jnp.float32)
        out = out.at[batch_ix, gs[:, 2], gs[:, 0], gs[:, 1]].add(xk)
        out = out.transpose(0, 1, 4, 2, 3)                        # (B, nz, C, nx, ny)
        return out.reshape(B, self.nx[2] * C, self.nx[0], self.nx[1])

    def forward(self, img, points, lidar2image, cam_intrinsic, camera2lidar,
                img_aug_matrix, lidar_aug_matrix, metas):
        intrins = cam_intrinsic[..., :3, :3]
        post_rots = img_aug_matrix[..., :3, :3]
        post_trans = img_aug_matrix[..., :3, 3]
        c2l_rots = camera2lidar[..., :3, :3]
        c2l_trans = camera2lidar[..., :3, 3]
        extra_rots = lidar_aug_matrix[..., :3, :3]
        extra_trans = lidar_aug_matrix[..., :3, 3]
        depth = self.build_depth(points, lidar2image, cam_intrinsic,
                                 img_aug_matrix, lidar_aug_matrix, metas)
        geom = self.get_geometry(c2l_rots, c2l_trans, intrins, post_rots,
                                 post_trans, extra_rots, extra_trans)
        x = self.get_cam_feats(img, depth)
        x = self.bev_pool(geom, x)
        return x  # downsample == 1 -> Identity


# ----------------------------------------------------------------------------
# Example run
# ----------------------------------------------------------------------------
def _near_identity_mat4(key, rot_scale, t_scale):
    ka, kt = jax.random.split(key)
    R = jnp.eye(3, dtype=jnp.float32) + rot_scale * jax.random.normal(ka, (3, 3), jnp.float32)
    t = t_scale * jax.random.normal(kt, (3,), jnp.float32)
    return jnp.eye(4, dtype=jnp.float32).at[:3, :3].set(R).at[:3, 3].set(t)


if __name__ == "__main__":
    key = jax.random.PRNGKey(0)
    B, N = 2, 2
    in_channels, out_channels = 16, 8
    image_size = (32, 32)
    feature_size = (4, 4)

    k_img, k_p0, k_p1, k_mat, k_params = jax.random.split(key, 5)
    img = jax.random.normal(k_img, (B, N, in_channels, *feature_size), jnp.float32)
    points = [
        jax.random.uniform(k_p0, (64, 5), jnp.float32, -4.0, 4.0),
        jax.random.uniform(k_p1, (80, 5), jnp.float32, -4.0, 4.0),
    ]

    intr = jnp.array([[20., 0., 16., 0.],
                      [0., 20., 16., 0.],
                      [0., 0., 1., 0.],
                      [0., 0., 0., 1.]], jnp.float32)
    cam_intrinsic = jnp.broadcast_to(intr, (B, N, 4, 4))

    mkeys = jax.random.split(k_mat, 3 * B * N + B)
    camera2lidar = jnp.stack([
        jnp.stack([_near_identity_mat4(mkeys[b * N + n], 0.05, 0.3) for n in range(N)])
        for b in range(B)])
    img_aug_matrix = jnp.stack([
        jnp.stack([_near_identity_mat4(mkeys[B * N + b * N + n], 0.02, 2.0) for n in range(N)])
        for b in range(B)])
    lidar_aug_matrix = jnp.stack([
        _near_identity_mat4(mkeys[2 * B * N + b], 0.02, 0.1) for b in range(B)])
    lidar2image = cam_intrinsic @ jnp.linalg.inv(camera2lidar)

    lidar2ego = np.eye(4, dtype=np.float32)
    lidar2ego[2, 3] = 1.84
    metas = [{'lidar2ego': lidar2ego} for _ in range(B)]

    model = DepthNLSSTransformPallas(
        in_channels=in_channels, out_channels=out_channels,
        image_size=image_size, feature_size=feature_size,
        xbound=(-4.0, 4.0, 1.0), ybound=(-4.0, 4.0, 1.0),
        zbound=(-10.0, 10.0, 20.0), dbound=(1.0, 9.0, 1.0),
        downsample=1, key=k_params)

    out = model.forward(img, points, lidar2image, cam_intrinsic, camera2lidar,
                        img_aug_matrix, lidar_aug_matrix, metas)
    out = jax.block_until_ready(out)
    assert out.shape == (B, out_channels * model.nx[2], model.nx[0], model.nx[1]), out.shape
    assert bool(jnp.all(jnp.isfinite(out)))
    print("KERNEL_OK")
</pallas_src>

<mosaic_0001>
module attributes {stable_mosaic.version = 11 : i64} {
  func.func @_fused_matmul_kernel(%arg0: i32, %arg1: memref<2048x2xbf16, #tpu.memory_space<vmem>>, %arg2: memref<2x8xbf16, #tpu.memory_space<vmem>>, %arg3: memref<1x8xf32, #tpu.memory_space<vmem>>, %arg4: memref<1x8xf32, #tpu.memory_space<vmem>>, %arg5: memref<2048x8xbf16, #tpu.memory_space<vmem>>) attributes {dimension_semantics = [#tpu.dimension_semantics<parallel>], iteration_bounds = array<i64: 2>, scalar_prefetch = 0 : i64, scratch_operands = 0 : i64, tpu.core_type = #tpu.core_type<tc>, window_params = [{transform_indices = @transform_0, window_bounds = array<i64: 2048, 2>}, {pipeline_mode = #tpu.pipeline_mode<synchronous>, transform_indices = @transform_1, window_bounds = array<i64: 2, 8>}, {pipeline_mode = #tpu.pipeline_mode<synchronous>, transform_indices = @transform_2, window_bounds = array<i64: 1, 8>}, {pipeline_mode = #tpu.pipeline_mode<synchronous>, transform_indices = @transform_3, window_bounds = array<i64: 1, 8>}, {transform_indices = @transform_4, window_bounds = array<i64: 2048, 8>}]} {
    %c0 = arith.constant 0 : index
    %c0_0 = arith.constant 0 : index
    %0 = vector.load %arg1[%c0, %c0_0] : memref<2048x2xbf16, #tpu.memory_space<vmem>>, vector<2048x2xbf16>
    %c0_1 = arith.constant 0 : index
    %c0_2 = arith.constant 0 : index
    %1 = vector.load %arg2[%c0_1, %c0_2] : memref<2x8xbf16, #tpu.memory_space<vmem>>, vector<2x8xbf16>
    %cst = arith.constant dense<0.000000e+00> : vector<2048x8xf32>
    %2 = tpu.matmul %0, %1, %cst {dimension_numbers = #tpu.dot_dimension_numbers<[1], [0], [0], [1], [0, 0, 1, 1], [], []>} : vector<2048x2xbf16>, vector<2x8xbf16>, vector<2048x8xf32> -> vector<2048x8xf32>
    %c0_3 = arith.constant 0 : index
    %c0_4 = arith.constant 0 : index
    %3 = vector.load %arg3[%c0_3, %c0_4] : memref<1x8xf32, #tpu.memory_space<vmem>>, vector<1x8xf32>
    %4 = vector.broadcast %3 : vector<1x8xf32> to vector<2048x8xf32>
    %5 = arith.mulf %2, %4 : vector<2048x8xf32>
    %c0_5 = arith.constant 0 : index
    %c0_6 = arith.constant 0 : index
    %6 = vector.load %arg4[%c0_5, %c0_6] : memref<1x8xf32, #tpu.memory_space<vmem>>, vector<1x8xf32>
    %7 = vector.broadcast %6 : vector<1x8xf32> to vector<2048x8xf32>
    %8 = arith.addf %5, %7 : vector<2048x8xf32>
    %cst_7 = arith.constant 0.000000e+00 : f32
    %9 = vector.broadcast %cst_7 : f32 to vector<2048x8xf32>
    %10 = arith.maximumf %8, %9 : vector<2048x8xf32>
    %11 = arith.truncf %10 : vector<2048x8xf32> to vector<2048x8xbf16>
    %c0_8 = arith.constant 0 : index
    %c0_9 = arith.constant 0 : index
    %12 = vector.load %arg5[%c0_8, %c0_9] : memref<2048x8xbf16, #tpu.memory_space<vmem>>, vector<2048x8xbf16>
    tpu.vector_store %arg5[%c0_8, %c0_9], %11 {strides = array<i32>} : memref<2048x8xbf16, #tpu.memory_space<vmem>>, vector<2048x8xbf16>,
    return
  }
  func.func @transform_0(%arg0: i32) -> (i32, i32) {
    %c0_i32 = arith.constant 0 : i32
    %c0_i32_0 = arith.constant 0 : i32
    return %arg0, %c0_i32 : i32, i32
  }
  func.func @transform_1(%arg0: i32) -> (i32, i32) {
    %c0_i32 = arith.constant 0 : i32
    %c0_i32_0 = arith.constant 0 : i32
    %c0_i32_1 = arith.constant 0 : i32
    return %c0_i32, %c0_i32_0 : i32, i32
  }
  func.func @transform_2(%arg0: i32) -> (i32, i32) {
    %c0_i32 = arith.constant 0 : i32
    %c0_i32_0 = arith.constant 0 : i32
    %c0_i32_1 = arith.constant 0 : i32
    return %c0_i32, %c0_i32_0 : i32, i32
  }
  func.func @transform_3(%arg0: i32) -> (i32, i32) {
    %c0_i32 = arith.constant 0 : i32
    %c0_i32_0 = arith.constant 0 : i32
    %c0_i32_1 = arith.constant 0 : i32
    return %c0_i32, %c0_i32_0 : i32, i32
  }
  func.func @transform_4(%arg0: i32) -> (i32, i32) {
    %c0_i32 = arith.constant 0 : i32
    %c0_i32_0 = arith.constant 0 : i32
    return %arg0, %c0_i32 : i32, i32
  }
}

</mosaic_0001>

<llo_original>
// kernel: tpu_custom_call.1
$region0: #{tpu_custom_call.1}
  #allocation0 [shape = 'u32[]', space=smem, size = 0x4, offset = 0x4, fixed_abs, tag = 'smem constant byte address 0x4 - core index']
  #allocation1 [shape = 'u32[144,128]{1,0:T(1,128)}', space=vmem, size = 0x12000, scoped, tag = 'internal scratch']
  %s0 = inlined_call_operand.vmem [shape: bf16[4096,2], index: 0, kind: input, shape index: {}]
  %s1 = inlined_call_operand.vmem [shape: bf16[2,8], index: 1, kind: input, shape index: {}]
  %s2 = inlined_call_operand.vmem [shape: f32[1,8], index: 2, kind: input, shape index: {}]
  %s3 = inlined_call_operand.vmem [shape: f32[1,8], index: 3, kind: input, shape index: {}]
  %s4 = inlined_call_operand.vmem [shape: bf16[4096,8], index: 4, kind: output, shape index: {}]
  %s5 = sld [smem:[#allocation0]]
  $region49: #{tpu_custom_call.1} parent=0
    _
  %s7 = ssub.s32 1, %s5
  %s8 = scalar_select 0, %s7, %s5
  loop: start=0, step=1, limit=4
  $region2: #{tpu_custom_call.1} parent=0 // loop_pre_header
    _
  $region3: #{tpu_custom_call.1} parent=0 // loop_header
    %s10 = sphi 0, %s14
    %p11 = scmp.ge.s32.totalorder %s10, 4
    %s20 = sphi 0, %s22
    %s23 = sphi 0, %s20
    %s24 = sphi 0, %s23
    %s40 = sphi 0, %s24
    %s44 = sphi 0, %s44
    %s46 = sphi 0, %s44
    %s47 = sphi 0, %s46
    %s61 = sphi 0, %s47
    %s65 = sphi 0, %s65
    %s67 = sphi 0, %s65
    %s68 = sphi 0, %s67
    %s82 = sphi 0, %s68
    %s86 = sphi 0, %s86
    %s88 = sphi 0, %s86
    %s89 = sphi 0, %s88
    %s103 = sphi 0, %s89
    %s109 = sphi 0, %s111
    %s112 = sphi 0, %s109
    %s113 = sphi 0, %s112
    %s129 = sphi 0, %s113
  $region4: #{tpu_custom_call.1} parent=0 // loop_header_branch
    %13 = sbr.rel (%p11) target = $region8
  $region5: #{tpu_custom_call.1} parent=0 // loop_body
    %s15 = ssub.s32 %s10, 1
    %s16 = ssub.s32 %s10, 2
    %s17 = sadd.s32 %s10, 1
    %s18 = ssub.s32 %s10, %s17
    %p19 = scmp.eq.s32.totalorder %s18, 0
    %s21 = sadd.s32 %s20, 1
    %s22 = scalar_select %p19, %s20, %s21
    %p25 = pneg %p19
    %p26 = scmp.eq.s32.totalorder %s10, 1
    %p27 = por %p25, %p26
    %p28 = scmp.ne.s32.totalorder %s20, %s23
    %p29 = scmp.eq.s32.totalorder %s10, 0
    %p30 = por %p28, %p29
    %p31 = scmp.ne.s32.totalorder %s20, %s23
    %p32 = scmp.eq.s32.totalorder %s15, 1
    %p33 = por %p31, %p32
    %p34 = scmp.ne.s32.totalorder %s23, %s24
    %p35 = scmp.eq.s32.totalorder %s15, 0
    %p36 = por %p34, %p35
    %p37 = scmp.ne.s32.totalorder %s23, %s24
    %p38 = scmp.eq.s32.totalorder %s16, 1
    %p39 = por %p37, %p38
    %p41 = scmp.ne.s32.totalorder %s24, %s40
    %p42 = scmp.eq.s32.totalorder %s16, 0
    %p43 = por %p41, %p42
    %s45 = sadd.s32 %s44, 1
    %p48 = scmp.eq.s32.totalorder %s10, 1
    %p49 = scmp.ne.s32.totalorder %s44, %s46
    %p50 = scmp.eq.s32.totalorder %s10, 0
    %p51 = por %p49, %p50
    %p52 = scmp.ne.s32.totalorder %s44, %s46
    %p53 = scmp.eq.s32.totalorder %s15, 1
    %p54 = por %p52, %p53
    %p55 = scmp.ne.s32.totalorder %s46, %s47
    %p56 = scmp.eq.s32.totalorder %s15, 0
    %p57 = por %p55, %p56
    %p58 = scmp.ne.s32.totalorder %s46, %s47
    %p59 = scmp.eq.s32.totalorder %s16, 1
    %p60 = por %p58, %p59
    %p62 = scmp.ne.s32.totalorder %s47, %s61
    %p63 = scmp.eq.s32.totalorder %s16, 0
    %p64 = por %p62, %p63
    %s66 = sadd.s32 %s65, 1
    %p69 = scmp.eq.s32.totalorder %s10, 1
    %p70 = scmp.ne.s32.totalorder %s65, %s67
    %p71 = scmp.eq.s32.totalorder %s10, 0
    %p72 = por %p70, %p71
    %p73 = scmp.ne.s32.totalorder %s65, %s67
    %p74 = scmp.eq.s32.totalorder %s15, 1
    %p75 = por %p73, %p74
    %p76 = scmp.ne.s32.totalorder %s67, %s68
    %p77 = scmp.eq.s32.totalorder %s15, 0
    %p78 = por %p76, %p77
    %p79 = scmp.ne.s32.totalorder %s67, %s68
    %p80 = scmp.eq.s32.totalorder %s16, 1
    %p81 = por %p79, %p80
    %p83 = scmp.ne.s32.totalorder %s68, %s82
    %p84 = scmp.eq.s32.totalorder %s16, 0
    %p85 = por %p83, %p84
    %s87 = sadd.s32 %s86, 1
    %p90 = scmp.eq.s32.totalorder %s10, 1
    %p91 = scmp.ne.s32.totalorder %s86, %s88
    %p92 = scmp.eq.s32.totalorder %s10, 0
    %p93 = por %p91, %p92
    %p94 = scmp.ne.s32.totalorder %s86, %s88
    %p95 = scmp.eq.s32.totalorder %s15, 1
    %p96 = por %p94, %p95
    %p97 = scmp.ne.s32.totalorder %s88, %s89
    %p98 = scmp.eq.s32.totalorder %s15, 0
    %p99 = por %p97, %p98
    %p100 = scmp.ne.s32.totalorder %s88, %s89
    %p101 = scmp.eq.s32.totalorder %s16, 1
    %p102 = por %p100, %p101
    %p104 = scmp.ne.s32.totalorder %s89, %s103
    %p105 = scmp.eq.s32.totalorder %s16, 0
    %p106 = por %p104, %p105
    %s107 = ssub.s32 %s10, %s17
    %p108 = scmp.eq.s32.totalorder %s107, 0
    %s110 = sadd.s32 %s109, 1
    %s111 = scalar_select %p108, %s109, %s110
    %p114 = pneg %p108
    %p115 = scmp.eq.s32.totalorder %s10, 1
    %p116 = por %p114, %p115
    %p117 = scmp.ne.s32.totalorder %s109, %s112
    %p118 = scmp.eq.s32.totalorder %s10, 0
    %p119 = por %p117, %p118
    %p120 = scmp.ne.s32.totalorder %s109, %s112
    %p121 = scmp.eq.s32.totalorder %s15, 1
    %p122 = por %p120, %p121
    %p123 = scmp.ne.s32.totalorder %s112, %s113
    %p124 = scmp.eq.s32.totalorder %s15, 0
    %p125 = por %p123, %p124
    %p126 = scmp.ne.s32.totalorder %s112, %s113
    %p127 = scmp.eq.s32.totalorder %s16, 1
    %p128 = por %p126, %p127
    %p130 = scmp.ne.s32.totalorder %s113, %s129
    %p131 = scmp.eq.s32.totalorder %s16, 0
    %p132 = por %p130, %p131
    %p133 = scmp.le.s32.totalorder 1, %s10
    %p134 = scmp.lt.s32.totalorder %s10, 3
    %p135 = pnand %p133, %p134
    %p136 = pneg %p135
    // Predicated region
    $region9: #{tpu_custom_call.1} parent=5 // pred_check
      _
    $region10: #{tpu_custom_call.1} parent=5 // pred_check_branch
      %138 = sbr.rel (%p135) target = $region12
    $region11: #{tpu_custom_call.1} parent=5 // pred_region
      %s139 = ssub.s32 %s10, 1
      // Predicated region
      $region13: #{tpu_custom_call.1} parent=11 // pred_check
        %p140 = pneg %p57
      $region14: #{tpu_custom_call.1} parent=11 // pred_check_branch
        %142 = sbr.rel (%p140) target = $region16
      $region15: #{tpu_custom_call.1} parent=11 // pred_region
        _
      $region16: #{tpu_custom_call.1} parent=11 // pred_fallthru
        _
      // Predicated region
      $region17: #{tpu_custom_call.1} parent=11 // pred_check
        %p143 = pneg %p78
      $region18: #{tpu_custom_call.1} parent=11 // pred_check_branch
        %145 = sbr.rel (%p143) target = $region20
      $region19: #{tpu_custom_call.1} parent=11 // pred_region
        _
      $region20: #{tpu_custom_call.1} parent=11 // pred_fallthru
        _
      // Predicated region
      $region21: #{tpu_custom_call.1} parent=11 // pred_check
        %p146 = pneg %p99
      $region22: #{tpu_custom_call.1} parent=11 // pred_check_branch
        %148 = sbr.rel (%p146) target = $region24
      $region23: #{tpu_custom_call.1} parent=11 // pred_region
        _
      $region24: #{tpu_custom_call.1} parent=11 // pred_fallthru
        _
    $region12: #{tpu_custom_call.1} parent=5 // pred_fallthru
      _
    %p149 = scmp.lt.s32.totalorder %s10, 2
    // Predicated region
    $region25: #{tpu_custom_call.1} parent=5 // pred_check
      %p150 = pneg %p149
    $region26: #{tpu_custom_call.1} parent=5 // pred_check_branch
      %152 = sbr.rel (%p150) target = $region28
    $region27: #{tpu_custom_call.1} parent=5 // pred_region
      // Predicated region
      $region29: #{tpu_custom_call.1} parent=27 // pred_check
        %p153 = pneg %p30
      $region30: #{tpu_custom_call.1} parent=27 // pred_check_branch
        %155 = sbr.rel (%p153) target = $region32
      $region31: #{tpu_custom_call.1} parent=27 // pred_region
        %s156 = smul.u32 256, %s10
        %p157 = scmp.lt.s32.totalorder %s156, 511
        %s158 = scalar_select %p157, %s156, 511
        %s159 = smul.addr %s158, 4
        %s160 = scalar_lea.vmem %s0, %s159
        %s161 = smul.u32 256, %s10
      $region32: #{tpu_custom_call.1} parent=27 // pred_fallthru
        _
    $region28: #{tpu_custom_call.1} parent=5 // pred_fallthru
      _
    %p162 = scmp.le.s32.totalorder 1, %s10
    %p163 = scmp.lt.s32.totalorder %s10, 3
    %p164 = pnand %p162, %p163
    %p165 = pneg %p164
    // Predicated region
    $region33: #{tpu_custom_call.1} parent=5 // pred_check
      _
    $region34: #{tpu_custom_call.1} parent=5 // pred_check_branch
      %167 = sbr.rel (%p164) target = $region36
    $region35: #{tpu_custom_call.1} parent=5 // pred_region
      %s168 = ssub.s32 %s10, 1
      %s169 = smul.u32 256, %s15
      %p170 = scmp.lt.s32.totalorder %s169, 511
      %s171 = scalar_select %p170, %s169, 511
      %s172 = smul.addr %s171, 4
      %s173 = scalar_lea.vmem %s0, %s172
      %p174 = pneg %p36
      %p175 = pneg %p33
      %p176 = pneg %p57
      %p177 = pneg %p54
      %p178 = pneg %p78
      %p179 = pneg %p75
      %p180 = pneg %p99
      %p181 = pneg %p96
      %p182 = pneg %p125
      %p183 = pneg %p122
      %s184 = smul.u32 256, %s15
      %p185 = scmp.lt.s32.totalorder %s184, 511
      %s186 = scalar_select %p185, %s184, 511
      %s187 = smul.addr %s186, 4
      %s188 = scalar_lea.vmem %s4, %s187
      %s189 = smul.u32 256, %s15
      %p190 = scmp.lt.s32.totalorder %s189, 511
      %s191 = scalar_select %p190, %s189, 511
      %s192 = smul.addr %s191, 4
      %s193 = scalar_lea.vmem %s0, %s192
      %s194 = smul.u32 256, %s15
      %s195 = smul.u32 256, %s15
      %p196 = scmp.lt.s32.totalorder %s195, 511
      %s197 = scalar_select %p196, %s195, 511
      %s198 = smul.addr %s197, 4
      %s199 = scalar_lea.vmem %s4, %s198
      %s200 = smul.u32 256, %s15
      %v202 = vld [vmem:[%s193] sm:$0xf]
      %v203 = vld [vmem:[%s193 + $0x4] sm:$0xf]
      %v204 = vld [vmem:[%s193 + $0x8] sm:$0xf]
      %v205 = vld [vmem:[%s193 + $0xc] sm:$0xf]
      %v206 = vld [vmem:[%s193 + $0x10] sm:$0xf]
      %v207 = vld [vmem:[%s193 + $0x14] sm:$0xf]
      %v208 = vld [vmem:[%s193 + $0x18] sm:$0xf]
      %v209 = vld [vmem:[%s193 + $0x1c] sm:$0xf]
      %v210 = vld [vmem:[%s193 + $0x20] sm:$0xf]
      %v211 = vld [vmem:[%s193 + $0x24] sm:$0xf]
      %v212 = vld [vmem:[%s193 + $0x28] sm:$0xf]
      %v213 = vld [vmem:[%s193 + $0x2c] sm:$0xf]
      %v214 = vld [vmem:[%s193 + $0x30] sm:$0xf]
      %v215 = vld [vmem:[%s193 + $0x34] sm:$0xf]
      %v216 = vld [vmem:[%s193 + $0x38] sm:$0xf]
      %v217 = vld [vmem:[%s193 + $0x3c] sm:$0xf]
      %v218 = vld [vmem:[%s193 + $0x40] sm:$0xf]
      %v219 = vld [vmem:[%s193 + $0x44] sm:$0xf]
      %v220 = vld [vmem:[%s193 + $0x48] sm:$0xf]
      %v221 = vld [vmem:[%s193 + $0x4c] sm:$0xf]
      %v222 = vld [vmem:[%s193 + $0x50] sm:$0xf]
      %v223 = vld [vmem:[%s193 + $0x54] sm:$0xf]
      %v224 = vld [vmem:[%s193 + $0x58] sm:$0xf]
      %v225 = vld [vmem:[%s193 + $0x5c] sm:$0xf]
      %v226 = vld [vmem:[%s193 + $0x60] sm:$0xf]
      %v227 = vld [vmem:[%s193 + $0x64] sm:$0xf]
      %v228 = vld [vmem:[%s193 + $0x68] sm:$0xf]
      %v229 = vld [vmem:[%s193 + $0x6c] sm:$0xf]
      %v230 = vld [vmem:[%s193 + $0x70] sm:$0xf]
      %v231 = vld [vmem:[%s193 + $0x74] sm:$0xf]
      %v232 = vld [vmem:[%s193 + $0x78] sm:$0xf]
      %v233 = vld [vmem:[%s193 + $0x7c] sm:$0xf]
      %v234 = vld [vmem:[%s193 + $0x80] sm:$0xf]
      %v235 = vld [vmem:[%s193 + $0x84] sm:$0xf]
      %v236 = vld [vmem:[%s193 + $0x88] sm:$0xf]
      %v237 = vld [vmem:[%s193 + $0x8c] sm:$0xf]
      %v238 = vld [vmem:[%s193 + $0x90] sm:$0xf]
      %v239 = vld [vmem:[%s193 + $0x94] sm:$0xf]
      %v240 = vld [vmem:[%s193 + $0x98] sm:$0xf]
      %v241 = vld [vmem:[%s193 + $0x9c] sm:$0xf]
      %v242 = vld [vmem:[%s193 + $0xa0] sm:$0xf]
      %v243 = vld [vmem:[%s193 + $0xa4] sm:$0xf]
      %v244 = vld [vmem:[%s193 + $0xa8] sm:$0xf]
      %v245 = vld [vmem:[%s193 + $0xac] sm:$0xf]
      %v246 = vld [vmem:[%s193 + $0xb0] sm:$0xf]
      %v247 = vld [vmem:[%s193 + $0xb4] sm:$0xf]
      %v248 = vld [vmem:[%s193 + $0xb8] sm:$0xf]
      %v249 = vld [vmem:[%s193 + $0xbc] sm:$0xf]
      %v250 = vld [vmem:[%s193 + $0xc0] sm:$0xf]
      %v251 = vld [vmem:[%s193 + $0xc4] sm:$0xf]
      %v252 = vld [vmem:[%s193 + $0xc8] sm:$0xf]
      %v253 = vld [vmem:[%s193 + $0xcc] sm:$0xf]
      %v254 = vld [vmem:[%s193 + $0xd0] sm:$0xf]
      %v255 = vld [vmem:[%s193 + $0xd4] sm:$0xf]
      %v256 = vld [vmem:[%s193 + $0xd8] sm:$0xf]
      %v257 = vld [vmem:[%s193 + $0xdc] sm:$0xf]
      %v258 = vld [vmem:[%s193 + $0xe0] sm:$0xf]
      %v259 = vld [vmem:[%s193 + $0xe4] sm:$0xf]
      %v260 = vld [vmem:[%s193 + $0xe8] sm:$0xf]
      %v261 = vld [vmem:[%s193 + $0xec] sm:$0xf]
      %v262 = vld [vmem:[%s193 + $0xf0] sm:$0xf]
      %v263 = vld [vmem:[%s193 + $0xf4] sm:$0xf]
      %v264 = vld [vmem:[%s193 + $0xf8] sm:$0xf]
      %v265 = vld [vmem:[%s193 + $0xfc] sm:$0xf]
      %v266 = vld [vmem:[%s193 + $0x100] sm:$0xf]
      %v267 = vld [vmem:[%s193 + $0x104] sm:$0xf]
      %v268 = vld [vmem:[%s193 + $0x108] sm:$0xf]
      %v269 = vld [vmem:[%s193 + $0x10c] sm:$0xf]
      %v270 = vld [vmem:[%s193 + $0x110] sm:$0xf]
      %v271 = vld [vmem:[%s193 + $0x114] sm:$0xf]
      %v272 = vld [vmem:[%s193 + $0x118] sm:$0xf]
      %v273 = vld [vmem:[%s193 + $0x11c] sm:$0xf]
      %v274 = vld [vmem:[%s193 + $0x120] sm:$0xf]
      %v275 = vld [vmem:[%s193 + $0x124] sm:$0xf]
      %v276 = vld [vmem:[%s193 + $0x128] sm:$0xf]
      %v277 = vld [vmem:[%s193 + $0x12c] sm:$0xf]
      %v278 = vld [vmem:[%s193 + $0x130] sm:$0xf]
      %v279 = vld [vmem:[%s193 + $0x134] sm:$0xf]
      %v280 = vld [vmem:[%s193 + $0x138] sm:$0xf]
      %v281 = vld [vmem:[%s193 + $0x13c] sm:$0xf]
      %v282 = vld [vmem:[%s193 + $0x140] sm:$0xf]
      %v283 = vld [vmem:[%s193 + $0x144] sm:$0xf]
      %v284 = vld [vmem:[%s193 + $0x148] sm:$0xf]
      %v285 = vld [vmem:[%s193 + $0x14c] sm:$0xf]
      %v286 = vld [vmem:[%s193 + $0x150] sm:$0xf]
      %v287 = vld [vmem:[%s193 + $0x154] sm:$0xf]
      %v288 = vld [vmem:[%s193 + $0x158] sm:$0xf]
      %v289 = vld [vmem:[%s193 + $0x15c] sm:$0xf]
      %v290 = vld [vmem:[%s193 + $0x160] sm:$0xf]
      %v291 = vld [vmem:[%s193 + $0x164] sm:$0xf]
      %v292 = vld [vmem:[%s193 + $0x168] sm:$0xf]
      %v293 = vld [vmem:[%s193 + $0x16c] sm:$0xf]
      %v294 = vld [vmem:[%s193 + $0x170] sm:$0xf]
      %v295 = vld [vmem:[%s193 + $0x174] sm:$0xf]
      %v296 = vld [vmem:[%s193 + $0x178] sm:$0xf]
      %v297 = vld [vmem:[%s193 + $0x17c] sm:$0xf]
      %v298 = vld [vmem:[%s193 + $0x180] sm:$0xf]
      %v299 = vld [vmem:[%s193 + $0x184] sm:$0xf]
      %v300 = vld [vmem:[%s193 + $0x188] sm:$0xf]
      %v301 = vld [vmem:[%s193 + $0x18c] sm:$0xf]
      %v302 = vld [vmem:[%s193 + $0x190] sm:$0xf]
      %v303 = vld [vmem:[%s193 + $0x194] sm:$0xf]
      %v304 = vld [vmem:[%s193 + $0x198] sm:$0xf]
      %v305 = vld [vmem:[%s193 + $0x19c] sm:$0xf]
      %v306 = vld [vmem:[%s193 + $0x1a0] sm:$0xf]
      %v307 = vld [vmem:[%s193 + $0x1a4] sm:$0xf]
      %v308 = vld [vmem:[%s193 + $0x1a8] sm:$0xf]
      %v309 = vld [vmem:[%s193 + $0x1ac] sm:$0xf]
      %v310 = vld [vmem:[%s193 + $0x1b0] sm:$0xf]
      %v311 = vld [vmem:[%s193 + $0x1b4] sm:$0xf]
      %v312 = vld [vmem:[%s193 + $0x1b8] sm:$0xf]
      %v313 = vld [vmem:[%s193 + $0x1bc] sm:$0xf]
      %v314 = vld [vmem:[%s193 + $0x1c0] sm:$0xf]
      %v315 = vld [vmem:[%s193 + $0x1c4] sm:$0xf]
      %v316 = vld [vmem:[%s193 + $0x1c8] sm:$0xf]
      %v317 = vld [vmem:[%s193 + $0x1cc] sm:$0xf]
      %v318 = vld [vmem:[%s193 + $0x1d0] sm:$0xf]
      %v319 = vld [vmem:[%s193 + $0x1d4] sm:$0xf]
      %v320 = vld [vmem:[%s193 + $0x1d8] sm:$0xf]
      %v321 = vld [vmem:[%s193 + $0x1dc] sm:$0xf]
      %v322 = vld [vmem:[%s193 + $0x1e0] sm:$0xf]
      %v323 = vld [vmem:[%s193 + $0x1e4] sm:$0xf]
      %v324 = vld [vmem:[%s193 + $0x1e8] sm:$0xf]
      %v325 = vld [vmem:[%s193 + $0x1ec] sm:$0xf]
      %v326 = vld [vmem:[%s193 + $0x1f0] sm:$0xf]
      %v327 = vld [vmem:[%s193 + $0x1f4] sm:$0xf]
      %v328 = vld [vmem:[%s193 + $0x1f8] sm:$0xf]
      %v329 = vld [vmem:[%s193 + $0x1fc] sm:$0xf]
      %v330 = vld [vmem:[%s193 + $0x200] sm:$0xf]
      %v331 = vld [vmem:[%s193 + $0x204] sm:$0xf]
      %v332 = vld [vmem:[%s193 + $0x208] sm:$0xf]
      %v333 = vld [vmem:[%s193 + $0x20c] sm:$0xf]
      %v334 = vld [vmem:[%s193 + $0x210] sm:$0xf]
      %v335 = vld [vmem:[%s193 + $0x214] sm:$0xf]
      %v336 = vld [vmem:[%s193 + $0x218] sm:$0xf]
      %v337 = vld [vmem:[%s193 + $0x21c] sm:$0xf]
      %v338 = vld [vmem:[%s193 + $0x220] sm:$0xf]
      %v339 = vld [vmem:[%s193 + $0x224] sm:$0xf]
      %v340 = vld [vmem:[%s193 + $0x228] sm:$0xf]
      %v341 = vld [vmem:[%s193 + $0x22c] sm:$0xf]
      %v342 = vld [vmem:[%s193 + $0x230] sm:$0xf]
      %v343 = vld [vmem:[%s193 + $0x234] sm:$0xf]
      %v344 = vld [vmem:[%s193 + $0x238] sm:$0xf]
      %v345 = vld [vmem:[%s193 + $0x23c] sm:$0xf]
      %v346 = vld [vmem:[%s193 + $0x240] sm:$0xf]
      %v347 = vld [vmem:[%s193 + $0x244] sm:$0xf]
      %v348 = vld [vmem:[%s193 + $0x248] sm:$0xf]
      %v349 = vld [vmem:[%s193 + $0x24c] sm:$0xf]
      %v350 = vld [vmem:[%s193 + $0x250] sm:$0xf]
      %v351 = vld [vmem:[%s193 + $0x254] sm:$0xf]
      %v352 = vld [vmem:[%s193 + $0x258] sm:$0xf]
      %v353 = vld [vmem:[%s193 + $0x25c] sm:$0xf]
      %v354 = vld [vmem:[%s193 + $0x260] sm:$0xf]
      %v355 = vld [vmem:[%s193 + $0x264] sm:$0xf]
      %v356 = vld [vmem:[%s193 + $0x268] sm:$0xf]
      %v357 = vld [vmem:[%s193 + $0x26c] sm:$0xf]
      %v358 = vld [vmem:[%s193 + $0x270] sm:$0xf]
      %v359 = vld [vmem:[%s193 + $0x274] sm:$0xf]
      %v360 = vld [vmem:[%s193 + $0x278] sm:$0xf]
      %v361 = vld [vmem:[%s193 + $0x27c] sm:$0xf]
      %v362 = vld [vmem:[%s193 + $0x280] sm:$0xf]
      %v363 = vld [vmem:[%s193 + $0x284] sm:$0xf]
      %v364 = vld [vmem:[%s193 + $0x288] sm:$0xf]
      %v365 = vld [vmem:[%s193 + $0x28c] sm:$0xf]
      %v366 = vld [vmem:[%s193 + $0x290] sm:$0xf]
      %v367 = vld [vmem:[%s193 + $0x294] sm:$0xf]
      %v368 = vld [vmem:[%s193 + $0x298] sm:$0xf]
      %v369 = vld [vmem:[%s193 + $0x29c] sm:$0xf]
      %v370 = vld [vmem:[%s193 + $0x2a0] sm:$0xf]
      %v371 = vld [vmem:[%s193 + $0x2a4] sm:$0xf]
      %v372 = vld [vmem:[%s193 + $0x2a8] sm:$0xf]
      %v373 = vld [vmem:[%s193 + $0x2ac] sm:$0xf]
      %v374 = vld [vmem:[%s193 + $0x2b0] sm:$0xf]
      %v375 = vld [vmem:[%s193 + $0x2b4] sm:$0xf]
      %v376 = vld [vmem:[%s193 + $0x2b8] sm:$0xf]
      %v377 = vld [vmem:[%s193 + $0x2bc] sm:$0xf]
      %v378 = vld [vmem:[%s193 + $0x2c0] sm:$0xf]
      %v379 = vld [vmem:[%s193 + $0x2c4] sm:$0xf]
      %v380 = vld [vmem:[%s193 + $0x2c8] sm:$0xf]
      %v381 = vld [vmem:[%s193 + $0x2cc] sm:$0xf]
      %v382 = vld [vmem:[%s193 + $0x2d0] sm:$0xf]
      %v383 = vld [vmem:[%s193 + $0x2d4] sm:$0xf]
      %v384 = vld [vmem:[%s193 + $0x2d8] sm:$0xf]
      %v385 = vld [vmem:[%s193 + $0x2dc] sm:$0xf]
      %v386 = vld [vmem:[%s193 + $0x2e0] sm:$0xf]
      %v387 = vld [vmem:[%s193 + $0x2e4] sm:$0xf]
      %v388 = vld [vmem:[%s193 + $0x2e8] sm:$0xf]
      %v389 = vld [vmem:[%s193 + $0x2ec] sm:$0xf]
      %v390 = vld [vmem:[%s193 + $0x2f0] sm:$0xf]
      %v391 = vld [vmem:[%s193 + $0x2f4] sm:$0xf]
      %v392 = vld [vmem:[%s193 + $0x2f8] sm:$0xf]
      %v393 = vld [vmem:[%s193 + $0x2fc] sm:$0xf]
      %v394 = vld [vmem:[%s193 + $0x300] sm:$0xf]
      %v395 = vld [vmem:[%s193 + $0x304] sm:$0xf]
      %v396 = vld [vmem:[%s193 + $0x308] sm:$0xf]
      %v397 = vld [vmem:[%s193 + $0x30c] sm:$0xf]
      %v398 = vld [vmem:[%s193 + $0x310] sm:$0xf]
      %v399 = vld [vmem:[%s193 + $0x314] sm:$0xf]
      %v400 = vld [vmem:[%s193 + $0x318] sm:$0xf]
      %v401 = vld [vmem:[%s193 + $0x31c] sm:$0xf]
      %v402 = vld [vmem:[%s193 + $0x320] sm:$0xf]
      %v403 = vld [vmem:[%s193 + $0x324] sm:$0xf]
      %v404 = vld [vmem:[%s193 + $0x328] sm:$0xf]
      %v405 = vld [vmem:[%s193 + $0x32c] sm:$0xf]
      %v406 = vld [vmem:[%s193 + $0x330] sm:$0xf]
      %v407 = vld [vmem:[%s193 + $0x334] sm:$0xf]
      %v408 = vld [vmem:[%s193 + $0x338] sm:$0xf]
      %v409 = vld [vmem:[%s193 + $0x33c] sm:$0xf]
      %v410 = vld [vmem:[%s193 + $0x340] sm:$0xf]
      %v411 = vld [vmem:[%s193 + $0x344] sm:$0xf]
      %v412 = vld [vmem:[%s193 + $0x348] sm:$0xf]
      %v413 = vld [vmem:[%s193 + $0x34c] sm:$0xf]
      %v414 = vld [vmem:[%s193 + $0x350] sm:$0xf]
      %v415 = vld [vmem:[%s193 + $0x354] sm:$0xf]
      %v416 = vld [vmem:[%s193 + $0x358] sm:$0xf]
      %v417 = vld [vmem:[%s193 + $0x35c] sm:$0xf]
      %v418 = vld [vmem:[%s193 + $0x360] sm:$0xf]
      %v419 = vld [vmem:[%s193 + $0x364] sm:$0xf]
      %v420 = vld [vmem:[%s193 + $0x368] sm:$0xf]
      %v421 = vld [vmem:[%s193 + $0x36c] sm:$0xf]
      %v422 = vld [vmem:[%s193 + $0x370] sm:$0xf]
      %v423 = vld [vmem:[%s193 + $0x374] sm:$0xf]
      %v424 = vld [vmem:[%s193 + $0x378] sm:$0xf]
      %v425 = vld [vmem:[%s193 + $0x37c] sm:$0xf]
      %v426 = vld [vmem:[%s193 + $0x380] sm:$0xf]
      %v427 = vld [vmem:[%s193 + $0x384] sm:$0xf]
      %v428 = vld [vmem:[%s193 + $0x388] sm:$0xf]
      %v429 = vld [vmem:[%s193 + $0x38c] sm:$0xf]
      %v430 = vld [vmem:[%s193 + $0x390] sm:$0xf]
      %v431 = vld [vmem:[%s193 + $0x394] sm:$0xf]
      %v432 = vld [vmem:[%s193 + $0x398] sm:$0xf]
      %v433 = vld [vmem:[%s193 + $0x39c] sm:$0xf]
      %v434 = vld [vmem:[%s193 + $0x3a0] sm:$0xf]
      %v435 = vld [vmem:[%s193 + $0x3a4] sm:$0xf]
      %v436 = vld [vmem:[%s193 + $0x3a8] sm:$0xf]
      %v437 = vld [vmem:[%s193 + $0x3ac] sm:$0xf]
      %v438 = vld [vmem:[%s193 + $0x3b0] sm:$0xf]
      %v439 = vld [vmem:[%s193 + $0x3b4] sm:$0xf]
      %v440 = vld [vmem:[%s193 + $0x3b8] sm:$0xf]
      %v441 = vld [vmem:[%s193 + $0x3bc] sm:$0xf]
      %v442 = vld [vmem:[%s193 + $0x3c0] sm:$0xf]
      %v443 = vld [vmem:[%s193 + $0x3c4] sm:$0xf]
      %v444 = vld [vmem:[%s193 + $0x3c8] sm:$0xf]
      %v445 = vld [vmem:[%s193 + $0x3cc] sm:$0xf]
      %v446 = vld [vmem:[%s193 + $0x3d0] sm:$0xf]
      %v447 = vld [vmem:[%s193 + $0x3d4] sm:$0xf]
      %v448 = vld [vmem:[%s193 + $0x3d8] sm:$0xf]
      %v449 = vld [vmem:[%s193 + $0x3dc] sm:$0xf]
      %v450 = vld [vmem:[%s193 + $0x3e0] sm:$0xf]
      %v451 = vld [vmem:[%s193 + $0x3e4] sm:$0xf]
      %v452 = vld [vmem:[%s193 + $0x3e8] sm:$0xf]
      %v453 = vld [vmem:[%s193 + $0x3ec] sm:$0xf]
      %v454 = vld [vmem:[%s193 + $0x3f0] sm:$0xf]
      %v455 = vld [vmem:[%s193 + $0x3f4] sm:$0xf]
      %v456 = vld [vmem:[%s193 + $0x3f8] sm:$0xf]
      %v457 = vld [vmem:[%s193 + $0x3fc] sm:$0xf]
      %v458 = vld [vmem:[%s1] sm:$0x1]
      %v715 = vunpack.c.l.b16 %v202
      %v716 = vunpack.c.l.b16 %v203
      %v717 = vunpack.c.l.b16 %v204
      %v718 = vunpack.c.l.b16 %v205
      %v719 = vunpack.c.l.b16 %v206
      %v720 = vunpack.c.l.b16 %v207
      %v721 = vunpack.c.l.b16 %v208
      %v722 = vunpack.c.l.b16 %v209
      %v723 = vunpack.c.l.b16 %v210
      %v724 = vunpack.c.l.b16 %v211
      %v725 = vunpack.c.l.b16 %v212
      %v726 = vunpack.c.l.b16 %v213
      %v727 = vunpack.c.l.b16 %v214
      %v728 = vunpack.c.l.b16 %v215
      %v729 = vunpack.c.l.b16 %v216
      %v730 = vunpack.c.l.b16 %v217
      %v731 = vunpack.c.l.b16 %v218
      %v732 = vunpack.c.l.b16 %v219
      %v733 = vunpack.c.l.b16 %v220
      %v734 = vunpack.c.l.b16 %v221
      %v735 = vunpack.c.l.b16 %v222
      %v736 = vunpack.c.l.b16 %v223
      %v737 = vunpack.c.l.b16 %v224
      %v738 = vunpack.c.l.b16 %v225
      %v739 = vunpack.c.l.b16 %v226
      %v740 = vunpack.c.l.b16 %v227
      %v741 = vunpack.c.l.b16 %v228
      %v742 = vunpack.c.l.b16 %v229
      %v743 = vunpack.c.l.b16 %v230
      %v744 = vunpack.c.l.b16 %v231
      %v745 = vunpack.c.l.b16 %v232
      %v746 = vunpack.c.l.b16 %v233
      %v747 = vunpack.c.l.b16 %v234
      %v748 = vunpack.c.l.b16 %v235
      %v749 = vunpack.c.l.b16 %v236
      %v750 = vunpack.c.l.b16 %v237
      %v751 = vunpack.c.l.b16 %v238
      %v752 = vunpack.c.l.b16 %v239
      %v753 = vunpack.c.l.b16 %v240
      %v754 = vunpack.c.l.b16 %v241
      %v755 = vunpack.c.l.b16 %v242
      %v756 = vunpack.c.l.b16 %v243
      %v757 = vunpack.c.l.b16 %v244
      %v758 = vunpack.c.l.b16 %v245
      %v759 = vunpack.c.l.b16 %v246
      %v760 = vunpack.c.l.b16 %v247
      %v761 = vunpack.c.l.b16 %v248
      %v762 = vunpack.c.l.b16 %v249
      %v763 = vunpack.c.l.b16 %v250
      %v764 = vunpack.c.l.b16 %v251
      %v765 = vunpack.c.l.b16 %v252
      %v766 = vunpack.c.l.b16 %v253
      %v767 = vunpack.c.l.b16 %v254
      %v768 = vunpack.c.l.b16 %v255
      %v769 = vunpack.c.l.b16 %v256
      %v770 = vunpack.c.l.b16 %v257
      %v771 = vunpack.c.l.b16 %v258
      %v772 = vunpack.c.l.b16 %v259
      %v773 = vunpack.c.l.b16 %v260
      %v774 = vunpack.c.l.b16 %v261
      %v775 = vunpack.c.l.b16 %v262
      %v776 = vunpack.c.l.b16 %v263
      %v777 = vunpack.c.l.b16 %v264
      %v778 = vunpack.c.l.b16 %v265
      %v779 = vunpack.c.l.b16 %v266
      %v780 = vunpack.c.l.b16 %v267
      %v781 = vunpack.c.l.b16 %v268
      %v782 = vunpack.c.l.b16 %v269
      %v783 = vunpack.c.l.b16 %v270
      %v784 = vunpack.c.l.b16 %v271
      %v785 = vunpack.c.l.b16 %v272
      %v786 = vunpack.c.l.b16 %v273
      %v787 = vunpack.c.l.b16 %v274
      %v788 = vunpack.c.l.b16 %v275
      %v789 = vunpack.c.l.b16 %v276
      %v790 = vunpack.c.l.b16 %v277
      %v791 = vunpack.c.l.b16 %v278
      %v792 = vunpack.c.l.b16 %v279
      %v793 = vunpack.c.l.b16 %v280
      %v794 = vunpack.c.l.b16 %v281
      %v795 = vunpack.c.l.b16 %v282
      %v796 = vunpack.c.l.b16 %v283
      %v797 = vunpack.c.l.b16 %v284
      %v798 = vunpack.c.l.b16 %v285
      %v799 = vunpack.c.l.b16 %v286
      %v800 = vunpack.c.l.b16 %v287
      %v801 = vunpack.c.l.b16 %v288
      %v802 = vunpack.c.l.b16 %v289
      %v803 = vunpack.c.l.b16 %v290
      %v804 = vunpack.c.l.b16 %v291
      %v805 = vunpack.c.l.b16 %v292
      %v806 = vunpack.c.l.b16 %v293
      %v807 = vunpack.c.l.b16 %v294
      %v808 = vunpack.c.l.b16 %v295
      %v809 = vunpack.c.l.b16 %v296
      %v810 = vunpack.c.l.b16 %v297
      %v811 = vunpack.c.l.b16 %v298
      %v812 = vunpack.c.l.b16 %v299
      %v813 = vunpack.c.l.b16 %v300
      %v814 = vunpack.c.l.b16 %v301
      %v815 = vunpack.c.l.b16 %v302
      %v816 = vunpack.c.l.b16 %v303
      %v817 = vunpack.c.l.b16 %v304
      %v818 = vunpack.c.l.b16 %v305
      %v819 = vunpack.c.l.b16 %v306
      %v820 = vunpack.c.l.b16 %v307
      %v821 = vunpack.c.l.b16 %v308
      %v822 = vunpack.c.l.b16 %v309
      %v823 = vunpack.c.l.b16 %v310
      %v824 = vunpack.c.l.b16 %v311
      %v825 = vunpack.c.l.b16 %v312
      %v826 = vunpack.c.l.b16 %v313
      %v827 = vunpack.c.l.b16 %v314
      %v828 = vunpack.c.l.b16 %v315
      %v829 = vunpack.c.l.b16 %v316
      %v830 = vunpack.c.l.b16 %v317
      %v831 = vunpack.c.l.b16 %v318
      %v832 = vunpack.c.l.b16 %v319
      %v833 = vunpack.c.l.b16 %v320
      %v834 = vunpack.c.l.b16 %v321
      %v835 = vunpack.c.l.b16 %v322
      %v836 = vunpack.c.l.b16 %v323
      %v837 = vunpack.c.l.b16 %v324
      %v838 = vunpack.c.l.b16 %v325
      %v839 = vunpack.c.l.b16 %v326
      %v840 = vunpack.c.l.b16 %v327
      %v841 = vunpack.c.l.b16 %v328
      %v842 = vunpack.c.l.b16 %v329
      %v843 = vunpack.c.l.b16 %v330
      %v844 = vunpack.c.l.b16 %v331
      %v845 = vunpack.c.l.b16 %v332
      %v846 = vunpack.c.l.b16 %v333
      %v847 = vunpack.c.l.b16 %v334
      %v848 = vunpack.c.l.b16 %v335
      %v849 = vunpack.c.l.b16 %v336
      %v850 = vunpack.c.l.b16 %v337
      %v851 = vunpack.c.l.b16 %v338
      %v852 = vunpack.c.l.b16 %v339
      %v853 = vunpack.c.l.b16 %v340
      %v854 = vunpack.c.l.b16 %v341
      %v855 = vunpack.c.l.b16 %v342
      %v856 = vunpack.c.l.b16 %v343
      %v857 = vunpack.c.l.b16 %v344
      %v858 = vunpack.c.l.b16 %v345
      %v859 = vunpack.c.l.b16 %v346
      %v860 = vunpack.c.l.b16 %v347
      %v861 = vunpack.c.l.b16 %v348
      %v862 = vunpack.c.l.b16 %v349
      %v863 = vunpack.c.l.b16 %v350
      %v864 = vunpack.c.l.b16 %v351
      %v865 = vunpack.c.l.b16 %v352
      %v866 = vunpack.c.l.b16 %v353
      %v867 = vunpack.c.l.b16 %v354
      %v868 = vunpack.c.l.b16 %v355
      %v869 = vunpack.c.l.b16 %v356
      %v870 = vunpack.c.l.b16 %v357
      %v871 = vunpack.c.l.b16 %v358
      %v872 = vunpack.c.l.b16 %v359
      %v873 = vunpack.c.l.b16 %v360
      %v874 = vunpack.c.l.b16 %v361
      %v875 = vunpack.c.l.b16 %v362
      %v876 = vunpack.c.l.b16 %v363
      %v877 = vunpack.c.l.b16 %v364
      %v878 = vunpack.c.l.b16 %v365
      %v879 = vunpack.c.l.b16 %v366
      %v880 = vunpack.c.l.b16 %v367
      %v881 = vunpack.c.l.b16 %v368
      %v882 = vunpack.c.l.b16 %v369
      %v883 = vunpack.c.l.b16 %v370
      %v884 = vunpack.c.l.b16 %v371
      %v885 = vunpack.c.l.b16 %v372
      %v886 = vunpack.c.l.b16 %v373
      %v887 = vunpack.c.l.b16 %v374
      %v888 = vunpack.c.l.b16 %v375
      %v889 = vunpack.c.l.b16 %v376
      %v890 = vunpack.c.l.b16 %v377
      %v891 = vunpack.c.l.b16 %v378
      %v892 = vunpack.c.l.b16 %v379
      %v893 = vunpack.c.l.b16 %v380
      %v894 = vunpack.c.l.b16 %v381
      %v895 = vunpack.c.l.b16 %v382
      %v896 = vunpack.c.l.b16 %v383
      %v897 = vunpack.c.l.b16 %v384
      %v898 = vunpack.c.l.b16 %v385
      %v899 = vunpack.c.l.b16 %v386
      %v900 = vunpack.c.l.b16 %v387
      %v901 = vunpack.c.l.b16 %v388
      %v902 = vunpack.c.l.b16 %v389
      %v903 = vunpack.c.l.b16 %v390
      %v904 = vunpack.c.l.b16 %v391
      %v905 = vunpack.c.l.b16 %v392
      %v906 = vunpack.c.l.b16 %v393
      %v907 = vunpack.c.l.b16 %v394
      %v908 = vunpack.c.l.b16 %v395
      %v909 = vunpack.c.l.b16 %v396
      %v910 = vunpack.c.l.b16 %v397
      %v911 = vunpack.c.l.b16 %v398
      %v912 = vunpack.c.l.b16 %v399
      %v913 = vunpack.c.l.b16 %v400
      %v914 = vunpack.c.l.b16 %v401
      %v915 = vunpack.c.l.b16 %v402
      %v916 = vunpack.c.l.b16 %v403
      %v917 = vunpack.c.l.b16 %v404
      %v918 = vunpack.c.l.b16 %v405
      %v919 = vunpack.c.l.b16 %v406
      %v920 = vunpack.c.l.b16 %v407
      %v921 = vunpack.c.l.b16 %v408
      %v922 = vunpack.c.l.b16 %v409
      %v923 = vunpack.c.l.b16 %v410
      %v924 = vunpack.c.l.b16 %v411
      %v925 = vunpack.c.l.b16 %v412
      %v926 = vunpack.c.l.b16 %v413
      %v927 = vunpack.c.l.b16 %v414
      %v928 = vunpack.c.l.b16 %v415
      %v929 = vunpack.c.l.b16 %v416
      %v930 = vunpack.c.l.b16 %v417
      %v931 = vunpack.c.l.b16 %v418
      %v932 = vunpack.c.l.b16 %v419
      %v933 = vunpack.c.l.b16 %v420
      %v934 = vunpack.c.l.b16 %v421
      %v935 = vunpack.c.l.b16 %v422
      %v936 = vunpack.c.l.b16 %v423
      %v937 = vunpack.c.l.b16 %v424
      %v938 = vunpack.c.l.b16 %v425
      %v939 = vunpack.c.l.b16 %v426
      %v940 = vunpack.c.l.b16 %v427
      %v941 = vunpack.c.l.b16 %v428
      %v942 = vunpack.c.l.b16 %v429
      %v943 = vunpack.c.l.b16 %v430
      %v944 = vunpack.c.l.b16 %v431
      %v945 = vunpack.c.l.b16 %v432
      %v946 = vunpack.c.l.b16 %v433
      %v947 = vunpack.c.l.b16 %v434
      %v948 = vunpack.c.l.b16 %v435
      %v949 = vunpack.c.l.b16 %v436
      %v950 = vunpack.c.l.b16 %v437
      %v951 = vunpack.c.l.b16 %v438
      %v952 = vunpack.c.l.b16 %v439
      %v953 = vunpack.c.l.b16 %v440
      %v954 = vunpack.c.l.b16 %v441
      %v955 = vunpack.c.l.b16 %v442
      %v956 = vunpack.c.l.b16 %v443
      %v957 = vunpack.c.l.b16 %v444
      %v958 = vunpack.c.l.b16 %v445
      %v959 = vunpack.c.l.b16 %v446
      %v960 = vunpack.c.l.b16 %v447
      %v961 = vunpack.c.l.b16 %v448
      %v962 = vunpack.c.l.b16 %v449
      %v963 = vunpack.c.l.b16 %v450
      %v964 = vunpack.c.l.b16 %v451
      %v965 = vunpack.c.l.b16 %v452
      %v966 = vunpack.c.l.b16 %v453
      %v967 = vunpack.c.l.b16 %v454
      %v968 = vunpack.c.l.b16 %v455
      %v969 = vunpack.c.l.b16 %v456
      %v970 = vunpack.c.l.b16 %v457
      %v971 = vpack.c.b16 %v716, %v715
      %v972 = vpack.c.b16 %v718, %v717
      %v973 = vpack.c.b16 %v720, %v719
      %v974 = vpack.c.b16 %v722, %v721
      %v975 = vpack.c.b16 %v724, %v723
      %v976 = vpack.c.b16 %v726, %v725
      %v977 = vpack.c.b16 %v728, %v727
      %v978 = vpack.c.b16 %v730, %v729
      %v979 = vpack.c.b16 %v732, %v731
      %v980 = vpack.c.b16 %v734, %v733
      %v981 = vpack.c.b16 %v736, %v735
      %v982 = vpack.c.b16 %v738, %v737
      %v983 = vpack.c.b16 %v740, %v739
      %v984 = vpack.c.b16 %v742, %v741
      %v985 = vpack.c.b16 %v744, %v743
      %v986 = vpack.c.b16 %v746, %v745
      %v987 = vpack.c.b16 %v748, %v747
      %v988 = vpack.c.b16 %v750, %v749
      %v989 = vpack.c.b16 %v752, %v751
      %v990 = vpack.c.b16 %v754, %v753
      %v991 = vpack.c.b16 %v756, %v755
      %v992 = vpack.c.b16 %v758, %v757
      %v993 = vpack.c.b16 %v760, %v759
      %v994 = vpack.c.b16 %v762, %v761
      %v995 = vpack.c.b16 %v764, %v763
      %v996 = vpack.c.b16 %v766, %v765
      %v997 = vpack.c.b16 %v768, %v767
      %v998 = vpack.c.b16 %v770, %v769
      %v999 = vpack.c.b16 %v772, %v771
      %v1000 = vpack.c.b16 %v774, %v773
      %v1001 = vpack.c.b16 %v776, %v775
      %v1002 = vpack.c.b16 %v778, %v777
      %v1003 = vpack.c.b16 %v780, %v779
      %v1004 = vpack.c.b16 %v782, %v781
      %v1005 = vpack.c.b16 %v784, %v783
      %v1006 = vpack.c.b16 %v786, %v785
      %v1007 = vpack.c.b16 %v788, %v787
      %v1008 = vpack.c.b16 %v790, %v789
      %v1009 = vpack.c.b16 %v792, %v791
      %v1010 = vpack.c.b16 %v794, %v793
      %v1011 = vpack.c.b16 %v796, %v795
      %v1012 = vpack.c.b16 %v798, %v797
      %v1013 = vpack.c.b16 %v800, %v799
      %v1014 = vpack.c.b16 %v802, %v801
      %v1015 = vpack.c.b16 %v804, %v803
      %v1016 = vpack.c.b16 %v806, %v805
      %v1017 = vpack.c.b16 %v808, %v807
      %v1018 = vpack.c.b16 %v810, %v809
      %v1019 = vpack.c.b16 %v812, %v811
      %v1020 = vpack.c.b16 %v814, %v813
      %v1021 = vpack.c.b16 %v816, %v815
      %v1022 = vpack.c.b16 %v818, %v817
      %v1023 = vpack.c.b16 %v820, %v819
      %v1024 = vpack.c.b16 %v822, %v821
      %v1025 = vpack.c.b16 %v824, %v823
      %v1026 = vpack.c.b16 %v826, %v825
      %v1027 = vpack.c.b16 %v828, %v827
      %v1028 = vpack.c.b16 %v830, %v829
      %v1029 = vpack.c.b16 %v832, %v831
      %v1030 = vpack.c.b16 %v834, %v833
      %v1031 = vpack.c.b16 %v836, %v835
      %v1032 = vpack.c.b16 %v838, %v837
      %v1033 = vpack.c.b16 %v840, %v839
      %v1034 = vpack.c.b16 %v842, %v841
      %v1035 = vpack.c.b16 %v844, %v843
      %v1036 = vpack.c.b16 %v846, %v845
      %v1037 = vpack.c.b16 %v848, %v847
      %v1038 = vpack.c.b16 %v850, %v849
      %v1039 = vpack.c.b16 %v852, %v851
      %v1040 = vpack.c.b16 %v854, %v853
      %v1041 = vpack.c.b16 %v856, %v855
      %v1042 = vpack.c.b16 %v858, %v857
      %v1043 = vpack.c.b16 %v860, %v859
      %v1044 = vpack.c.b16 %v862, %v861
      %v1045 = vpack.c.b16 %v864, %v863
      %v1046 = vpack.c.b16 %v866, %v865
      %v1047 = vpack.c.b16 %v868, %v867
      %v1048 = vpack.c.b16 %v870, %v869
      %v1049 = vpack.c.b16 %v872, %v871
      %v1050 = vpack.c.b16 %v874, %v873
      %v1051 = vpack.c.b16 %v876, %v875
      %v1052 = vpack.c.b16 %v878, %v877
      %v1053 = vpack.c.b16 %v880, %v879
      %v1054 = vpack.c.b16 %v882, %v881
      %v1055 = vpack.c.b16 %v884, %v883
      %v1056 = vpack.c.b16 %v886, %v885
      %v1057 = vpack.c.b16 %v888, %v887
      %v1058 = vpack.c.b16 %v890, %v889
      %v1059 = vpack.c.b16 %v892, %v891
      %v1060 = vpack.c.b16 %v894, %v893
      %v1061 = vpack.c.b16 %v896, %v895
      %v1062 = vpack.c.b16 %v898, %v897
      %v1063 = vpack.c.b16 %v900, %v899
      %v1064 = vpack.c.b16 %v902, %v901
      %v1065 = vpack.c.b16 %v904, %v903
      %v1066 = vpack.c.b16 %v906, %v905
      %v1067 = vpack.c.b16 %v908, %v907
      %v1068 = vpack.c.b16 %v910, %v909
      %v1069 = vpack.c.b16 %v912, %v911
      %v1070 = vpack.c.b16 %v914, %v913
      %v1071 = vpack.c.b16 %v916, %v915
      %v1072 = vpack.c.b16 %v918, %v917
      %v1073 = vpack.c.b16 %v920, %v919
      %v1074 = vpack.c.b16 %v922, %v921
      %v1075 = vpack.c.b16 %v924, %v923
      %v1076 = vpack.c.b16 %v926, %v925
      %v1077 = vpack.c.b16 %v928, %v927
      %v1078 = vpack.c.b16 %v930, %v929
      %v1079 = vpack.c.b16 %v932, %v931
      %v1080 = vpack.c.b16 %v934, %v933
      %v1081 = vpack.c.b16 %v936, %v935
      %v1082 = vpack.c.b16 %v938, %v937
      %v1083 = vpack.c.b16 %v940, %v939
      %v1084 = vpack.c.b16 %v942, %v941
      %v1085 = vpack.c.b16 %v944, %v943
      %v1086 = vpack.c.b16 %v946, %v945
      %v1087 = vpack.c.b16 %v948, %v947
      %v1088 = vpack.c.b16 %v950, %v949
      %v1089 = vpack.c.b16 %v952, %v951
      %v1090 = vpack.c.b16 %v954, %v953
      %v1091 = vpack.c.b16 %v956, %v955
      %v1092 = vpack.c.b16 %v958, %v957
      %v1093 = vpack.c.b16 %v960, %v959
      %v1094 = vpack.c.b16 %v962, %v961
      %v1095 = vpack.c.b16 %v964, %v963
      %v1096 = vpack.c.b16 %v966, %v965
      %v1097 = vpack.c.b16 %v968, %v967
      %v1098 = vpack.c.b16 %v970, %v969
      %vm1099 = vcmask 15360
      %v1101 = vsel %vm1099, %v971, 0
      %v1104 = vsel %vm1099, %v972, 0
      %v1107 = vsel %vm1099, %v973, 0
      %v1110 = vsel %vm1099, %v974, 0
      %v1113 = vsel %vm1099, %v975, 0
      %v1116 = vsel %vm1099, %v976, 0
      %v1119 = vsel %vm1099, %v977, 0
      %v1122 = vsel %vm1099, %v978, 0
      %v1125 = vsel %vm1099, %v979, 0
      %v1128 = vsel %vm1099, %v980, 0
      %v1131 = vsel %vm1099, %v981, 0
      %v1134 = vsel %vm1099, %v982, 0
      %v1137 = vsel %vm1099, %v983, 0
      %v1140 = vsel %vm1099, %v984, 0
      %v1143 = vsel %vm1099, %v985, 0
      %v1146 = vsel %vm1099, %v986, 0
      %v1149 = vsel %vm1099, %v987, 0
      %v1152 = vsel %vm1099, %v988, 0
      %v1155 = vsel %vm1099, %v989, 0
      %v1158 = vsel %vm1099, %v990, 0
      %v1161 = vsel %vm1099, %v991, 0
      %v1164 = vsel %vm1099, %v992, 0
      %v1167 = vsel %vm1099, %v993, 0
      %v1170 = vsel %vm1099, %v994, 0
      %v1173 = vsel %vm1099, %v995, 0
      %v1176 = vsel %vm1099, %v996, 0
      %v1179 = vsel %vm1099, %v997, 0
      %v1182 = vsel %vm1099, %v998, 0
      %v1185 = vsel %vm1099, %v999, 0
      %v1188 = vsel %vm1099, %v1000, 0
      %v1191 = vsel %vm1099, %v1001, 0
      %v1194 = vsel %vm1099, %v1002, 0
      %v1197 = vsel %vm1099, %v1003, 0
      %v1200 = vsel %vm1099, %v1004, 0
      %v1203 = vsel %vm1099, %v1005, 0
      %v1206 = vsel %vm1099, %v1006, 0
      %v1209 = vsel %vm1099, %v1007, 0
      %v1212 = vsel %vm1099, %v1008, 0
      %v1215 = vsel %vm1099, %v1009, 0
      %v1218 = vsel %vm1099, %v1010, 0
      %v1221 = vsel %vm1099, %v1011, 0
      %v1224 = vsel %vm1099, %v1012, 0
      %v1227 = vsel %vm1099, %v1013, 0
      %v1230 = vsel %vm1099, %v1014, 0
      %v1233 = vsel %vm1099, %v1015, 0
      %v1236 = vsel %vm1099, %v1016, 0
      %v1239 = vsel %vm1099, %v1017, 0
      %v1242 = vsel %vm1099, %v1018, 0
      %v1245 = vsel %vm1099, %v1019, 0
      %v1248 = vsel %vm1099, %v1020, 0
      %v1251 = vsel %vm1099, %v1021, 0
      %v1254 = vsel %vm1099, %v1022, 0
      %v1257 = vsel %vm1099, %v1023, 0
      %v1260 = vsel %vm1099, %v1024, 0
      %v1263 = vsel %vm1099, %v1025, 0
      %v1266 = vsel %vm1099, %v1026, 0
      %v1269 = vsel %vm1099, %v1027, 0
      %v1272 = vsel %vm1099, %v1028, 0
      %v1275 = vsel %vm1099, %v1029, 0
      %v1278 = vsel %vm1099, %v1030, 0
      %v1281 = vsel %vm1099, %v1031, 0
      %v1284 = vsel %vm1099, %v1032, 0
      %v1287 = vsel %vm1099, %v1033, 0
      %v1290 = vsel %vm1099, %v1034, 0
      %v1293 = vsel %vm1099, %v1035, 0
      %v1296 = vsel %vm1099, %v1036, 0
      %v1299 = vsel %vm1099, %v1037, 0
      %v1302 = vsel %vm1099, %v1038, 0
      %v1305 = vsel %vm1099, %v1039, 0
      %v1308 = vsel %vm1099, %v1040, 0
      %v1311 = vsel %vm1099, %v1041, 0
      %v1314 = vsel %vm1099, %v1042, 0
      %v1317 = vsel %vm1099, %v1043, 0
      %v1320 = vsel %vm1099, %v1044, 0
      %v1323 = vsel %vm1099, %v1045, 0
      %v1326 = vsel %vm1099, %v1046, 0
      %v1329 = vsel %vm1099, %v1047, 0
      %v1332 = vsel %vm1099, %v1048, 0
      %v1335 = vsel %vm1099, %v1049, 0
      %v1338 = vsel %vm1099, %v1050, 0
      %v1341 = vsel %vm1099, %v1051, 0
      %v1344 = vsel %vm1099, %v1052, 0
      %v1347 = vsel %vm1099, %v1053, 0
      %v1350 = vsel %vm1099, %v1054, 0
      %v1353 = vsel %vm1099, %v1055, 0
      %v1356 = vsel %vm1099, %v1056, 0
      %v1359 = vsel %vm1099, %v1057, 0
      %v1362 = vsel %vm1099, %v1058, 0
      %v1365 = vsel %vm1099, %v1059, 0
      %v1368 = vsel %vm1099, %v1060, 0
      %v1371 = vsel %vm1099, %v1061, 0
      %v1374 = vsel %vm1099, %v1062, 0
      %v1377 = vsel %vm1099, %v1063, 0
      %v1380 = vsel %vm1099, %v1064, 0
      %v1383 = vsel %vm1099, %v1065, 0
      %v1386 = vsel %vm1099, %v1066, 0
      %v1389 = vsel %vm1099, %v1067, 0
      %v1392 = vsel %vm1099, %v1068, 0
      %v1395 = vsel %vm1099, %v1069, 0
      %v1398 = vsel %vm1099, %v1070, 0
      %v1401 = vsel %vm1099, %v1071, 0
      %v1404 = vsel %vm1099, %v1072, 0
      %v1407 = vsel %vm1099, %v1073, 0
      %v1410 = vsel %vm1099, %v1074, 0
      %v1413 = vsel %vm1099, %v1075, 0
      %v1416 = vsel %vm1099, %v1076, 0
      %v1419 = vsel %vm1099, %v1077, 0
      %v1422 = vsel %vm1099, %v1078, 0
      %v1425 = vsel %vm1099, %v1079, 0
      %v1428 = vsel %vm1099, %v1080, 0
      %v1431 = vsel %vm1099, %v1081, 0
      %v1434 = vsel %vm1099, %v1082, 0
      %v1437 = vsel %vm1099, %v1083, 0
      %v1440 = vsel %vm1099, %v1084, 0
      %v1443 = vsel %vm1099, %v1085, 0
      %v1446 = vsel %vm1099, %v1086, 0
      %v1449 = vsel %vm1099, %v1087, 0
      %v1452 = vsel %vm1099, %v1088, 0
      %v1455 = vsel %vm1099, %v1089, 0
      %v1458 = vsel %vm1099, %v1090, 0
      %v1461 = vsel %vm1099, %v1091, 0
      %v1464 = vsel %vm1099, %v1092, 0
      %v1467 = vsel %vm1099, %v1093, 0
      %v1470 = vsel %vm1099, %v1094, 0
      %v1473 = vsel %vm1099, %v1095, 0
      %v1476 = vsel %vm1099, %v1096, 0
      %v1479 = vsel %vm1099, %v1097, 0
      %v1482 = vsel %vm1099, %v1098, 0
      %vm1484 = vcmask 1040384
      %v1486 = vsel %vm1484, %v458, 0
      %1488 = vmatprep.subr.bf16.mxu0 0
      %1489 = vmatpush1.bf16.msra.mxu0 %v1486
      %1490 = vmatprep.subr.bf16.mxu0 0
      %1491 = vmatpush1.bf16.msra.mxu0 0
      %1492 = vmatprep.subr.bf16.mxu0 0
      %1493 = vmatpush1.bf16.msra.mxu0 0
      %1494 = vmatprep.subr.bf16.mxu0 0
      %1495 = vmatpush1.bf16.msra.mxu0 0
      %1496 = vmatprep.subr.bf16.mxu0 0
      %1497 = vmatpush1.bf16.msra.mxu0 0
      %1498 = vmatprep.subr.bf16.mxu0 0
      %1499 = vmatpush1.bf16.msra.mxu0 0
      %1500 = vmatprep.subr.bf16.mxu0 0
      %1501 = vmatpush1.bf16.msra.mxu0 0
      %1502 = vmatprep.subr.bf16.mxu0 0
      %1503 = vmatpush1.bf16.msra.mxu0 0
      %1504 = vmatprep.subr.bf16.mxu0 0
      %1505 = vmatpush1.bf16.msra.mxu0 0
      %1506 = vmatprep.subr.bf16.mxu0 0
      %1507 = vmatpush1.bf16.msra.mxu0 0
      %1508 = vmatprep.subr.bf16.mxu0 0
      %1509 = vmatpush1.bf16.msra.mxu0 0
      %1510 = vmatprep.subr.bf16.mxu0 0
      %1511 = vmatpush1.bf16.msra.mxu0 0
      %1512 = vmatprep.subr.bf16.mxu0 0
      %1513 = vmatpush1.bf16.msra.mxu0 0
      %1514 = vmatprep.subr.bf16.mxu0 0
      %1515 = vmatpush1.bf16.msra.mxu0 0
      %1516 = vmatprep.subr.bf16.mxu0 0
      %1517 = vmatpush1.bf16.msra.mxu0 0
      %1518 = vmatprep.subr.bf16.mxu0 0
      %1519 = vmatpush1.bf16.msra.mxu0 0
      %1520 = vmatprep.mubr.bf16.mxu0 0
      %1521 = vmatmul.mubr.bf16.gmra.mrb[0].mxu0 %v1101
      %v1522 = vpop.f32.mrb[0].mxu0
      %v1523 = vadd.f32 0.0, %v1522
      %v1524 = vpop.f32.mrb[0].mxu0
      %v1525 = vpop.f32.mrb[0].mxu0
      %v1526 = vadd.f32 0.0, %v1525
      %v1527 = vpop.f32.mrb[0].mxu0
      %1528 = vmatprep.mubr.bf16.mxu0 0
      %1529 = vmatmul.mubr.bf16.gmra.mrb[0].mxu0 %v1104
      %v1530 = vpop.f32.mrb[0].mxu0
      %v1531 = vadd.f32 0.0, %v1530
      %v1532 = vpop.f32.mrb[0].mxu0
      %v1533 = vpop.f32.mrb[0].mxu0
      %v1534 = vadd.f32 0.0, %v1533
      %v1535 = vpop.f32.mrb[0].mxu0
      %1536 = vmatprep.mubr.bf16.mxu0 0
      %1537 = vmatmul.mubr.bf16.gmra.mrb[0].mxu0 %v1107
      %v1538 = vpop.f32.mrb[0].mxu0
      %v1539 = vadd.f32 0.0, %v1538
      %v1540 = vpop.f32.mrb[0].mxu0
      %v1541 = vpop.f32.mrb[0].mxu0
      %v1542 = vadd.f32 0.0, %v1541
      %v1543 = vpop.f32.mrb[0].mxu0
      %1544 = vmatprep.mubr.bf16.mxu0 0
      %1545 = vmatmul.mubr.bf16.gmra.mrb[0].mxu0 %v1110
      %v1546 = vpop.f32.mrb[0].mxu0
      %v1547 = vadd.f32 0.0, %v1546
      %v1548 = vpop.f32.mrb[0].mxu0
      %v1549 = vpop.f32.mrb[0].mxu0
      %v1550 = vadd.f32 0.0, %v1549
      %v1551 = vpop.f32.mrb[0].mxu0
      %1552 = vmatprep.mubr.bf16.mxu0 0
      %1553 = vmatmul.mubr.bf16.gmra.mrb[0].mxu0 %v1113
      %v1554 = vpop.f32.mrb[0].mxu0
      %v1555 = vadd.f32 0.0, %v1554
      %v1556 = vpop.f32.mrb[0].mxu0
      %v1557 = vpop.f32.mrb[0].mxu0
      %v1558 = vadd.f32 0.0, %v1557
      %v1559 = vpop.f32.mrb[0].mxu0
      %1560 = vmatprep.mubr.bf16.mxu0 0
      %1561 = vmatmul.mubr.bf16.gmra.mrb[0].mxu0 %v1116
      %v1562 = vpop.f32.mrb[0].mxu0
      %v1563 = vadd.f32 0.0, %v1562
      %v1564 = vpop.f32.mrb[0].mxu0
      %v1565 = vpop.f32.mrb[0].mxu0
      %v1566 = vadd.f32 0.0, %v1565
      %v1567 = vpop.f32.mrb[0].mxu0
      %1568 = vmatprep.mubr.bf16.mxu0 0
      %1569 = vmatmul.mubr.bf16.gmra.mrb[0].mxu0 %v1119
      %v1570 = vpop.f32.mrb[0].mxu0
      %v1571 = vadd.f32 0.0, %v1570
      %v1572 = vpop.f32.mrb[0].mxu0
      %v1573 = vpop.f32.mrb[0].mxu0
      %v1574 = vadd.f32 0.0, %v1573
      %v1575 = vpop.f32.mrb[0].mxu0
      %1576 = vmatprep.mubr.bf16.mxu0 0
      %1577 = vmatmul.mubr.bf16.gmra.mrb[0].mxu0 %v1122
      %v1578 = vpop.f32.mrb[0].mxu0
      %v1579 = vadd.f32 0.0, %v1578
      %v1580 = vpop.f32.mrb[0].mxu0
      %v1581 = vpop.f32.mrb[0].mxu0
      %v1582 = vadd.f32 0.0, %v1581
      %v1583 = vpop.f32.mrb[0].mxu0
      %1584 = vmatprep.mubr.bf16.mxu0 0
      %1585 = vmatmul.mubr.bf16.gmra.mrb[0].mxu0 %v1125
      %v1586 = vpop.f32.mrb[0].mxu0
      %v1587 = vadd.f32 0.0, %v1586
      %v1588 = vpop.f32.mrb[0].mxu0
      %v1589 = vpop.f32.mrb[0].mxu0
      %v1590 = vadd.f32 0.0, %v1589
      %v1591 = vpop.f32.mrb[0].mxu0
      %1592 = vmatprep.mubr.bf16.mxu0 0
      %1593 = vmatmul.mubr.bf16.gmra.mrb[0].mxu0 %v1128
      %v1594 = vpop.f32.mrb[0].mxu0
      %v1595 = vadd.f32 0.0, %v1594
      %v1596 = vpop.f32.mrb[0].mxu0
      %v1597 = vpop.f32.mrb[0].mxu0
      %v1598 = vadd.f32 0.0, %v1597
      %v1599 = vpop.f32.mrb[0].mxu0
      %1600 = vmatprep.mubr.bf16.mxu0 0
      %1601 = vmatmul.mubr.bf16.gmra.mrb[0].mxu0 %v1131
      %v1602 = vpop.f32.mrb[0].mxu0
      %v1603 = vadd.f32 0.0, %v1602
      %v1604 = vpop.f32.mrb[0].mxu0
      %v1605 = vpop.f32.mrb[0].mxu0
      %v1606 = vadd.f32 0.0, %v1605
      %v1607 = vpop.f32.mrb[0].mxu0
      %1608 = vmatprep.mubr.bf16.mxu0 0
      %1609 = vmatmul.mubr.bf16.gmra.mrb[0].mxu0 %v1134
      %v1610 = vpop.f32.mrb[0].mxu0
      %v1611 = vadd.f32 0.0, %v1610
      %v1612 = vpop.f32.mrb[0].mxu0
      %v1613 = vpop.f32.mrb[0].mxu0
      %v1614 = vadd.f32 0.0, %v1613
      %v1615 = vpop.f32.mrb[0].mxu0
      %1616 = vmatprep.mubr.bf16.mxu0 0
      %1617 = vmatmul.mubr.bf16.gmra.mrb[0].mxu0 %v1137
      %v1618 = vpop.f32.mrb[0].mxu0
      %v1619 = vadd.f32 0.0, %v1618
      %v1620 = vpop.f32.mrb[0].mxu0
      %v1621 = vpop.f32.mrb[0].mxu0
      %v1622 = vadd.f32 0.0, %v1621
      %v1623 = vpop.f32.mrb[0].mxu0
      %1624 = vmatprep.mubr.bf16.mxu0 0
      %1625 = vmatmul.mubr.bf16.gmra.mrb[0].mxu0 %v1140
      %v1626 = vpop.f32.mrb[0].mxu0
      %v1627 = vadd.f32 0.0, %v1626
      %v1628 = vpop.f32.mrb[0].mxu0
      %v1629 = vpop.f32.mrb[0].mxu0
      %v1630 = vadd.f32 0.0, %v1629
      %v1631 = vpop.f32.mrb[0].mxu0
      %1632 = vmatprep.mubr.bf16.mxu0 0
      %1633 = vmatmul.mubr.bf16.gmra.mrb[0].mxu0 %v1143
      %v1634 = vpop.f32.mrb[0].mxu0
      %v1635 = vadd.f32 0.0, %v1634
      %v1636 = vpop.f32.mrb[0].mxu0
      %v1637 = vpop.f32.mrb[0].mxu0
      %v1638 = vadd.f32 0.0, %v1637
      %v1639 = vpop.f32.mrb[0].mxu0
      %1640 = vmatprep.mubr.bf16.mxu0 0
      %1641 = vmatmul.mubr.bf16.gmra.mrb[0].mxu0 %v1146
      %v1642 = vpop.f32.mrb[0].mxu0
      %v1643 = vadd.f32 0.0, %v1642
      %v1644 = vpop.f32.mrb[0].mxu0
      %v1645 = vpop.f32.mrb[0].mxu0
      %v1646 = vadd.f32 0.0, %v1645
      %v1647 = vpop.f32.mrb[0].mxu0
      %1648 = vmatprep.mubr.bf16.mxu0 0
      %1649 = vmatmul.mubr.bf16.gmra.mrb[0].mxu0 %v1149
      %v1650 = vpop.f32.mrb[0].mxu0
      %v1651 = vadd.f32 0.0, %v1650
      %v1652 = vpop.f32.mrb[0].mxu0
      %v1653 = vpop.f32.mrb[0].mxu0
      %v1654 = vadd.f32 0.0, %v1653
      %v1655 = vpop.f32.mrb[0].mxu0
      %1656 = vmatprep.mubr.bf16.mxu0 0
      %1657 = vmatmul.mubr.bf16.gmra.mrb[0].mxu0 %v1152
      %v1658 = vpop.f32.mrb[0].mxu0
      %v1659 = vadd.f32 0.0, %v1658
      %v1660 = vpop.f32.mrb[0].mxu0
      %v1661 = vpop.f32.mrb[0].mxu0
      %v1662 = vadd.f32 0.0, %v1661
      %v1663 = vpop.f32.mrb[0].mxu0
      %1664 = vmatprep.mubr.bf16.mxu0 0
      %1665 = vmatmul.mubr.bf16.gmra.mrb[0].mxu0 %v1155
      %v1666 = vpop.f32.mrb[0].mxu0
      %v1667 = vadd.f32 0.0, %v1666
      %v1668 = vpop.f32.mrb[0].mxu0
      %v1669 = vpop.f32.mrb[0].mxu0
      %v1670 = vadd.f32 0.0, %v1669
      %v1671 = vpop.f32.mrb[0].mxu0
      %1672 = vmatprep.mubr.bf16.mxu0 0
      %1673 = vmatmul.mubr.bf16.gmra.mrb[0].mxu0 %v1158
      %v1674 = vpop.f32.mrb[0].mxu0
      %v1675 = vadd.f32 0.0, %v1674
      %v1676 = vpop.f32.mrb[0].mxu0
      %v1677 = vpop.f32.mrb[0].mxu0
      %v1678 = vadd.f32 0.0, %v1677
      %v1679 = vpop.f32.mrb[0].mxu0
      %1680 = vmatprep.mubr.bf16.mxu0 0
      %1681 = vmatmul.mubr.bf16.gmra.mrb[0].mxu0 %v1161
      %v1682 = vpop.f32.mrb[0].mxu0
      %v1683 = vadd.f32 0.0, %v1682
      %v1684 = vpop.f32.mrb[0].mxu0
      %v1685 = vpop.f32.mrb[0].mxu0
      %v1686 = vadd.f32 0.0, %v1685
      %v1687 = vpop.f32.mrb[0].mxu0
      %1688 = vmatprep.mubr.bf16.mxu0 0
      %1689 = vmatmul.mubr.bf16.gmra.mrb[0].mxu0 %v1164
      %v1690 = vpop.f32.mrb[0].mxu0
      %v1691 = vadd.f32 0.0, %v1690
      %v1692 = vpop.f32.mrb[0].mxu0
      %v1693 = vpop.f32.mrb[0].mxu0
      %v1694 = vadd.f32 0.0, %v1693
      %v1695 = vpop.f32.mrb[0].mxu0
      %1696 = vmatprep.mubr.bf16.mxu0 0
      %1697 = vmatmul.mubr.bf16.gmra.mrb[0].mxu0 %v1167
      %v1698 = vpop.f32.mrb[0].mxu0
      %v1699 = vadd.f32 0.0, %v1698
      %v1700 = vpop.f32.mrb[0].mxu0
      %v1701 = vpop.f32.mrb[0].mxu0
      %v1702 = vadd.f32 0.0, %v1701
      %v1703 = vpop.f32.mrb[0].mxu0
      %1704 = vmatprep.mubr.bf16.mxu0 0
      %1705 = vmatmul.mubr.bf16.gmra.mrb[0].mxu0 %v1170
      %v1706 = vpop.f32.mrb[0].mxu0
      %v1707 = vadd.f32 0.0, %v1706
      %v1708 = vpop.f32.mrb[0].mxu0
      %v1709 = vpop.f32.mrb[0].mxu0
      %v1710 = vadd.f32 0.0, %v1709
      %v1711 = vpop.f32.mrb[0].mxu0
      %1712 = vmatprep.mubr.bf16.mxu0 0
      %1713 = vmatmul.mubr.bf16.gmra.mrb[0].mxu0 %v1173
      %v1714 = vpop.f32.mrb[0].mxu0
      %v1715 = vadd.f32 0.0, %v1714
      %v1716 = vpop.f32.mrb[0].mxu0
      %v1717 = vpop.f32.mrb[0].mxu0
      %v1718 = vadd.f32 0.0, %v1717
      %v1719 = vpop.f32.mrb[0].mxu0
      %1720 = vmatprep.mubr.bf16.mxu0 0
      %1721 = vmatmul.mubr.bf16.gmra.mrb[0].mxu0 %v1176
      %v1722 = vpop.f32.mrb[0].mxu0
      %v1723 = vadd.f32 0.0, %v1722
      %v1724 = vpop.f32.mrb[0].mxu0
      %v1725 = vpop.f32.mrb[0].mxu0
      %v1726 = vadd.f32 0.0, %v1725
      %v1727 = vpop.f32.mrb[0].mxu0
      %1728 = vmatprep.mubr.bf16.mxu0 0
      %1729 = vmatmul.mubr.bf16.gmra.mrb[0].mxu0 %v1179
      %v1730 = vpop.f32.mrb[0].mxu0
      %v1731 = vadd.f32 0.0, %v1730
      %v1732 = vpop.f32.mrb[0].mxu0
      %v1733 = vpop.f32.mrb[0].mxu0
      %v1734 = vadd.f32 0.0, %v1733
      %v1735 = vpop.f32.mrb[0].mxu0
      %1736 = vmatprep.mubr.bf16.mxu0 0
      %1737 = vmatmul.mubr.bf16.gmra.mrb[0].mxu0 %v1182
      %v1738 = vpop.f32.mrb[0].mxu0
      %v1739 = vadd.f32 0.0, %v1738
      %v1740 = vpop.f32.mrb[0].mxu0
      %v1741 = vpop.f32.mrb[0].mxu0
      %v1742 = vadd.f32 0.0, %v1741
      %v1743 = vpop.f32.mrb[0].mxu0
      %1744 = vmatprep.mubr.bf16.mxu0 0
      %1745 = vmatmul.mubr.bf16.gmra.mrb[0].mxu0 %v1185
      %v1746 = vpop.f32.mrb[0].mxu0
      %v1747 = vadd.f32 0.0, %v1746
      %v1748 = vpop.f32.mrb[0].mxu0
      %v1749 = vpop.f32.mrb[0].mxu0
      %v1750 = vadd.f32 0.0, %v1749
      %v1751 = vpop.f32.mrb[0].mxu0
      %1752 = vmatprep.mubr.bf16.mxu0 0
      %1753 = vmatmul.mubr.bf16.gmra.mrb[0].mxu0 %v1188
      %v1754 = vpop.f32.mrb[0].mxu0
      %v1755 = vadd.f32 0.0, %v1754
      %v1756 = vpop.f32.mrb[0].mxu0
      %v1757 = vpop.f32.mrb[0].mxu0
      %v1758 = vadd.f32 0.0, %v1757
      %v1759 = vpop.f32.mrb[0].mxu0
      %1760 = vmatprep.mubr.bf16.mxu0 0
      %1761 = vmatmul.mubr.bf16.gmra.mrb[0].mxu0 %v1191
      %v1762 = vpop.f32.mrb[0].mxu0
      %v1763 = vadd.f32 0.0, %v1762
      %v1764 = vpop.f32.mrb[0].mxu0
      %v1765 = vpop.f32.mrb[0].mxu0
      %v1766 = vadd.f32 0.0, %v1765
      %v1767 = vpop.f32.mrb[0].mxu0
      %1768 = vmatprep.mubr.bf16.mxu0 0
      %1769 = vmatmul.mubr.bf16.gmra.mrb[0].mxu0 %v1194
      %v1770 = vpop.f32.mrb[0].mxu0
      %v1771 = vadd.f32 0.0, %v1770
      %v1772 = vpop.f32.mrb[0].mxu0
      %v1773 = vpop.f32.mrb[0].mxu0
      %v1774 = vadd.f32 0.0, %v1773
      %v1775 = vpop.f32.mrb[0].mxu0
      %1776 = vmatprep.mubr.bf16.mxu0 0
      %1777 = vmatmul.mubr.bf16.gmra.mrb[0].mxu0 %v1197
      %v1778 = vpop.f32.mrb[0].mxu0
      %v1779 = vadd.f32 0.0, %v1778
      %v1780 = vpop.f32.mrb[0].mxu0
      %v1781 = vpop.f32.mrb[0].mxu0
      %v1782 = vadd.f32 0.0, %v1781
      %v1783 = vpop.f32.mrb[0].mxu0
      %1784 = vmatprep.mubr.bf16.mxu0 0
      %1785 = vmatmul.mubr.bf16.gmra.mrb[0].mxu0 %v1200
      %v1786 = vpop.f32.mrb[0].mxu0
      %v1787 = vadd.f32 0.0, %v1786
      %v1788 = vpop.f32.mrb[0].mxu0
      %v1789 = vpop.f32.mrb[0].mxu0
      %v1790 = vadd.f32 0.0, %v1789
      %v1791 = vpop.f32.mrb[0].mxu0
      %1792 = vmatprep.mubr.bf16.mxu0 0
      %1793 = vmatmul.mubr.bf16.gmra.mrb[0].mxu0 %v1203
      %v1794 = vpop.f32.mrb[0].mxu0
      %v1795 = vadd.f32 0.0, %v1794
      %v1796 = vpop.f32.mrb[0].mxu0
      %v1797 = vpop.f32.mrb[0].mxu0
      %v1798 = vadd.f32 0.0, %v1797
      %v1799 = vpop.f32.mrb[0].mxu0
      %1800 = vmatprep.mubr.bf16.mxu0 0
      %1801 = vmatmul.mubr.bf16.gmra.mrb[0].mxu0 %v1206
      %v1802 = vpop.f32.mrb[0].mxu0
      %v1803 = vadd.f32 0.0, %v1802
      %v1804 = vpop.f32.mrb[0].mxu0
      %v1805 = vpop.f32.mrb[0].mxu0
      %v1806 = vadd.f32 0.0, %v1805
      %v1807 = vpop.f32.mrb[0].mxu0
      %1808 = vmatprep.mubr.bf16.mxu0 0
      %1809 = vmatmul.mubr.bf16.gmra.mrb[0].mxu0 %v1209
      %v1810 = vpop.f32.mrb[0].mxu0
      %v1811 = vadd.f32 0.0, %v1810
      %v1812 = vpop.f32.mrb[0].mxu0
      %v1813 = vpop.f32.mrb[0].mxu0
      %v1814 = vadd.f32 0.0, %v1813
      %v1815 = vpop.f32.mrb[0].mxu0
      %1816 = vmatprep.mubr.bf16.mxu0 0
      %1817 = vmatmul.mubr.bf16.gmra.mrb[0].mxu0 %v1212
      %v1818 = vpop.f32.mrb[0].mxu0
      %v1819 = vadd.f32 0.0, %v1818
      %v1820 = vpop.f32.mrb[0].mxu0
      %v1821 = vpop.f32.mrb[0].mxu0
      %v1822 = vadd.f32 0.0, %v1821
      %v1823 = vpop.f32.mrb[0].mxu0
      %1824 = vmatprep.mubr.bf16.mxu0 0
      %1825 = vmatmul.mubr.bf16.gmra.mrb[0].mxu0 %v1215
      %v1826 = vpop.f32.mrb[0].mxu0
      %v1827 = vadd.f32 0.0, %v1826
      %v1828 = vpop.f32.mrb[0].mxu0
      %v1829 = vpop.f32.mrb[0].mxu0
      %v1830 = vadd.f32 0.0, %v1829
      %v1831 = vpop.f32.mrb[0].mxu0
      %1832 = vmatprep.mubr.bf16.mxu0 0
      %1833 = vmatmul.mubr.bf16.gmra.mrb[0].mxu0 %v1218
      %v1834 = vpop.f32.mrb[0].mxu0
      %v1835 = vadd.f32 0.0, %v1834
      %v1836 = vpop.f32.mrb[0].mxu0
      %v1837 = vpop.f32.mrb[0].mxu0
      %v1838 = vadd.f32 0.0, %v1837
      %v1839 = vpop.f32.mrb[0].mxu0
      %1840 = vmatprep.mubr.bf16.mxu0 0
      %1841 = vmatmul.mubr.bf16.gmra.mrb[0].mxu0 %v1221
      %v1842 = vpop.f32.mrb[0].mxu0
      %v1843 = vadd.f32 0.0, %v1842
      %v1844 = vpop.f32.mrb[0].mxu0
      %v1845 = vpop.f32.mrb[0].mxu0
      %v1846 = vadd.f32 0.0, %v1845
      %v1847 = vpop.f32.mrb[0].mxu0
      %1848 = vmatprep.mubr.bf16.mxu0 0
      %1849 = vmatmul.mubr.bf16.gmra.mrb[0].mxu0 %v1224
      %v1850 = vpop.f32.mrb[0].mxu0
      %v1851 = vadd.f32 0.0, %v1850
      %v1852 = vpop.f32.mrb[0].mxu0
      %v1853 = vpop.f32.mrb[0].mxu0
      %v1854 = vadd.f32 0.0, %v1853
      %v1855 = vpop.f32.mrb[0].mxu0
      %1856 = vmatprep.mubr.bf16.mxu0 0
      %1857 = vmatmul.mubr.bf16.gmra.mrb[0].mxu0 %v1227
      %v1858 = vpop.f32.mrb[0].mxu0
      %v1859 = vadd.f32 0.0, %v1858
      %v1860 = vpop.f32.mrb[0].mxu0
      %v1861 = vpop.f32.mrb[0].mxu0
      %v1862 = vadd.f32 0.0, %v1861
      %v1863 = vpop.f32.mrb[0].mxu0
      %1864 = vmatprep.mubr.bf16.mxu0 0
      %1865 = vmatmul.mubr.bf16.gmra.mrb[0].mxu0 %v1230
      %v1866 = vpop.f32.mrb[0].mxu0
      %v1867 = vadd.f32 0.0, %v1866
      %v1868 = vpop.f32.mrb[0].mxu0
      %v1869 = vpop.f32.mrb[0].mxu0
      %v1870 = vadd.f32 0.0, %v1869
      %v1871 = vpop.f32.mrb[0].mxu0
      %1872 = vmatprep.mubr.bf16.mxu0 0
      %1873 = vmatmul.mubr.bf16.gmra.mrb[0].mxu0 %v1233
      %v1874 = vpop.f32.mrb[0].mxu0
      %v1875 = vadd.f32 0.0, %v1874
      %v1876 = vpop.f32.mrb[0].mxu0
      %v1877 = vpop.f32.mrb[0].mxu0
      %v1878 = vadd.f32 0.0, %v1877
      %v1879 = vpop.f32.mrb[0].mxu0
      %1880 = vmatprep.mubr.bf16.mxu0 0
      %1881 = vmatmul.mubr.bf16.gmra.mrb[0].mxu0 %v1236
      %v1882 = vpop.f32.mrb[0].mxu0
      %v1883 = vadd.f32 0.0, %v1882
      %v1884 = vpop.f32.mrb[0].mxu0
      %v1885 = vpop.f32.mrb[0].mxu0
      %v1886 = vadd.f32 0.0, %v1885
      %v1887 = vpop.f32.mrb[0].mxu0
      %1888 = vmatprep.mubr.bf16.mxu0 0
      %1889 = vmatmul.mubr.bf16.gmra.mrb[0].mxu0 %v1239
      %v1890 = vpop.f32.mrb[0].mxu0
      %v1891 = vadd.f32 0.0, %v1890
      %v1892 = vpop.f32.mrb[0].mxu0
      %v1893 = vpop.f32.mrb[0].mxu0
      %v1894 = vadd.f32 0.0, %v1893
      %v1895 = vpop.f32.mrb[0].mxu0
      %1896 = vmatprep.mubr.bf16.mxu0 0
      %1897 = vmatmul.mubr.bf16.gmra.mrb[0].mxu0 %v1242
      %v1898 = vpop.f32.mrb[0].mxu0
      %v1899 = vadd.f32 0.0, %v1898
      %v1900 = vpop.f32.mrb[0].mxu0
      %v1901 = vpop.f32.mrb[0].mxu0
      %v1902 = vadd.f32 0.0, %v1901
      %v1903 = vpop.f32.mrb[0].mxu0
      %1904 = vmatprep.mubr.bf16.mxu0 0
      %1905 = vmatmul.mubr.bf16.gmra.mrb[0].mxu0 %v1245
      %v1906 = vpop.f32.mrb[0].mxu0
      %v1907 = vadd.f32 0.0, %v1906
      %v1908 = vpop.f32.mrb[0].mxu0
      %v1909 = vpop.f32.mrb[0].mxu0
      %v1910 = vadd.f32 0.0, %v1909
      %v1911 = vpop.f32.mrb[0].mxu0
      %1912 = vmatprep.mubr.bf16.mxu0 0
      %1913 = vmatmul.mubr.bf16.gmra.mrb[0].mxu0 %v1248
      %v1914 = vpop.f32.mrb[0].mxu0
      %v1915 = vadd.f32 0.0, %v1914
      %v1916 = vpop.f32.mrb[0].mxu0
      %v1917 = vpop.f32.mrb[0].mxu0
      %v1918 = vadd.f32 0.0, %v1917
      %v1919 = vpop.f32.mrb[0].mxu0
      %1920 = vmatprep.mubr.bf16.mxu0 0
      %1921 = vmatmul.mubr.bf16.gmra.mrb[0].mxu0 %v1251
      %v1922 = vpop.f32.mrb[0].mxu0
      %v1923 = vadd.f32 0.0, %v1922
      %v1924 = vpop.f32.mrb[0].mxu0
      %v1925 = vpop.f32.mrb[0].mxu0
      %v1926 = vadd.f32 0.0, %v1925
      %v1927 = vpop.f32.mrb[0].mxu0
      %1928 = vmatprep.mubr.bf16.mxu0 0
      %1929 = vmatmul.mubr.bf16.gmra.mrb[0].mxu0 %v1254
      %v1930 = vpop.f32.mrb[0].mxu0
      %v1931 = vadd.f32 0.0, %v1930
      %v1932 = vpop.f32.mrb[0].mxu0
      %v1933 = vpop.f32.mrb[0].mxu0
      %v1934 = vadd.f32 0.0, %v1933
      %v1935 = vpop.f32.mrb[0].mxu0
      %1936 = vmatprep.mubr.bf16.mxu0 0
      %1937 = vmatmul.mubr.bf16.gmra.mrb[0].mxu0 %v1257
      %v1938 = vpop.f32.mrb[0].mxu0
      %v1939 = vadd.f32 0.0, %v1938
      %v1940 = vpop.f32.mrb[0].mxu0
      %v1941 = vpop.f32.mrb[0].mxu0
      %v1942 = vadd.f32 0.0, %v1941
      %v1943 = vpop.f32.mrb[0].mxu0
      %1944 = vmatprep.mubr.bf16.mxu0 0
      %1945 = vmatmul.mubr.bf16.gmra.mrb[0].mxu0 %v1260
      %v1946 = vpop.f32.mrb[0].mxu0
      %v1947 = vadd.f32 0.0, %v1946
      %v1948 = vpop.f32.mrb[0].mxu0
      %v1949 = vpop.f32.mrb[0].mxu0
      %v1950 = vadd.f32 0.0, %v1949
      %v1951 = vpop.f32.mrb[0].mxu0
      %1952 = vmatprep.mubr.bf16.mxu0 0
      %1953 = vmatmul.mubr.bf16.gmra.mrb[0].mxu0 %v1263
      %v1954 = vpop.f32.mrb[0].mxu0
      %v1955 = vadd.f32 0.0, %v1954
      %v1956 = vpop.f32.mrb[0].mxu0
      %v1957 = vpop.f32.mrb[0].mxu0
      %v1958 = vadd.f32 0.0, %v1957
      %v1959 = vpop.f32.mrb[0].mxu0
      %1960 = vmatprep.mubr.bf16.mxu0 0
      %1961 = vmatmul.mubr.bf16.gmra.mrb[0].mxu0 %v1266
      %v1962 = vpop.f32.mrb[0].mxu0
      %v1963 = vadd.f32 0.0, %v1962
      %v1964 = vpop.f32.mrb[0].mxu0
      %v1965 = vpop.f32.mrb[0].mxu0
      %v1966 = vadd.f32 0.0, %v1965
      %v1967 = vpop.f32.mrb[0].mxu0
      %1968 = vmatprep.mubr.bf16.mxu0 0
      %1969 = vmatmul.mubr.bf16.gmra.mrb[0].mxu0 %v1269
      %v1970 = vpop.f32.mrb[0].mxu0
      %v1971 = vadd.f32 0.0, %v1970
      %v1972 = vpop.f32.mrb[0].mxu0
      %v1973 = vpop.f32.mrb[0].mxu0
      %v1974 = vadd.f32 0.0, %v1973
      %v1975 = vpop.f32.mrb[0].mxu0
      %1976 = vmatprep.mubr.bf16.mxu0 0
      %1977 = vmatmul.mubr.bf16.gmra.mrb[0].mxu0 %v1272
      %v1978 = vpop.f32.mrb[0].mxu0
      %v1979 = vadd.f32 0.0, %v1978
      %v1980 = vpop.f32.mrb[0].mxu0
      %v1981 = vpop.f32.mrb[0].mxu0
      %v1982 = vadd.f32 0.0, %v1981
      %v1983 = vpop.f32.mrb[0].mxu0
      %1984 = vmatprep.mubr.bf16.mxu0 0
      %1985 = vmatmul.mubr.bf16.gmra.mrb[0].mxu0 %v1275
      %v1986 = vpop.f32.mrb[0].mxu0
      %v1987 = vadd.f32 0.0, %v1986
      %v1988 = vpop.f32.mrb[0].mxu0
      %v1989 = vpop.f32.mrb[0].mxu0
      %v1990 = vadd.f32 0.0, %v1989
      %v1991 = vpop.f32.mrb[0].mxu0
      %1992 = vmatprep.mubr.bf16.mxu0 0
      %1993 = vmatmul.mubr.bf16.gmra.mrb[0].mxu0 %v1278
      %v1994 = vpop.f32.mrb[0].mxu0
      %v1995 = vadd.f32 0.0, %v1994
      %v1996 = vpop.f32.mrb[0].mxu0
      %v1997 = vpop.f32.mrb[0].mxu0
      %v1998 = vadd.f32 0.0, %v1997
      %v1999 = vpop.f32.mrb[0].mxu0
      %2000 = vmatprep.mubr.bf16.mxu0 0
      %2001 = vmatmul.mubr.bf16.gmra.mrb[0].mxu0 %v1281
      %v2002 = vpop.f32.mrb[0].mxu0
      %v2003 = vadd.f32 0.0, %v2002
      %v2004 = vpop.f32.mrb[0].mxu0
      %v2005 = vpop.f32.mrb[0].mxu0
      %v2006 = vadd.f32 0.0, %v2005
      %v2007 = vpop.f32.mrb[0].mxu0
      %2008 = vmatprep.mubr.bf16.mxu0 0
      %2009 = vmatmul.mubr.bf16.gmra.mrb[0].mxu0 %v1284
      %v2010 = vpop.f32.mrb[0].mxu0
      %v2011 = vadd.f32 0.0, %v2010
      %v2012 = vpop.f32.mrb[0].mxu0
      %v2013 = vpop.f32.mrb[0].mxu0
      %v2014 = vadd.f32 0.0, %v2013
      %v2015 = vpop.f32.mrb[0].mxu0
      %2016 = vmatprep.mubr.bf16.mxu0 0
      %2017 = vmatmul.mubr.bf16.gmra.mrb[0].mxu0 %v1287
      %v2018 = vpop.f32.mrb[0].mxu0
      %v2019 = vadd.f32 0.0, %v2018
      %v2020 = vpop.f32.mrb[0].mxu0
      %v2021 = vpop.f32.mrb[0].mxu0
      %v2022 = vadd.f32 0.0, %v2021
      %v2023 = vpop.f32.mrb[0].mxu0
      %2024 = vmatprep.mubr.bf16.mxu0 0
      %2025 = vmatmul.mubr.bf16.gmra.mrb[0].mxu0 %v1290
      %v2026 = vpop.f32.mrb[0].mxu0
      %v2027 = vadd.f32 0.0, %v2026
      %v2028 = vpop.f32.mrb[0].mxu0
      %v2029 = vpop.f32.mrb[0].mxu0
      %v2030 = vadd.f32 0.0, %v2029
      %v2031 = vpop.f32.mrb[0].mxu0
      %2032 = vmatprep.mubr.bf16.mxu0 0
      %2033 = vmatmul.mubr.bf16.gmra.mrb[0].mxu0 %v1293
      %v2034 = vpop.f32.mrb[0].mxu0
      %v2035 = vadd.f32 0.0, %v2034
      %v2036 = vpop.f32.mrb[0].mxu0
      %v2037 = vpop.f32.mrb[0].mxu0
      %v2038 = vadd.f32 0.0, %v2037
      %v2039 = vpop.f32.mrb[0].mxu0
      %2040 = vmatprep.mubr.bf16.mxu0 0
      %2041 = vmatmul.mubr.bf16.gmra.mrb[0].mxu0 %v1296
      %v2042 = vpop.f32.mrb[0].mxu0
      %v2043 = vadd.f32 0.0, %v2042
      %v2044 = vpop.f32.mrb[0].mxu0
      %v2045 = vpop.f32.mrb[0].mxu0
      %v2046 = vadd.f32 0.0, %v2045
      %v2047 = vpop.f32.mrb[0].mxu0
      %2048 = vmatprep.mubr.bf16.mxu0 0
      %2049 = vmatmul.mubr.bf16.gmra.mrb[0].mxu0 %v1299
      %v2050 = vpop.f32.mrb[0].mxu0
      %v2051 = vadd.f32 0.0, %v2050
      %v2052 = vpop.f32.mrb[0].mxu0
      %v2053 = vpop.f32.mrb[0].mxu0
      %v2054 = vadd.f32 0.0, %v2053
      %v2055 = vpop.f32.mrb[0].mxu0
      %2056 = vmatprep.mubr.bf16.mxu0 0
      %2057 = vmatmul.mubr.bf16.gmra.mrb[0].mxu0 %v1302
      %v2058 = vpop.f32.mrb[0].mxu0
      %v2059 = vadd.f32 0.0, %v2058
      %v2060 = vpop.f32.mrb[0].mxu0
      %v2061 = vpop.f32.mrb[0].mxu0
      %v2062 = vadd.f32 0.0, %v2061
      %v2063 = vpop.f32.mrb[0].mxu0
      %2064 = vmatprep.mubr.bf16.mxu0 0
      %2065 = vmatmul.mubr.bf16.gmra.mrb[0].mxu0 %v1305
      %v2066 = vpop.f32.mrb[0].mxu0
      %v2067 = vadd.f32 0.0, %v2066
      %v2068 = vpop.f32.mrb[0].mxu0
      %v2069 = vpop.f32.mrb[0].mxu0
      %v2070 = vadd.f32 0.0, %v2069
      %v2071 = vpop.f32.mrb[0].mxu0
      %2072 = vmatprep.mubr.bf16.mxu0 0
      %2073 = vmatmul.mubr.bf16.gmra.mrb[0].mxu0 %v1308
      %v2074 = vpop.f32.mrb[0].mxu0
      %v2075 = vadd.f32 0.0, %v2074
      %v2076 = vpop.f32.mrb[0].mxu0
      %v2077 = vpop.f32.mrb[0].mxu0
      %v2078 = vadd.f32 0.0, %v2077
      %v2079 = vpop.f32.mrb[0].mxu0
      %2080 = vmatprep.mubr.bf16.mxu0 0
      %2081 = vmatmul.mubr.bf16.gmra.mrb[0].mxu0 %v1311
      %v2082 = vpop.f32.mrb[0].mxu0
      %v2083 = vadd.f32 0.0, %v2082
      %v2084 = vpop.f32.mrb[0].mxu0
      %v2085 = vpop.f32.mrb[0].mxu0
      %v2086 = vadd.f32 0.0, %v2085
      %v2087 = vpop.f32.mrb[0].mxu0
      %2088 = vmatprep.mubr.bf16.mxu0 0
      %2089 = vmatmul.mubr.bf16.gmra.mrb[0].mxu0 %v1314
      %v2090 = vpop.f32.mrb[0].mxu0
      %v2091 = vadd.f32 0.0, %v2090
      %v2092 = vpop.f32.mrb[0].mxu0
      %v2093 = vpop.f32.mrb[0].mxu0
      %v2094 = vadd.f32 0.0, %v2093
      %v2095 = vpop.f32.mrb[0].mxu0
      %2096 = vmatprep.mubr.bf16.mxu0 0
      %2097 = vmatmul.mubr.bf16.gmra.mrb[0].mxu0 %v1317
      %v2098 = vpop.f32.mrb[0].mxu0
      %v2099 = vadd.f32 0.0, %v2098
      %v2100 = vpop.f32.mrb[0].mxu0
      %v2101 = vpop.f32.mrb[0].mxu0
      %v2102 = vadd.f32 0.0, %v2101
      %v2103 = vpop.f32.mrb[0].mxu0
      %2104 = vmatprep.mubr.bf16.mxu0 0
      %2105 = vmatmul.mubr.bf16.gmra.mrb[0].mxu0 %v1320
      %v2106 = vpop.f32.mrb[0].mxu0
      %v2107 = vadd.f32 0.0, %v2106
      %v2108 = vpop.f32.mrb[0].mxu0
      %v2109 = vpop.f32.mrb[0].mxu0
      %v2110 = vadd.f32 0.0, %v2109
      %v2111 = vpop.f32.mrb[0].mxu0
      %2112 = vmatprep.mubr.bf16.mxu0 0
      %2113 = vmatmul.mubr.bf16.gmra.mrb[0].mxu0 %v1323
      %v2114 = vpop.f32.mrb[0].mxu0
      %v2115 = vadd.f32 0.0, %v2114
      %v2116 = vpop.f32.mrb[0].mxu0
      %v2117 = vpop.f32.mrb[0].mxu0
      %v2118 = vadd.f32 0.0, %v2117
      %v2119 = vpop.f32.mrb[0].mxu0
      %2120 = vmatprep.mubr.bf16.mxu0 0
      %2121 = vmatmul.mubr.bf16.gmra.mrb[0].mxu0 %v1326
      %v2122 = vpop.f32.mrb[0].mxu0
      %v2123 = vadd.f32 0.0, %v2122
      %v2124 = vpop.f32.mrb[0].mxu0
      %v2125 = vpop.f32.mrb[0].mxu0
      %v2126 = vadd.f32 0.0, %v2125
      %v2127 = vpop.f32.mrb[0].mxu0
      %2128 = vmatprep.mubr.bf16.mxu0 0
      %2129 = vmatmul.mubr.bf16.gmra.mrb[0].mxu0 %v1329
      %v2130 = vpop.f32.mrb[0].mxu0
      %v2131 = vadd.f32 0.0, %v2130
      %v2132 = vpop.f32.mrb[0].mxu0
      %v2133 = vpop.f32.mrb[0].mxu0
      %v2134 = vadd.f32 0.0, %v2133
      %v2135 = vpop.f32.mrb[0].mxu0
      %2136 = vmatprep.mubr.bf16.mxu0 0
      %2137 = vmatmul.mubr.bf16.gmra.mrb[0].mxu0 %v1332
      %v2138 = vpop.f32.mrb[0].mxu0
      %v2139 = vadd.f32 0.0, %v2138
      %v2140 = vpop.f32.mrb[0].mxu0
      %v2141 = vpop.f32.mrb[0].mxu0
      %v2142 = vadd.f32 0.0, %v2141
      %v2143 = vpop.f32.mrb[0].mxu0
      %2144 = vmatprep.mubr.bf16.mxu0 0
      %2145 = vmatmul.mubr.bf16.gmra.mrb[0].mxu0 %v1335
      %v2146 = vpop.f32.mrb[0].mxu0
      %v2147 = vadd.f32 0.0, %v2146
      %v2148 = vpop.f32.mrb[0].mxu0
      %v2149 = vpop.f32.mrb[0].mxu0
      %v2150 = vadd.f32 0.0, %v2149
      %v2151 = vpop.f32.mrb[0].mxu0
      %2152 = vmatprep.mubr.bf16.mxu0 0
      %2153 = vmatmul.mubr.bf16.gmra.mrb[0].mxu0 %v1338
      %v2154 = vpop.f32.mrb[0].mxu0
      %v2155 = vadd.f32 0.0, %v2154
      %v2156 = vpop.f32.mrb[0].mxu0
      %v2157 = vpop.f32.mrb[0].mxu0
      %v2158 = vadd.f32 0.0, %v2157
      %v2159 = vpop.f32.mrb[0].mxu0
      %2160 = vmatprep.mubr.bf16.mxu0 0
      %2161 = vmatmul.mubr.bf16.gmra.mrb[0].mxu0 %v1341
      %v2162 = vpop.f32.mrb[0].mxu0
      %v2163 = vadd.f32 0.0, %v2162
      %v2164 = vpop.f32.mrb[0].mxu0
      %v2165 = vpop.f32.mrb[0].mxu0
      %v2166 = vadd.f32 0.0, %v2165
      %v2167 = vpop.f32.mrb[0].mxu0
      %2168 = vmatprep.mubr.bf16.mxu0 0
      %2169 = vmatmul.mubr.bf16.gmra.mrb[0].mxu0 %v1344
      %v2170 = vpop.f32.mrb[0].mxu0
      %v2171 = vadd.f32 0.0, %v2170
      %v2172 = vpop.f32.mrb[0].mxu0
      %v2173 = vpop.f32.mrb[0].mxu0
      %v2174 = vadd.f32 0.0, %v2173
      %v2175 = vpop.f32.mrb[0].mxu0
      %2176 = vmatprep.mubr.bf16.mxu0 0
      %2177 = vmatmul.mubr.bf16.gmra.mrb[0].mxu0 %v1347
      %v2178 = vpop.f32.mrb[0].mxu0
      %v2179 = vadd.f32 0.0, %v2178
      %v2180 = vpop.f32.mrb[0].mxu0
      %v2181 = vpop.f32.mrb[0].mxu0
      %v2182 = vadd.f32 0.0, %v2181
      %v2183 = vpop.f32.mrb[0].mxu0
      %2184 = vmatprep.mubr.bf16.mxu0 0
      %2185 = vmatmul.mubr.bf16.gmra.mrb[0].mxu0 %v1350
      %v2186 = vpop.f32.mrb[0].mxu0
      %v2187 = vadd.f32 0.0, %v2186
      %v2188 = vpop.f32.mrb[0].mxu0
      %v2189 = vpop.f32.mrb[0].mxu0
      %v2190 = vadd.f32 0.0, %v2189
      %v2191 = vpop.f32.mrb[0].mxu0
      %2192 = vmatprep.mubr.bf16.mxu0 0
      %2193 = vmatmul.mubr.bf16.gmra.mrb[0].mxu0 %v1353
      %v2194 = vpop.f32.mrb[0].mxu0
      %v2195 = vadd.f32 0.0, %v2194
      %v2196 = vpop.f32.mrb[0].mxu0
      %v2197 = vpop.f32.mrb[0].mxu0
      %v2198 = vadd.f32 0.0, %v2197
      %v2199 = vpop.f32.mrb[0].mxu0
      %2200 = vmatprep.mubr.bf16.mxu0 0
      %2201 = vmatmul.mubr.bf16.gmra.mrb[0].mxu0 %v1356
      %v2202 = vpop.f32.mrb[0].mxu0
      %v2203 = vadd.f32 0.0, %v2202
      %v2204 = vpop.f32.mrb[0].mxu0
      %v2205 = vpop.f32.mrb[0].mxu0
      %v2206 = vadd.f32 0.0, %v2205
      %v2207 = vpop.f32.mrb[0].mxu0
      %2208 = vmatprep.mubr.bf16.mxu0 0
      %2209 = vmatmul.mubr.bf16.gmra.mrb[0].mxu0 %v1359
      %v2210 = vpop.f32.mrb[0].mxu0
      %v2211 = vadd.f32 0.0, %v2210
      %v2212 = vpop.f32.mrb[0].mxu0
      %v2213 = vpop.f32.mrb[0].mxu0
      %v2214 = vadd.f32 0.0, %v2213
      %v2215 = vpop.f32.mrb[0].mxu0
      %2216 = vmatprep.mubr.bf16.mxu0 0
      %2217 = vmatmul.mubr.bf16.gmra.mrb[0].mxu0 %v1362
      %v2218 = vpop.f32.mrb[0].mxu0
      %v2219 = vadd.f32 0.0, %v2218
      %v2220 = vpop.f32.mrb[0].mxu0
      %v2221 = vpop.f32.mrb[0].mxu0
      %v2222 = vadd.f32 0.0, %v2221
      %v2223 = vpop.f32.mrb[0].mxu0
      %2224 = vmatprep.mubr.bf16.mxu0 0
      %2225 = vmatmul.mubr.bf16.gmra.mrb[0].mxu0 %v1365
      %v2226 = vpop.f32.mrb[0].mxu0
      %v2227 = vadd.f32 0.0, %v2226
      %v2228 = vpop.f32.mrb[0].mxu0
      %v2229 = vpop.f32.mrb[0].mxu0
      %v2230 = vadd.f32 0.0, %v2229
      %v2231 = vpop.f32.mrb[0].mxu0
      %2232 = vmatprep.mubr.bf16.mxu0 0
      %2233 = vmatmul.mubr.bf16.gmra.mrb[0].mxu0 %v1368
      %v2234 = vpop.f32.mrb[0].mxu0
      %v2235 = vadd.f32 0.0, %v2234
      %v2236 = vpop.f32.mrb[0].mxu0
      %v2237 = vpop.f32.mrb[0].mxu0
      %v2238 = vadd.f32 0.0, %v2237
      %v2239 = vpop.f32.mrb[0].mxu0
      %2240 = vmatprep.mubr.bf16.mxu0 0
      %2241 = vmatmul.mubr.bf16.gmra.mrb[0].mxu0 %v1371
      %v2242 = vpop.f32.mrb[0].mxu0
      %v2243 = vadd.f32 0.0, %v2242
      %v2244 = vpop.f32.mrb[0].mxu0
      %v2245 = vpop.f32.mrb[0].mxu0
      %v2246 = vadd.f32 0.0, %v2245
      %v2247 = vpop.f32.mrb[0].mxu0
      %2248 = vmatprep.mubr.bf16.mxu0 0
      %2249 = vmatmul.mubr.bf16.gmra.mrb[0].mxu0 %v1374
      %v2250 = vpop.f32.mrb[0].mxu0
      %v2251 = vadd.f32 0.0, %v2250
      %v2252 = vpop.f32.mrb[0].mxu0
      %v2253 = vpop.f32.mrb[0].mxu0
      %v2254 = vadd.f32 0.0, %v2253
      %v2255 = vpop.f32.mrb[0].mxu0
      %2256 = vmatprep.mubr.bf16.mxu0 0
      %2257 = vmatmul.mubr.bf16.gmra.mrb[0].mxu0 %v1377
      %v2258 = vpop.f32.mrb[0].mxu0
      %v2259 = vadd.f32 0.0, %v2258
      %v2260 = vpop.f32.mrb[0].mxu0
      %v2261 = vpop.f32.mrb[0].mxu0
      %v2262 = vadd.f32 0.0, %v2261
      %v2263 = vpop.f32.mrb[0].mxu0
      %2264 = vmatprep.mubr.bf16.mxu0 0
      %2265 = vmatmul.mubr.bf16.gmra.mrb[0].mxu0 %v1380
      %v2266 = vpop.f32.mrb[0].mxu0
      %v2267 = vadd.f32 0.0, %v2266
      %v2268 = vpop.f32.mrb[0].mxu0
      %v2269 = vpop.f32.mrb[0].mxu0
      %v2270 = vadd.f32 0.0, %v2269
      %v2271 = vpop.f32.mrb[0].mxu0
      %2272 = vmatprep.mubr.bf16.mxu0 0
      %2273 = vmatmul.mubr.bf16.gmra.mrb[0].mxu0 %v1383
      %v2274 = vpop.f32.mrb[0].mxu0
      %v2275 = vadd.f32 0.0, %v2274
      %v2276 = vpop.f32.mrb[0].mxu0
      %v2277 = vpop.f32.mrb[0].mxu0
      %v2278 = vadd.f32 0.0, %v2277
      %v2279 = vpop.f32.mrb[0].mxu0
      %2280 = vmatprep.mubr.bf16.mxu0 0
      %2281 = vmatmul.mubr.bf16.gmra.mrb[0].mxu0 %v1386
      %v2282 = vpop.f32.mrb[0].mxu0
      %v2283 = vadd.f32 0.0, %v2282
      %v2284 = vpop.f32.mrb[0].mxu0
      %v2285 = vpop.f32.mrb[0].mxu0
      %v2286 = vadd.f32 0.0, %v2285
      %v2287 = vpop.f32.mrb[0].mxu0
      %2288 = vmatprep.mubr.bf16.mxu0 0
      %2289 = vmatmul.mubr.bf16.gmra.mrb[0].mxu0 %v1389
      %v2290 = vpop.f32.mrb[0].mxu0
      %v2291 = vadd.f32 0.0, %v2290
      %v2292 = vpop.f32.mrb[0].mxu0
      %v2293 = vpop.f32.mrb[0].mxu0
      %v2294 = vadd.f32 0.0, %v2293
      %v2295 = vpop.f32.mrb[0].mxu0
      %2296 = vmatprep.mubr.bf16.mxu0 0
      %2297 = vmatmul.mubr.bf16.gmra.mrb[0].mxu0 %v1392
      %v2298 = vpop.f32.mrb[0].mxu0
      %v2299 = vadd.f32 0.0, %v2298
      %v2300 = vpop.f32.mrb[0].mxu0
      %v2301 = vpop.f32.mrb[0].mxu0
      %v2302 = vadd.f32 0.0, %v2301
      %v2303 = vpop.f32.mrb[0].mxu0
      %2304 = vmatprep.mubr.bf16.mxu0 0
      %2305 = vmatmul.mubr.bf16.gmra.mrb[0].mxu0 %v1395
      %v2306 = vpop.f32.mrb[0].mxu0
      %v2307 = vadd.f32 0.0, %v2306
      %v2308 = vpop.f32.mrb[0].mxu0
      %v2309 = vpop.f32.mrb[0].mxu0
      %v2310 = vadd.f32 0.0, %v2309
      %v2311 = vpop.f32.mrb[0].mxu0
      %2312 = vmatprep.mubr.bf16.mxu0 0
      %2313 = vmatmul.mubr.bf16.gmra.mrb[0].mxu0 %v1398
      %v2314 = vpop.f32.mrb[0].mxu0
      %v2315 = vadd.f32 0.0, %v2314
      %v2316 = vpop.f32.mrb[0].mxu0
      %v2317 = vpop.f32.mrb[0].mxu0
      %v2318 = vadd.f32 0.0, %v2317
      %v2319 = vpop.f32.mrb[0].mxu0
      %2320 = vmatprep.mubr.bf16.mxu0 0
      %2321 = vmatmul.mubr.bf16.gmra.mrb[0].mxu0 %v1401
      %v2322 = vpop.f32.mrb[0].mxu0
      %v2323 = vadd.f32 0.0, %v2322
      %v2324 = vpop.f32.mrb[0].mxu0
      %v2325 = vpop.f32.mrb[0].mxu0
      %v2326 = vadd.f32 0.0, %v2325
      %v2327 = vpop.f32.mrb[0].mxu0
      %2328 = vmatprep.mubr.bf16.mxu0 0
      %2329 = vmatmul.mubr.bf16.gmra.mrb[0].mxu0 %v1404
      %v2330 = vpop.f32.mrb[0].mxu0
      %v2331 = vadd.f32 0.0, %v2330
      %v2332 = vpop.f32.mrb[0].mxu0
      %v2333 = vpop.f32.mrb[0].mxu0
      %v2334 = vadd.f32 0.0, %v2333
      %v2335 = vpop.f32.mrb[0].mxu0
      %2336 = vmatprep.mubr.bf16.mxu0 0
      %2337 = vmatmul.mubr.bf16.gmra.mrb[0].mxu0 %v1407
      %v2338 = vpop.f32.mrb[0].mxu0
      %v2339 = vadd.f32 0.0, %v2338
      %v2340 = vpop.f32.mrb[0].mxu0
      %v2341 = vpop.f32.mrb[0].mxu0
      %v2342 = vadd.f32 0.0, %v2341
      %v2343 = vpop.f32.mrb[0].mxu0
      %2344 = vmatprep.mubr.bf16.mxu0 0
      %2345 = vmatmul.mubr.bf16.gmra.mrb[0].mxu0 %v1410
      %v2346 = vpop.f32.mrb[0].mxu0
      %v2347 = vadd.f32 0.0, %v2346
      %v2348 = vpop.f32.mrb[0].mxu0
      %v2349 = vpop.f32.mrb[0].mxu0
      %v2350 = vadd.f32 0.0, %v2349
      %v2351 = vpop.f32.mrb[0].mxu0
      %2352 = vmatprep.mubr.bf16.mxu0 0
      %2353 = vmatmul.mubr.bf16.gmra.mrb[0].mxu0 %v1413
      %v2354 = vpop.f32.mrb[0].mxu0
      %v2355 = vadd.f32 0.0, %v2354
      %v2356 = vpop.f32.mrb[0].mxu0
      %v2357 = vpop.f32.mrb[0].mxu0
      %v2358 = vadd.f32 0.0, %v2357
      %v2359 = vpop.f32.mrb[0].mxu0
      %2360 = vmatprep.mubr.bf16.mxu0 0
      %2361 = vmatmul.mubr.bf16.gmra.mrb[0].mxu0 %v1416
      %v2362 = vpop.f32.mrb[0].mxu0
      %v2363 = vadd.f32 0.0, %v2362
      %v2364 = vpop.f32.mrb[0].mxu0
      %v2365 = vpop.f32.mrb[0].mxu0
      %v2366 = vadd.f32 0.0, %v2365
      %v2367 = vpop.f32.mrb[0].mxu0
      %2368 = vmatprep.mubr.bf16.mxu0 0
      %2369 = vmatmul.mubr.bf16.gmra.mrb[0].mxu0 %v1419
      %v2370 = vpop.f32.mrb[0].mxu0
      %v2371 = vadd.f32 0.0, %v2370
      %v2372 = vpop.f32.mrb[0].mxu0
      %v2373 = vpop.f32.mrb[0].mxu0
      %v2374 = vadd.f32 0.0, %v2373
      %v2375 = vpop.f32.mrb[0].mxu0
      %2376 = vmatprep.mubr.bf16.mxu0 0
      %2377 = vmatmul.mubr.bf16.gmra.mrb[0].mxu0 %v1422
      %v2378 = vpop.f32.mrb[0].mxu0
      %v2379 = vadd.f32 0.0, %v2378
      %v2380 = vpop.f32.mrb[0].mxu0
      %v2381 = vpop.f32.mrb[0].mxu0
      %v2382 = vadd.f32 0.0, %v2381
      %v2383 = vpop.f32.mrb[0].mxu0
      %2384 = vmatprep.mubr.bf16.mxu0 0
      %2385 = vmatmul.mubr.bf16.gmra.mrb[0].mxu0 %v1425
      %v2386 = vpop.f32.mrb[0].mxu0
      %v2387 = vadd.f32 0.0, %v2386
      %v2388 = vpop.f32.mrb[0].mxu0
      %v2389 = vpop.f32.mrb[0].mxu0
      %v2390 = vadd.f32 0.0, %v2389
      %v2391 = vpop.f32.mrb[0].mxu0
      %2392 = vmatprep.mubr.bf16.mxu0 0
      %2393 = vmatmul.mubr.bf16.gmra.mrb[0].mxu0 %v1428
      %v2394 = vpop.f32.mrb[0].mxu0
      %v2395 = vadd.f32 0.0, %v2394
      %v2396 = vpop.f32.mrb[0].mxu0
      %v2397 = vpop.f32.mrb[0].mxu0
      %v2398 = vadd.f32 0.0, %v2397
      %v2399 = vpop.f32.mrb[0].mxu0
      %2400 = vmatprep.mubr.bf16.mxu0 0
      %2401 = vmatmul.mubr.bf16.gmra.mrb[0].mxu0 %v1431
      %v2402 = vpop.f32.mrb[0].mxu0
      %v2403 = vadd.f32 0.0, %v2402
      %v2404 = vpop.f32.mrb[0].mxu0
      %v2405 = vpop.f32.mrb[0].mxu0
      %v2406 = vadd.f32 0.0, %v2405
      %v2407 = vpop.f32.mrb[0].mxu0
      %2408 = vmatprep.mubr.bf16.mxu0 0
      %2409 = vmatmul.mubr.bf16.gmra.mrb[0].mxu0 %v1434
      %v2410 = vpop.f32.mrb[0].mxu0
      %v2411 = vadd.f32 0.0, %v2410
      %v2412 = vpop.f32.mrb[0].mxu0
      %v2413 = vpop.f32.mrb[0].mxu0
      %v2414 = vadd.f32 0.0, %v2413
      %v2415 = vpop.f32.mrb[0].mxu0
      %2416 = vmatprep.mubr.bf16.mxu0 0
      %2417 = vmatmul.mubr.bf16.gmra.mrb[0].mxu0 %v1437
      %v2418 = vpop.f32.mrb[0].mxu0
      %v2419 = vadd.f32 0.0, %v2418
      %v2420 = vpop.f32.mrb[0].mxu0
      %v2421 = vpop.f32.mrb[0].mxu0
      %v2422 = vadd.f32 0.0, %v2421
      %v2423 = vpop.f32.mrb[0].mxu0
      %2424 = vmatprep.mubr.bf16.mxu0 0
      %2425 = vmatmul.mubr.bf16.gmra.mrb[0].mxu0 %v1440
      %v2426 = vpop.f32.mrb[0].mxu0
      %v2427 = vadd.f32 0.0, %v2426
      %v2428 = vpop.f32.mrb[0].mxu0
      %v2429 = vpop.f32.mrb[0].mxu0
      %v2430 = vadd.f32 0.0, %v2429
      %v2431 = vpop.f32.mrb[0].mxu0
      %2432 = vmatprep.mubr.bf16.mxu0 0
      %2433 = vmatmul.mubr.bf16.gmra.mrb[0].mxu0 %v1443
      %v2434 = vpop.f32.mrb[0].mxu0
      %v2435 = vadd.f32 0.0, %v2434
      %v2436 = vpop.f32.mrb[0].mxu0
      %v2437 = vpop.f32.mrb[0].mxu0
      %v2438 = vadd.f32 0.0, %v2437
      %v2439 = vpop.f32.mrb[0].mxu0
      %2440 = vmatprep.mubr.bf16.mxu0 0
      %2441 = vmatmul.mubr.bf16.gmra.mrb[0].mxu0 %v1446
      %v2442 = vpop.f32.mrb[0].mxu0
      %v2443 = vadd.f32 0.0, %v2442
      %v2444 = vpop.f32.mrb[0].mxu0
      %v2445 = vpop.f32.mrb[0].mxu0
      %v2446 = vadd.f32 0.0, %v2445
      %v2447 = vpop.f32.mrb[0].mxu0
      %2448 = vmatprep.mubr.bf16.mxu0 0
      %2449 = vmatmul.mubr.bf16.gmra.mrb[0].mxu0 %v1449
      %v2450 = vpop.f32.mrb[0].mxu0
      %v2451 = vadd.f32 0.0, %v2450
      %v2452 = vpop.f32.mrb[0].mxu0
      %v2453 = vpop.f32.mrb[0].mxu0
      %v2454 = vadd.f32 0.0, %v2453
      %v2455 = vpop.f32.mrb[0].mxu0
      %2456 = vmatprep.mubr.bf16.mxu0 0
      %2457 = vmatmul.mubr.bf16.gmra.mrb[0].mxu0 %v1452
      %v2458 = vpop.f32.mrb[0].mxu0
      %v2459 = vadd.f32 0.0, %v2458
      %v2460 = vpop.f32.mrb[0].mxu0
      %v2461 = vpop.f32.mrb[0].mxu0
      %v2462 = vadd.f32 0.0, %v2461
      %v2463 = vpop.f32.mrb[0].mxu0
      %2464 = vmatprep.mubr.bf16.mxu0 0
      %2465 = vmatmul.mubr.bf16.gmra.mrb[0].mxu0 %v1455
      %v2466 = vpop.f32.mrb[0].mxu0
      %v2467 = vadd.f32 0.0, %v2466
      %v2468 = vpop.f32.mrb[0].mxu0
      %v2469 = vpop.f32.mrb[0].mxu0
      %v2470 = vadd.f32 0.0, %v2469
      %v2471 = vpop.f32.mrb[0].mxu0
      %2472 = vmatprep.mubr.bf16.mxu0 0
      %2473 = vmatmul.mubr.bf16.gmra.mrb[0].mxu0 %v1458
      %v2474 = vpop.f32.mrb[0].mxu0
      %v2475 = vadd.f32 0.0, %v2474
      %v2476 = vpop.f32.mrb[0].mxu0
      %v2477 = vpop.f32.mrb[0].mxu0
      %v2478 = vadd.f32 0.0, %v2477
      %v2479 = vpop.f32.mrb[0].mxu0
      %2480 = vmatprep.mubr.bf16.mxu0 0
      %2481 = vmatmul.mubr.bf16.gmra.mrb[0].mxu0 %v1461
      %v2482 = vpop.f32.mrb[0].mxu0
      %v2483 = vadd.f32 0.0, %v2482
      %v2484 = vpop.f32.mrb[0].mxu0
      %v2485 = vpop.f32.mrb[0].mxu0
      %v2486 = vadd.f32 0.0, %v2485
      %v2487 = vpop.f32.mrb[0].mxu0
      %2488 = vmatprep.mubr.bf16.mxu0 0
      %2489 = vmatmul.mubr.bf16.gmra.mrb[0].mxu0 %v1464
      %v2490 = vpop.f32.mrb[0].mxu0
      %v2491 = vadd.f32 0.0, %v2490
      %v2492 = vpop.f32.mrb[0].mxu0
      %v2493 = vpop.f32.mrb[0].mxu0
      %v2494 = vadd.f32 0.0, %v2493
      %v2495 = vpop.f32.mrb[0].mxu0
      %2496 = vmatprep.mubr.bf16.mxu0 0
      %2497 = vmatmul.mubr.bf16.gmra.mrb[0].mxu0 %v1467
      %v2498 = vpop.f32.mrb[0].mxu0
      %v2499 = vadd.f32 0.0, %v2498
      %v2500 = vpop.f32.mrb[0].mxu0
      %v2501 = vpop.f32.mrb[0].mxu0
      %v2502 = vadd.f32 0.0, %v2501
      %v2503 = vpop.f32.mrb[0].mxu0
      %2504 = vmatprep.mubr.bf16.mxu0 0
      %2505 = vmatmul.mubr.bf16.gmra.mrb[0].mxu0 %v1470
      %v2506 = vpop.f32.mrb[0].mxu0
      %v2507 = vadd.f32 0.0, %v2506
      %v2508 = vpop.f32.mrb[0].mxu0
      %v2509 = vpop.f32.mrb[0].mxu0
      %v2510 = vadd.f32 0.0, %v2509
      %v2511 = vpop.f32.mrb[0].mxu0
      %2512 = vmatprep.mubr.bf16.mxu0 0
      %2513 = vmatmul.mubr.bf16.gmra.mrb[0].mxu0 %v1473
      %v2514 = vpop.f32.mrb[0].mxu0
      %v2515 = vadd.f32 0.0, %v2514
      %v2516 = vpop.f32.mrb[0].mxu0
      %v2517 = vpop.f32.mrb[0].mxu0
      %v2518 = vadd.f32 0.0, %v2517
      %v2519 = vpop.f32.mrb[0].mxu0
      %2520 = vmatprep.mubr.bf16.mxu0 0
      %2521 = vmatmul.mubr.bf16.gmra.mrb[0].mxu0 %v1476
      %v2522 = vpop.f32.mrb[0].mxu0
      %v2523 = vadd.f32 0.0, %v2522
      %v2524 = vpop.f32.mrb[0].mxu0
      %v2525 = vpop.f32.mrb[0].mxu0
      %v2526 = vadd.f32 0.0, %v2525
      %v2527 = vpop.f32.mrb[0].mxu0
      %2528 = vmatprep.mubr.bf16.mxu0 0
      %2529 = vmatmul.mubr.bf16.gmra.mrb[0].mxu0 %v1479
      %v2530 = vpop.f32.mrb[0].mxu0
      %v2531 = vadd.f32 0.0, %v2530
      %v2532 = vpop.f32.mrb[0].mxu0
      %v2533 = vpop.f32.mrb[0].mxu0
      %v2534 = vadd.f32 0.0, %v2533
      %v2535 = vpop.f32.mrb[0].mxu0
      %2536 = vmatprep.mubr.bf16.mxu0 0
      %2537 = vmatmul.mubr.bf16.gmra.mrb[0].mxu0 %v1482
      %v2538 = vpop.f32.mrb[0].mxu0
      %v2539 = vadd.f32 0.0, %v2538
      %v2540 = vpop.f32.mrb[0].mxu0
      %v2541 = vpop.f32.mrb[0].mxu0
      %v2542 = vadd.f32 0.0, %v2541
      %v2543 = vpop.f32.mrb[0].mxu0
      %2544 = vdwg.mxu0
      %v2545 = vld [vmem:[%s2] sm:$0x1]
      %v2547 = vlaneseq
      %v2548 = vshrl.u32 %v2547, 7
      %v2549 = vsub.s32 0, %v2548
      %v2550 = vrot.slane %v2545, %v2549
      %v2552 = vmul.f32 %v1523, %v2550
      %v2553 = vmul.f32 %v1526, %v2550
      %v2554 = vmul.f32 %v1531, %v2550
      %v2555 = vmul.f32 %v1534, %v2550
      %v2556 = vmul.f32 %v1539, %v2550
      %v2557 = vmul.f32 %v1542, %v2550
      %v2558 = vmul.f32 %v1547, %v2550
      %v2559 = vmul.f32 %v1550, %v2550
      %v2560 = vmul.f32 %v1555, %v2550
      %v2561 = vmul.f32 %v1558, %v2550
      %v2562 = vmul.f32 %v1563, %v2550
      %v2563 = vmul.f32 %v1566, %v2550
      %v2564 = vmul.f32 %v1571, %v2550
      %v2565 = vmul.f32 %v1574, %v2550
      %v2566 = vmul.f32 %v1579, %v2550
      %v2567 = vmul.f32 %v1582, %v2550
      %v2568 = vmul.f32 %v1587, %v2550
      %v2569 = vmul.f32 %v1590, %v2550
      %v2570 = vmul.f32 %v1595, %v2550
      %v2571 = vmul.f32 %v1598, %v2550
      %v2572 = vmul.f32 %v1603, %v2550
      %v2573 = vmul.f32 %v1606, %v2550
      %v2574 = vmul.f32 %v1611, %v2550
      %v2575 = vmul.f32 %v1614, %v2550
      %v2576 = vmul.f32 %v1619, %v2550
      %v2577 = vmul.f32 %v1622, %v2550
      %v2578 = vmul.f32 %v1627, %v2550
      %v2579 = vmul.f32 %v1630, %v2550
      %v2580 = vmul.f32 %v1635, %v2550
      %v2581 = vmul.f32 %v1638, %v2550
      %v2582 = vmul.f32 %v1643, %v2550
      %v2583 = vmul.f32 %v1646, %v2550
      %v2584 = vmul.f32 %v1651, %v2550
      %v2585 = vmul.f32 %v1654, %v2550
      %v2586 = vmul.f32 %v1659, %v2550
      %v2587 = vmul.f32 %v1662, %v2550
      %v2588 = vmul.f32 %v1667, %v2550
      %v2589 = vmul.f32 %v1670, %v2550
      %v2590 = vmul.f32 %v1675, %v2550
      %v2591 = vmul.f32 %v1678, %v2550
      %v2592 = vmul.f32 %v1683, %v2550
      %v2593 = vmul.f32 %v1686, %v2550
      %v2594 = vmul.f32 %v1691, %v2550
      %v2595 = vmul.f32 %v1694, %v2550
      %v2596 = vmul.f32 %v1699, %v2550
      %v2597 = vmul.f32 %v1702, %v2550
      %v2598 = vmul.f32 %v1707, %v2550
      %v2599 = vmul.f32 %v1710, %v2550
      %v2600 = vmul.f32 %v1715, %v2550
      %v2601 = vmul.f32 %v1718, %v2550
      %v2602 = vmul.f32 %v1723, %v2550
      %v2603 = vmul.f32 %v1726, %v2550
      %v2604 = vmul.f32 %v1731, %v2550
      %v2605 = vmul.f32 %v1734, %v2550
      %v2606 = vmul.f32 %v1739, %v2550
      %v2607 = vmul.f32 %v1742, %v2550
      %v2608 = vmul.f32 %v1747, %v2550
      %v2609 = vmul.f32 %v1750, %v2550
      %v2610 = vmul.f32 %v1755, %v2550
      %v2611 = vmul.f32 %v1758, %v2550
      %v2612 = vmul.f32 %v1763, %v2550
      %v2613 = vmul.f32 %v1766, %v2550
      %v2614 = vmul.f32 %v1771, %v2550
      %v2615 = vmul.f32 %v1774, %v2550
      %v2616 = vmul.f32 %v1779, %v2550
      %v2617 = vmul.f32 %v1782, %v2550
      %v2618 = vmul.f32 %v1787, %v2550
      %v2619 = vmul.f32 %v1790, %v2550
      %v2620 = vmul.f32 %v1795, %v2550
      %v2621 = vmul.f32 %v1798, %v2550
      %v2622 = vmul.f32 %v1803, %v2550
      %v2623 = vmul.f32 %v1806, %v2550
      %v2624 = vmul.f32 %v1811, %v2550
      %v2625 = vmul.f32 %v1814, %v2550
      %v2626 = vmul.f32 %v1819, %v2550
      %v2627 = vmul.f32 %v1822, %v2550
      %v2628 = vmul.f32 %v1827, %v2550
      %v2629 = vmul.f32 %v1830, %v2550
      %v2630 = vmul.f32 %v1835, %v2550
      %v2631 = vmul.f32 %v1838, %v2550
      %v2632 = vmul.f32 %v1843, %v2550
      %v2633 = vmul.f32 %v1846, %v2550
      %v2634 = vmul.f32 %v1851, %v2550
      %v2635 = vmul.f32 %v1854, %v2550
      %v2636 = vmul.f32 %v1859, %v2550
      %v2637 = vmul.f32 %v1862, %v2550
      %v2638 = vmul.f32 %v1867, %v2550
      %v2639 = vmul.f32 %v1870, %v2550
      %v2640 = vmul.f32 %v1875, %v2550
      %v2641 = vmul.f32 %v1878, %v2550
      %v2642 = vmul.f32 %v1883, %v2550
      %v2643 = vmul.f32 %v1886, %v2550
      %v2644 = vmul.f32 %v1891, %v2550
      %v2645 = vmul.f32 %v1894, %v2550
      %v2646 = vmul.f32 %v1899, %v2550
      %v2647 = vmul.f32 %v1902, %v2550
      %v2648 = vmul.f32 %v1907, %v2550
      %v2649 = vmul.f32 %v1910, %v2550
      %v2650 = vmul.f32 %v1915, %v2550
      %v2651 = vmul.f32 %v1918, %v2550
      %v2652 = vmul.f32 %v1923, %v2550
      %v2653 = vmul.f32 %v1926, %v2550
      %v2654 = vmul.f32 %v1931, %v2550
      %v2655 = vmul.f32 %v1934, %v2550
      %v2656 = vmul.f32 %v1939, %v2550
      %v2657 = vmul.f32 %v1942, %v2550
      %v2658 = vmul.f32 %v1947, %v2550
      %v2659 = vmul.f32 %v1950, %v2550
      %v2660 = vmul.f32 %v1955, %v2550
      %v2661 = vmul.f32 %v1958, %v2550
      %v2662 = vmul.f32 %v1963, %v2550
      %v2663 = vmul.f32 %v1966, %v2550
      %v2664 = vmul.f32 %v1971, %v2550
      %v2665 = vmul.f32 %v1974, %v2550
      %v2666 = vmul.f32 %v1979, %v2550
      %v2667 = vmul.f32 %v1982, %v2550
      %v2668 = vmul.f32 %v1987, %v2550
      %v2669 = vmul.f32 %v1990, %v2550
      %v2670 = vmul.f32 %v1995, %v2550
      %v2671 = vmul.f32 %v1998, %v2550
      %v2672 = vmul.f32 %v2003, %v2550
      %v2673 = vmul.f32 %v2006, %v2550
      %v2674 = vmul.f32 %v2011, %v2550
      %v2675 = vmul.f32 %v2014, %v2550
      %v2676 = vmul.f32 %v2019, %v2550
      %v2677 = vmul.f32 %v2022, %v2550
      %v2678 = vmul.f32 %v2027, %v2550
      %v2679 = vmul.f32 %v2030, %v2550
      %v2680 = vmul.f32 %v2035, %v2550
      %v2681 = vmul.f32 %v2038, %v2550
      %v2682 = vmul.f32 %v2043, %v2550
      %v2683 = vmul.f32 %v2046, %v2550
      %v2684 = vmul.f32 %v2051, %v2550
      %v2685 = vmul.f32 %v2054, %v2550
      %v2686 = vmul.f32 %v2059, %v2550
      %v2687 = vmul.f32 %v2062, %v2550
      %v2688 = vmul.f32 %v2067, %v2550
      %v2689 = vmul.f32 %v2070, %v2550
      %v2690 = vmul.f32 %v2075, %v2550
      %v2691 = vmul.f32 %v2078, %v2550
      %v2692 = vmul.f32 %v2083, %v2550
      %v2693 = vmul.f32 %v2086, %v2550
      %v2694 = vmul.f32 %v2091, %v2550
      %v2695 = vmul.f32 %v2094, %v2550
      %v2696 = vmul.f32 %v2099, %v2550
      %v2697 = vmul.f32 %v2102, %v2550
      %v2698 = vmul.f32 %v2107, %v2550
      %v2699 = vmul.f32 %v2110, %v2550
      %v2700 = vmul.f32 %v2115, %v2550
      %v2701 = vmul.f32 %v2118, %v2550
      %v2702 = vmul.f32 %v2123, %v2550
      %v2703 = vmul.f32 %v2126, %v2550
      %v2704 = vmul.f32 %v2131, %v2550
      %v2705 = vmul.f32 %v2134, %v2550
      %v2706 = vmul.f32 %v2139, %v2550
      %v2707 = vmul.f32 %v2142, %v2550
      %v2708 = vmul.f32 %v2147, %v2550
      %v2709 = vmul.f32 %v2150, %v2550
      %v2710 = vmul.f32 %v2155, %v2550
      %v2711 = vmul.f32 %v2158, %v2550
      %v2712 = vmul.f32 %v2163, %v2550
      %v2713 = vmul.f32 %v2166, %v2550
      %v2714 = vmul.f32 %v2171, %v2550
      %v2715 = vmul.f32 %v2174, %v2550
      %v2716 = vmul.f32 %v2179, %v2550
      %v2717 = vmul.f32 %v2182, %v2550
      %v2718 = vmul.f32 %v2187, %v2550
      %v2719 = vmul.f32 %v2190, %v2550
      %v2720 = vmul.f32 %v2195, %v2550
      %v2721 = vmul.f32 %v2198, %v2550
      %v2722 = vmul.f32 %v2203, %v2550
      %v2723 = vmul.f32 %v2206, %v2550
      %v2724 = vmul.f32 %v2211, %v2550
      %v2725 = vmul.f32 %v2214, %v2550
      %v2726 = vmul.f32 %v2219, %v2550
      %v2727 = vmul.f32 %v2222, %v2550
      %v2728 = vmul.f32 %v2227, %v2550
      %v2729 = vmul.f32 %v2230, %v2550
      %v2730 = vmul.f32 %v2235, %v2550
      %v2731 = vmul.f32 %v2238, %v2550
      %v2732 = vmul.f32 %v2243, %v2550
      %v2733 = vmul.f32 %v2246, %v2550
      %v2734 = vmul.f32 %v2251, %v2550
      %v2735 = vmul.f32 %v2254, %v2550
      %v2736 = vmul.f32 %v2259, %v2550
      %v2737 = vmul.f32 %v2262, %v2550
      %v2738 = vmul.f32 %v2267, %v2550
      %v2739 = vmul.f32 %v2270, %v2550
      %v2740 = vmul.f32 %v2275, %v2550
      %v2741 = vmul.f32 %v2278, %v2550
      %v2742 = vmul.f32 %v2283, %v2550
      %v2743 = vmul.f32 %v2286, %v2550
      %v2744 = vmul.f32 %v2291, %v2550
      %v2745 = vmul.f32 %v2294, %v2550
      %v2746 = vmul.f32 %v2299, %v2550
      %v2747 = vmul.f32 %v2302, %v2550
      %v2748 = vmul.f32 %v2307, %v2550
      %v2749 = vmul.f32 %v2310, %v2550
      %v2750 = vmul.f32 %v2315, %v2550
      %v2751 = vmul.f32 %v2318, %v2550
      %v2752 = vmul.f32 %v2323, %v2550
      %v2753 = vmul.f32 %v2326, %v2550
      %v2754 = vmul.f32 %v2331, %v2550
      %v2755 = vmul.f32 %v2334, %v2550
      %v2756 = vmul.f32 %v2339, %v2550
      %v2757 = vmul.f32 %v2342, %v2550
      %v2758 = vmul.f32 %v2347, %v2550
      %v2759 = vmul.f32 %v2350, %v2550
      %v2760 = vmul.f32 %v2355, %v2550
      %v2761 = vmul.f32 %v2358, %v2550
      %v2762 = vmul.f32 %v2363, %v2550
      %v2763 = vmul.f32 %v2366, %v2550
      %v2764 = vmul.f32 %v2371, %v2550
      %v2765 = vmul.f32 %v2374, %v2550
      %v2766 = vmul.f32 %v2379, %v2550
      %v2767 = vmul.f32 %v2382, %v2550
      %v2768 = vmul.f32 %v2387, %v2550
      %v2769 = vmul.f32 %v2390, %v2550
      %v2770 = vmul.f32 %v2395, %v2550
      %v2771 = vmul.f32 %v2398, %v2550
      %v2772 = vmul.f32 %v2403, %v2550
      %v2773 = vmul.f32 %v2406, %v2550
      %v2774 = vmul.f32 %v2411, %v2550
      %v2775 = vmul.f32 %v2414, %v2550
      %v2776 = vmul.f32 %v2419, %v2550
      %v2777 = vmul.f32 %v2422, %v2550
      %v2778 = vmul.f32 %v2427, %v2550
      %v2779 = vmul.f32 %v2430, %v2550
      %v2780 = vmul.f32 %v2435, %v2550
      %v2781 = vmul.f32 %v2438, %v2550
      %v2782 = vmul.f32 %v2443, %v2550
      %v2783 = vmul.f32 %v2446, %v2550
      %v2784 = vmul.f32 %v2451, %v2550
      %v2785 = vmul.f32 %v2454, %v2550
      %v2786 = vmul.f32 %v2459, %v2550
      %v2787 = vmul.f32 %v2462, %v2550
      %v2788 = vmul.f32 %v2467, %v2550
      %v2789 = vmul.f32 %v2470, %v2550
      %v2790 = vmul.f32 %v2475, %v2550
      %v2791 = vmul.f32 %v2478, %v2550
      %v2792 = vmul.f32 %v2483, %v2550
      %v2793 = vmul.f32 %v2486, %v2550
      %v2794 = vmul.f32 %v2491, %v2550
      %v2795 = vmul.f32 %v2494, %v2550
      %v2796 = vmul.f32 %v2499, %v2550
      %v2797 = vmul.f32 %v2502, %v2550
      %v2798 = vmul.f32 %v2507, %v2550
      %v2799 = vmul.f32 %v2510, %v2550
      %v2800 = vmul.f32 %v2515, %v2550
      %v2801 = vmul.f32 %v2518, %v2550
      %v2802 = vmul.f32 %v2523, %v2550
      %v2803 = vmul.f32 %v2526, %v2550
      %v2804 = vmul.f32 %v2531, %v2550
      %v2805 = vmul.f32 %v2534, %v2550
      %v2806 = vmul.f32 %v2539, %v2550
      %v2807 = vmul.f32 %v2542, %v2550
      %v2808 = vld [vmem:[%s3] sm:$0x1]
      %v2810 = vlaneseq
      %v2811 = vshrl.u32 %v2810, 7
      %v2812 = vsub.s32 0, %v2811
      %v2813 = vrot.slane %v2808, %v2812
      %v2815 = vadd.f32 %v2552, %v2813
      %v2816 = vadd.f32 %v2553, %v2813
      %v2817 = vadd.f32 %v2554, %v2813
      %v2818 = vadd.f32 %v2555, %v2813
      %v2819 = vadd.f32 %v2556, %v2813
      %v2820 = vadd.f32 %v2557, %v2813
      %v2821 = vadd.f32 %v2558, %v2813
      %v2822 = vadd.f32 %v2559, %v2813
      %v2823 = vadd.f32 %v2560, %v2813
      %v2824 = vadd.f32 %v2561, %v2813
      %v2825 = vadd.f32 %v2562, %v2813
      %v2826 = vadd.f32 %v2563, %v2813
      %v2827 = vadd.f32 %v2564, %v2813
      %v2828 = vadd.f32 %v2565, %v2813
      %v2829 = vadd.f32 %v2566, %v2813
      %v2830 = vadd.f32 %v2567, %v2813
      %v2831 = vadd.f32 %v2568, %v2813
      %v2832 = vadd.f32 %v2569, %v2813
      %v2833 = vadd.f32 %v2570, %v2813
      %v2834 = vadd.f32 %v2571, %v2813
      %v2835 = vadd.f32 %v2572, %v2813
      %v2836 = vadd.f32 %v2573, %v2813
      %v2837 = vadd.f32 %v2574, %v2813
      %v2838 = vadd.f32 %v2575, %v2813
      %v2839 = vadd.f32 %v2576, %v2813
      %v2840 = vadd.f32 %v2577, %v2813
      %v2841 = vadd.f32 %v2578, %v2813
      %v2842 = vadd.f32 %v2579, %v2813
      %v2843 = vadd.f32 %v2580, %v2813
      %v2844 = vadd.f32 %v2581, %v2813
      %v2845 = vadd.f32 %v2582, %v2813
      %v2846 = vadd.f32 %v2583, %v2813
      %v2847 = vadd.f32 %v2584, %v2813
      %v2848 = vadd.f32 %v2585, %v2813
      %v2849 = vadd.f32 %v2586, %v2813
      %v2850 = vadd.f32 %v2587, %v2813
      %v2851 = vadd.f32 %v2588, %v2813
      %v2852 = vadd.f32 %v2589, %v2813
      %v2853 = vadd.f32 %v2590, %v2813
      %v2854 = vadd.f32 %v2591, %v2813
      %v2855 = vadd.f32 %v2592, %v2813
      %v2856 = vadd.f32 %v2593, %v2813
      %v2857 = vadd.f32 %v2594, %v2813
      %v2858 = vadd.f32 %v2595, %v2813
      %v2859 = vadd.f32 %v2596, %v2813
      %v2860 = vadd.f32 %v2597, %v2813
      %v2861 = vadd.f32 %v2598, %v2813
      %v2862 = vadd.f32 %v2599, %v2813
      %v2863 = vadd.f32 %v2600, %v2813
      %v2864 = vadd.f32 %v2601, %v2813
      %v2865 = vadd.f32 %v2602, %v2813
      %v2866 = vadd.f32 %v2603, %v2813
      %v2867 = vadd.f32 %v2604, %v2813
      %v2868 = vadd.f32 %v2605, %v2813
      %v2869 = vadd.f32 %v2606, %v2813
      %v2870 = vadd.f32 %v2607, %v2813
      %v2871 = vadd.f32 %v2608, %v2813
      %v2872 = vadd.f32 %v2609, %v2813
      %v2873 = vadd.f32 %v2610, %v2813
      %v2874 = vadd.f32 %v2611, %v2813
      %v2875 = vadd.f32 %v2612, %v2813
      %v2876 = vadd.f32 %v2613, %v2813
      %v2877 = vadd.f32 %v2614, %v2813
      %v2878 = vadd.f32 %v2615, %v2813
      %v2879 = vadd.f32 %v2616, %v2813
      %v2880 = vadd.f32 %v2617, %v2813
      %v2881 = vadd.f32 %v2618, %v2813
      %v2882 = vadd.f32 %v2619, %v2813
      %v2883 = vadd.f32 %v2620, %v2813
      %v2884 = vadd.f32 %v2621, %v2813
      %v2885 = vadd.f32 %v2622, %v2813
      %v2886 = vadd.f32 %v2623, %v2813
      %v2887 = vadd.f32 %v2624, %v2813
      %v2888 = vadd.f32 %v2625, %v2813
      %v2889 = vadd.f32 %v2626, %v2813
      %v2890 = vadd.f32 %v2627, %v2813
      %v2891 = vadd.f32 %v2628, %v2813
      %v2892 = vadd.f32 %v2629, %v2813
      %v2893 = vadd.f32 %v2630, %v2813
      %v2894 = vadd.f32 %v2631, %v2813
      %v2895 = vadd.f32 %v2632, %v2813
      %v2896 = vadd.f32 %v2633, %v2813
      %v2897 = vadd.f32 %v2634, %v2813
      %v2898 = vadd.f32 %v2635, %v2813
      %v2899 = vadd.f32 %v2636, %v2813
      %v2900 = vadd.f32 %v2637, %v2813
      %v2901 = vadd.f32 %v2638, %v2813
      %v2902 = vadd.f32 %v2639, %v2813
      %v2903 = vadd.f32 %v2640, %v2813
      %v2904 = vadd.f32 %v2641, %v2813
      %v2905 = vadd.f32 %v2642, %v2813
      %v2906 = vadd.f32 %v2643, %v2813
      %v2907 = vadd.f32 %v2644, %v2813
      %v2908 = vadd.f32 %v2645, %v2813
      %v2909 = vadd.f32 %v2646, %v2813
      %v2910 = vadd.f32 %v2647, %v2813
      %v2911 = vadd.f32 %v2648, %v2813
      %v2912 = vadd.f32 %v2649, %v2813
      %v2913 = vadd.f32 %v2650, %v2813
      %v2914 = vadd.f32 %v2651, %v2813
      %v2915 = vadd.f32 %v2652, %v2813
      %v2916 = vadd.f32 %v2653, %v2813
      %v2917 = vadd.f32 %v2654, %v2813
      %v2918 = vadd.f32 %v2655, %v2813
      %v2919 = vadd.f32 %v2656, %v2813
      %v2920 = vadd.f32 %v2657, %v2813
      %v2921 = vadd.f32 %v2658, %v2813
      %v2922 = vadd.f32 %v2659, %v2813
      %v2923 = vadd.f32 %v2660, %v2813
      %v2924 = vadd.f32 %v2661, %v2813
      %v2925 = vadd.f32 %v2662, %v2813
      %v2926 = vadd.f32 %v2663, %v2813
      %v2927 = vadd.f32 %v2664, %v2813
      %v2928 = vadd.f32 %v2665, %v2813
      %v2929 = vadd.f32 %v2666, %v2813
      %v2930 = vadd.f32 %v2667, %v2813
      %v2931 = vadd.f32 %v2668, %v2813
      %v2932 = vadd.f32 %v2669, %v2813
      %v2933 = vadd.f32 %v2670, %v2813
      %v2934 = vadd.f32 %v2671, %v2813
      %v2935 = vadd.f32 %v2672, %v2813
      %v2936 = vadd.f32 %v2673, %v2813
      %v2937 = vadd.f32 %v2674, %v2813
      %v2938 = vadd.f32 %v2675, %v2813
      %v2939 = vadd.f32 %v2676, %v2813
      %v2940 = vadd.f32 %v2677, %v2813
      %v2941 = vadd.f32 %v2678, %v2813
      %v2942 = vadd.f32 %v2679, %v2813
      %v2943 = vadd.f32 %v2680, %v2813
      %v2944 = vadd.f32 %v2681, %v2813
      %v2945 = vadd.f32 %v2682, %v2813
      %v2946 = vadd.f32 %v2683, %v2813
      %v2947 = vadd.f32 %v2684, %v2813
      %v2948 = vadd.f32 %v2685, %v2813
      %v2949 = vadd.f32 %v2686, %v2813
      %v2950 = vadd.f32 %v2687, %v2813
      %v2951 = vadd.f32 %v2688, %v2813
      %v2952 = vadd.f32 %v2689, %v2813
      %v2953 = vadd.f32 %v2690, %v2813
      %v2954 = vadd.f32 %v2691, %v2813
      %v2955 = vadd.f32 %v2692, %v2813
      %v2956 = vadd.f32 %v2693, %v2813
      %v2957 = vadd.f32 %v2694, %v2813
      %v2958 = vadd.f32 %v2695, %v2813
      %v2959 = vadd.f32 %v2696, %v2813
      %v2960 = vadd.f32 %v2697, %v2813
      %v2961 = vadd.f32 %v2698, %v2813
      %v2962 = vadd.f32 %v2699, %v2813
      %v2963 = vadd.f32 %v2700, %v2813
      %v2964 = vadd.f32 %v2701, %v2813
      %v2965 = vadd.f32 %v2702, %v2813
      %v2966 = vadd.f32 %v2703, %v2813
      %v2967 = vadd.f32 %v2704, %v2813
      %v2968 = vadd.f32 %v2705, %v2813
      %v2969 = vadd.f32 %v2706, %v2813
      %v2970 = vadd.f32 %v2707, %v2813
      %v2971 = vadd.f32 %v2708, %v2813
      %v2972 = vadd.f32 %v2709, %v2813
      %v2973 = vadd.f32 %v2710, %v2813
      %v2974 = vadd.f32 %v2711, %v2813
      %v2975 = vadd.f32 %v2712, %v2813
      %v2976 = vadd.f32 %v2713, %v2813
      %v2977 = vadd.f32 %v2714, %v2813
      %v2978 = vadd.f32 %v2715, %v2813
      %v2979 = vadd.f32 %v2716, %v2813
      %v2980 = vadd.f32 %v2717, %v2813
      %v2981 = vadd.f32 %v2718, %v2813
      %v2982 = vadd.f32 %v2719, %v2813
      %v2983 = vadd.f32 %v2720, %v2813
      %v2984 = vadd.f32 %v2721, %v2813
      %v2985 = vadd.f32 %v2722, %v2813
      %v2986 = vadd.f32 %v2723, %v2813
      %v2987 = vadd.f32 %v2724, %v2813
      %v2988 = vadd.f32 %v2725, %v2813
      %v2989 = vadd.f32 %v2726, %v2813
      %v2990 = vadd.f32 %v2727, %v2813
      %v2991 = vadd.f32 %v2728, %v2813
      %v2992 = vadd.f32 %v2729, %v2813
      %v2993 = vadd.f32 %v2730, %v2813
      %v2994 = vadd.f32 %v2731, %v2813
      %v2995 = vadd.f32 %v2732, %v2813
      %v2996 = vadd.f32 %v2733, %v2813
      %v2997 = vadd.f32 %v2734, %v2813
      %v2998 = vadd.f32 %v2735, %v2813
      %v2999 = vadd.f32 %v2736, %v2813
      %v3000 = vadd.f32 %v2737, %v2813
      %v3001 = vadd.f32 %v2738, %v2813
      %v3002 = vadd.f32 %v2739, %v2813
      %v3003 = vadd.f32 %v2740, %v2813
      %v3004 = vadd.f32 %v2741, %v2813
      %v3005 = vadd.f32 %v2742, %v2813
      %v3006 = vadd.f32 %v2743, %v2813
      %v3007 = vadd.f32 %v2744, %v2813
      %v3008 = vadd.f32 %v2745, %v2813
      %v3009 = vadd.f32 %v2746, %v2813
      %v3010 = vadd.f32 %v2747, %v2813
      %v3011 = vadd.f32 %v2748, %v2813
      %v3012 = vadd.f32 %v2749, %v2813
      %v3013 = vadd.f32 %v2750, %v2813
      %v3014 = vadd.f32 %v2751, %v2813
      %v3015 = vadd.f32 %v2752, %v2813
      %v3016 = vadd.f32 %v2753, %v2813
      %v3017 = vadd.f32 %v2754, %v2813
      %v3018 = vadd.f32 %v2755, %v2813
      %v3019 = vadd.f32 %v2756, %v2813
      %v3020 = vadd.f32 %v2757, %v2813
      %v3021 = vadd.f32 %v2758, %v2813
      %v3022 = vadd.f32 %v2759, %v2813
      %v3023 = vadd.f32 %v2760, %v2813
      %v3024 = vadd.f32 %v2761, %v2813
      %v3025 = vadd.f32 %v2762, %v2813
      %v3026 = vadd.f32 %v2763, %v2813
      %v3027 = vadd.f32 %v2764, %v2813
      %v3028 = vadd.f32 %v2765, %v2813
      %v3029 = vadd.f32 %v2766, %v2813
      %v3030 = vadd.f32 %v2767, %v2813
      %v3031 = vadd.f32 %v2768, %v2813
      %v3032 = vadd.f32 %v2769, %v2813
      %v3033 = vadd.f32 %v2770, %v2813
      %v3034 = vadd.f32 %v2771, %v2813
      %v3035 = vadd.f32 %v2772, %v2813
      %v3036 = vadd.f32 %v2773, %v2813
      %v3037 = vadd.f32 %v2774, %v2813
      %v3038 = vadd.f32 %v2775, %v2813
      %v3039 = vadd.f32 %v2776, %v2813
      %v3040 = vadd.f32 %v2777, %v2813
      %v3041 = vadd.f32 %v2778, %v2813
      %v3042 = vadd.f32 %v2779, %v2813
      %v3043 = vadd.f32 %v2780, %v2813
      %v3044 = vadd.f32 %v2781, %v2813
      %v3045 = vadd.f32 %v2782, %v2813
      %v3046 = vadd.f32 %v2783, %v2813
      %v3047 = vadd.f32 %v2784, %v2813
      %v3048 = vadd.f32 %v2785, %v2813
      %v3049 = vadd.f32 %v2786, %v2813
      %v3050 = vadd.f32 %v2787, %v2813
      %v3051 = vadd.f32 %v2788, %v2813
      %v3052 = vadd.f32 %v2789, %v2813
      %v3053 = vadd.f32 %v2790, %v2813
      %v3054 = vadd.f32 %v2791, %v2813
      %v3055 = vadd.f32 %v2792, %v2813
      %v3056 = vadd.f32 %v2793, %v2813
      %v3057 = vadd.f32 %v2794, %v2813
      %v3058 = vadd.f32 %v2795, %v2813
      %v3059 = vadd.f32 %v2796, %v2813
      %v3060 = vadd.f32 %v2797, %v2813
      %v3061 = vadd.f32 %v2798, %v2813
      %v3062 = vadd.f32 %v2799, %v2813
      %v3063 = vadd.f32 %v2800, %v2813
      %v3064 = vadd.f32 %v2801, %v2813
      %v3065 = vadd.f32 %v2802, %v2813
      %v3066 = vadd.f32 %v2803, %v2813
      %v3067 = vadd.f32 %v2804, %v2813
      %v3068 = vadd.f32 %v2805, %v2813
      %v3069 = vadd.f32 %v2806, %v2813
      %v3070 = vadd.f32 %v2807, %v2813
      %v3071 = vmax.f32 %v2815, 0.0
      %v3072 = vmax.f32 %v2816, 0.0
      %v3073 = vmax.f32 %v2817, 0.0
      %v3074 = vmax.f32 %v2818, 0.0
      %v3075 = vmax.f32 %v2819, 0.0
      %v3076 = vmax.f32 %v2820, 0.0
      %v3077 = vmax.f32 %v2821, 0.0
      %v3078 = vmax.f32 %v2822, 0.0
      %v3079 = vmax.f32 %v2823, 0.0
      %v3080 = vmax.f32 %v2824, 0.0
      %v3081 = vmax.f32 %v2825, 0.0
      %v3082 = vmax.f32 %v2826, 0.0
      %v3083 = vmax.f32 %v2827, 0.0
      %v3084 = vmax.f32 %v2828, 0.0
      %v3085 = vmax.f32 %v2829, 0.0
      %v3086 = vmax.f32 %v2830, 0.0
      %v3087 = vmax.f32 %v2831, 0.0
      %v3088 = vmax.f32 %v2832, 0.0
      %v3089 = vmax.f32 %v2833, 0.0
      %v3090 = vmax.f32 %v2834, 0.0
      %v3091 = vmax.f32 %v2835, 0.0
      %v3092 = vmax.f32 %v2836, 0.0
      %v3093 = vmax.f32 %v2837, 0.0
      %v3094 = vmax.f32 %v2838, 0.0
      %v3095 = vmax.f32 %v2839, 0.0
      %v3096 = vmax.f32 %v2840, 0.0
      %v3097 = vmax.f32 %v2841, 0.0
      %v3098 = vmax.f32 %v2842, 0.0
      %v3099 = vmax.f32 %v2843, 0.0
      %v3100 = vmax.f32 %v2844, 0.0
      %v3101 = vmax.f32 %v2845, 0.0
      %v3102 = vmax.f32 %v2846, 0.0
      %v3103 = vmax.f32 %v2847, 0.0
      %v3104 = vmax.f32 %v2848, 0.0
      %v3105 = vmax.f32 %v2849, 0.0
      %v3106 = vmax.f32 %v2850, 0.0
      %v3107 = vmax.f32 %v2851, 0.0
      %v3108 = vmax.f32 %v2852, 0.0
      %v3109 = vmax.f32 %v2853, 0.0
      %v3110 = vmax.f32 %v2854, 0.0
      %v3111 = vmax.f32 %v2855, 0.0
      %v3112 = vmax.f32 %v2856, 0.0
      %v3113 = vmax.f32 %v2857, 0.0
      %v3114 = vmax.f32 %v2858, 0.0
      %v3115 = vmax.f32 %v2859, 0.0
      %v3116 = vmax.f32 %v2860, 0.0
      %v3117 = vmax.f32 %v2861, 0.0
      %v3118 = vmax.f32 %v2862, 0.0
      %v3119 = vmax.f32 %v2863, 0.0
      %v3120 = vmax.f32 %v2864, 0.0
      %v3121 = vmax.f32 %v2865, 0.0
      %v3122 = vmax.f32 %v2866, 0.0
      %v3123 = vmax.f32 %v2867, 0.0
      %v3124 = vmax.f32 %v2868, 0.0
      %v3125 = vmax.f32 %v2869, 0.0
      %v3126 = vmax.f32 %v2870, 0.0
      %v3127 = vmax.f32 %v2871, 0.0
      %v3128 = vmax.f32 %v2872, 0.0
      %v3129 = vmax.f32 %v2873, 0.0
      %v3130 = vmax.f32 %v2874, 0.0
      %v3131 = vmax.f32 %v2875, 0.0
      %v3132 = vmax.f32 %v2876, 0.0
      %v3133 = vmax.f32 %v2877, 0.0
      %v3134 = vmax.f32 %v2878, 0.0
      %v3135 = vmax.f32 %v2879, 0.0
      %v3136 = vmax.f32 %v2880, 0.0
      %v3137 = vmax.f32 %v2881, 0.0
      %v3138 = vmax.f32 %v2882, 0.0
      %v3139 = vmax.f32 %v2883, 0.0
      %v3140 = vmax.f32 %v2884, 0.0
      %v3141 = vmax.f32 %v2885, 0.0
      %v3142 = vmax.f32 %v2886, 0.0
      %v3143 = vmax.f32 %v2887, 0.0
      %v3144 = vmax.f32 %v2888, 0.0
      %v3145 = vmax.f32 %v2889, 0.0
      %v3146 = vmax.f32 %v2890, 0.0
      %v3147 = vmax.f32 %v2891, 0.0
      %v3148 = vmax.f32 %v2892, 0.0
      %v3149 = vmax.f32 %v2893, 0.0
      %v3150 = vmax.f32 %v2894, 0.0
      %v3151 = vmax.f32 %v2895, 0.0
      %v3152 = vmax.f32 %v2896, 0.0
      %v3153 = vmax.f32 %v2897, 0.0
      %v3154 = vmax.f32 %v2898, 0.0
      %v3155 = vmax.f32 %v2899, 0.0
      %v3156 = vmax.f32 %v2900, 0.0
      %v3157 = vmax.f32 %v2901, 0.0
      %v3158 = vmax.f32 %v2902, 0.0
      %v3159 = vmax.f32 %v2903, 0.0
      %v3160 = vmax.f32 %v2904, 0.0
      %v3161 = vmax.f32 %v2905, 0.0
      %v3162 = vmax.f32 %v2906, 0.0
      %v3163 = vmax.f32 %v2907, 0.0
      %v3164 = vmax.f32 %v2908, 0.0
      %v3165 = vmax.f32 %v2909, 0.0
      %v3166 = vmax.f32 %v2910, 0.0
      %v3167 = vmax.f32 %v2911, 0.0
      %v3168 = vmax.f32 %v2912, 0.0
      %v3169 = vmax.f32 %v2913, 0.0
      %v3170 = vmax.f32 %v2914, 0.0
      %v3171 = vmax.f32 %v2915, 0.0
      %v3172 = vmax.f32 %v2916, 0.0
      %v3173 = vmax.f32 %v2917, 0.0
      %v3174 = vmax.f32 %v2918, 0.0
      %v3175 = vmax.f32 %v2919, 0.0
      %v3176 = vmax.f32 %v2920, 0.0
      %v3177 = vmax.f32 %v2921, 0.0
      %v3178 = vmax.f32 %v2922, 0.0
      %v3179 = vmax.f32 %v2923, 0.0
      %v3180 = vmax.f32 %v2924, 0.0
      %v3181 = vmax.f32 %v2925, 0.0
      %v3182 = vmax.f32 %v2926, 0.0
      %v3183 = vmax.f32 %v2927, 0.0
      %v3184 = vmax.f32 %v2928, 0.0
      %v3185 = vmax.f32 %v2929, 0.0
      %v3186 = vmax.f32 %v2930, 0.0
      %v3187 = vmax.f32 %v2931, 0.0
      %v3188 = vmax.f32 %v2932, 0.0
      %v3189 = vmax.f32 %v2933, 0.0
      %v3190 = vmax.f32 %v2934, 0.0
      %v3191 = vmax.f32 %v2935, 0.0
      %v3192 = vmax.f32 %v2936, 0.0
      %v3193 = vmax.f32 %v2937, 0.0
      %v3194 = vmax.f32 %v2938, 0.0
      %v3195 = vmax.f32 %v2939, 0.0
      %v3196 = vmax.f32 %v2940, 0.0
      %v3197 = vmax.f32 %v2941, 0.0
      %v3198 = vmax.f32 %v2942, 0.0
      %v3199 = vmax.f32 %v2943, 0.0
      %v3200 = vmax.f32 %v2944, 0.0
      %v3201 = vmax.f32 %v2945, 0.0
      %v3202 = vmax.f32 %v2946, 0.0
      %v3203 = vmax.f32 %v2947, 0.0
      %v3204 = vmax.f32 %v2948, 0.0
      %v3205 = vmax.f32 %v2949, 0.0
      %v3206 = vmax.f32 %v2950, 0.0
      %v3207 = vmax.f32 %v2951, 0.0
      %v3208 = vmax.f32 %v2952, 0.0
      %v3209 = vmax.f32 %v2953, 0.0
      %v3210 = vmax.f32 %v2954, 0.0
      %v3211 = vmax.f32 %v2955, 0.0
      %v3212 = vmax.f32 %v2956, 0.0
      %v3213 = vmax.f32 %v2957, 0.0
      %v3214 = vmax.f32 %v2958, 0.0
      %v3215 = vmax.f32 %v2959, 0.0
      %v3216 = vmax.f32 %v2960, 0.0
      %v3217 = vmax.f32 %v2961, 0.0
      %v3218 = vmax.f32 %v2962, 0.0
      %v3219 = vmax.f32 %v2963, 0.0
      %v3220 = vmax.f32 %v2964, 0.0
      %v3221 = vmax.f32 %v2965, 0.0
      %v3222 = vmax.f32 %v2966, 0.0
      %v3223 = vmax.f32 %v2967, 0.0
      %v3224 = vmax.f32 %v2968, 0.0
      %v3225 = vmax.f32 %v2969, 0.0
      %v3226 = vmax.f32 %v2970, 0.0
      %v3227 = vmax.f32 %v2971, 0.0
      %v3228 = vmax.f32 %v2972, 0.0
      %v3229 = vmax.f32 %v2973, 0.0
      %v3230 = vmax.f32 %v2974, 0.0
      %v3231 = vmax.f32 %v2975, 0.0
      %v3232 = vmax.f32 %v2976, 0.0
      %v3233 = vmax.f32 %v2977, 0.0
      %v3234 = vmax.f32 %v2978, 0.0
      %v3235 = vmax.f32 %v2979, 0.0
      %v3236 = vmax.f32 %v2980, 0.0
      %v3237 = vmax.f32 %v2981, 0.0
      %v3238 = vmax.f32 %v2982, 0.0
      %v3239 = vmax.f32 %v2983, 0.0
      %v3240 = vmax.f32 %v2984, 0.0
      %v3241 = vmax.f32 %v2985, 0.0
      %v3242 = vmax.f32 %v2986, 0.0
      %v3243 = vmax.f32 %v2987, 0.0
      %v3244 = vmax.f32 %v2988, 0.0
      %v3245 = vmax.f32 %v2989, 0.0
      %v3246 = vmax.f32 %v2990, 0.0
      %v3247 = vmax.f32 %v2991, 0.0
      %v3248 = vmax.f32 %v2992, 0.0
      %v3249 = vmax.f32 %v2993, 0.0
      %v3250 = vmax.f32 %v2994, 0.0
      %v3251 = vmax.f32 %v2995, 0.0
      %v3252 = vmax.f32 %v2996, 0.0
      %v3253 = vmax.f32 %v2997, 0.0
      %v3254 = vmax.f32 %v2998, 0.0
      %v3255 = vmax.f32 %v2999, 0.0
      %v3256 = vmax.f32 %v3000, 0.0
      %v3257 = vmax.f32 %v3001, 0.0
      %v3258 = vmax.f32 %v3002, 0.0
      %v3259 = vmax.f32 %v3003, 0.0
      %v3260 = vmax.f32 %v3004, 0.0
      %v3261 = vmax.f32 %v3005, 0.0
      %v3262 = vmax.f32 %v3006, 0.0
      %v3263 = vmax.f32 %v3007, 0.0
      %v3264 = vmax.f32 %v3008, 0.0
      %v3265 = vmax.f32 %v3009, 0.0
      %v3266 = vmax.f32 %v3010, 0.0
      %v3267 = vmax.f32 %v3011, 0.0
      %v3268 = vmax.f32 %v3012, 0.0
      %v3269 = vmax.f32 %v3013, 0.0
      %v3270 = vmax.f32 %v3014, 0.0
      %v3271 = vmax.f32 %v3015, 0.0
      %v3272 = vmax.f32 %v3016, 0.0
      %v3273 = vmax.f32 %v3017, 0.0
      %v3274 = vmax.f32 %v3018, 0.0
      %v3275 = vmax.f32 %v3019, 0.0
      %v3276 = vmax.f32 %v3020, 0.0
      %v3277 = vmax.f32 %v3021, 0.0
      %v3278 = vmax.f32 %v3022, 0.0
      %v3279 = vmax.f32 %v3023, 0.0
      %v3280 = vmax.f32 %v3024, 0.0
      %v3281 = vmax.f32 %v3025, 0.0
      %v3282 = vmax.f32 %v3026, 0.0
      %v3283 = vmax.f32 %v3027, 0.0
      %v3284 = vmax.f32 %v3028, 0.0
      %v3285 = vmax.f32 %v3029, 0.0
      %v3286 = vmax.f32 %v3030, 0.0
      %v3287 = vmax.f32 %v3031, 0.0
      %v3288 = vmax.f32 %v3032, 0.0
      %v3289 = vmax.f32 %v3033, 0.0
      %v3290 = vmax.f32 %v3034, 0.0
      %v3291 = vmax.f32 %v3035, 0.0
      %v3292 = vmax.f32 %v3036, 0.0
      %v3293 = vmax.f32 %v3037, 0.0
      %v3294 = vmax.f32 %v3038, 0.0
      %v3295 = vmax.f32 %v3039, 0.0
      %v3296 = vmax.f32 %v3040, 0.0
      %v3297 = vmax.f32 %v3041, 0.0
      %v3298 = vmax.f32 %v3042, 0.0
      %v3299 = vmax.f32 %v3043, 0.0
      %v3300 = vmax.f32 %v3044, 0.0
      %v3301 = vmax.f32 %v3045, 0.0
      %v3302 = vmax.f32 %v3046, 0.0
      %v3303 = vmax.f32 %v3047, 0.0
      %v3304 = vmax.f32 %v3048, 0.0
      %v3305 = vmax.f32 %v3049, 0.0
      %v3306 = vmax.f32 %v3050, 0.0
      %v3307 = vmax.f32 %v3051, 0.0
      %v3308 = vmax.f32 %v3052, 0.0
      %v3309 = vmax.f32 %v3053, 0.0
      %v3310 = vmax.f32 %v3054, 0.0
      %v3311 = vmax.f32 %v3055, 0.0
      %v3312 = vmax.f32 %v3056, 0.0
      %v3313 = vmax.f32 %v3057, 0.0
      %v3314 = vmax.f32 %v3058, 0.0
      %v3315 = vmax.f32 %v3059, 0.0
      %v3316 = vmax.f32 %v3060, 0.0
      %v3317 = vmax.f32 %v3061, 0.0
      %v3318 = vmax.f32 %v3062, 0.0
      %v3319 = vmax.f32 %v3063, 0.0
      %v3320 = vmax.f32 %v3064, 0.0
      %v3321 = vmax.f32 %v3065, 0.0
      %v3322 = vmax.f32 %v3066, 0.0
      %v3323 = vmax.f32 %v3067, 0.0
      %v3324 = vmax.f32 %v3068, 0.0
      %v3325 = vmax.f32 %v3069, 0.0
      %v3326 = vmax.f32 %v3070, 0.0
      %v3327 = vpack.c.bf16 %v3072, %v3071
      %v3328 = vpack.c.bf16 %v3074, %v3073
      %v3329 = vpack.c.bf16 %v3076, %v3075
      %v3330 = vpack.c.bf16 %v3078, %v3077
      %v3331 = vpack.c.bf16 %v3080, %v3079
      %v3332 = vpack.c.bf16 %v3082, %v3081
      %v3333 = vpack.c.bf16 %v3084, %v3083
      %v3334 = vpack.c.bf16 %v3086, %v3085
      %v3335 = vpack.c.bf16 %v3088, %v3087
      %v3336 = vpack.c.bf16 %v3090, %v3089
      %v3337 = vpack.c.bf16 %v3092, %v3091
      %v3338 = vpack.c.bf16 %v3094, %v3093
      %v3339 = vpack.c.bf16 %v3096, %v3095
      %v3340 = vpack.c.bf16 %v3098, %v3097
      %v3341 = vpack.c.bf16 %v3100, %v3099
      %v3342 = vpack.c.bf16 %v3102, %v3101
      %v3343 = vpack.c.bf16 %v3104, %v3103
      %v3344 = vpack.c.bf16 %v3106, %v3105
      %v3345 = vpack.c.bf16 %v3108, %v3107
      %v3346 = vpack.c.bf16 %v3110, %v3109
      %v3347 = vpack.c.bf16 %v3112, %v3111
      %v3348 = vpack.c.bf16 %v3114, %v3113
      %v3349 = vpack.c.bf16 %v3116, %v3115
      %v3350 = vpack.c.bf16 %v3118, %v3117
      %v3351 = vpack.c.bf16 %v3120, %v3119
      %v3352 = vpack.c.bf16 %v3122, %v3121
      %v3353 = vpack.c.bf16 %v3124, %v3123
      %v3354 = vpack.c.bf16 %v3126, %v3125
      %v3355 = vpack.c.bf16 %v3128, %v3127
      %v3356 = vpack.c.bf16 %v3130, %v3129
      %v3357 = vpack.c.bf16 %v3132, %v3131
      %v3358 = vpack.c.bf16 %v3134, %v3133
      %v3359 = vpack.c.bf16 %v3136, %v3135
      %v3360 = vpack.c.bf16 %v3138, %v3137
      %v3361 = vpack.c.bf16 %v3140, %v3139
      %v3362 = vpack.c.bf16 %v3142, %v3141
      %v3363 = vpack.c.bf16 %v3144, %v3143
      %v3364 = vpack.c.bf16 %v3146, %v3145
      %v3365 = vpack.c.bf16 %v3148, %v3147
      %v3366 = vpack.c.bf16 %v3150, %v3149
      %v3367 = vpack.c.bf16 %v3152, %v3151
      %v3368 = vpack.c.bf16 %v3154, %v3153
      %v3369 = vpack.c.bf16 %v3156, %v3155
      %v3370 = vpack.c.bf16 %v3158, %v3157
      %v3371 = vpack.c.bf16 %v3160, %v3159
      %v3372 = vpack.c.bf16 %v3162, %v3161
      %v3373 = vpack.c.bf16 %v3164, %v3163
      %v3374 = vpack.c.bf16 %v3166, %v3165
      %v3375 = vpack.c.bf16 %v3168, %v3167
      %v3376 = vpack.c.bf16 %v3170, %v3169
      %v3377 = vpack.c.bf16 %v3172, %v3171
      %v3378 = vpack.c.bf16 %v3174, %v3173
      %v3379 = vpack.c.bf16 %v3176, %v3175
      %v3380 = vpack.c.bf16 %v3178, %v3177
      %v3381 = vpack.c.bf16 %v3180, %v3179
      %v3382 = vpack.c.bf16 %v3182, %v3181
      %v3383 = vpack.c.bf16 %v3184, %v3183
      %v3384 = vpack.c.bf16 %v3186, %v3185
      %v3385 = vpack.c.bf16 %v3188, %v3187
      %v3386 = vpack.c.bf16 %v3190, %v3189
      %v3387 = vpack.c.bf16 %v3192, %v3191
      %v3388 = vpack.c.bf16 %v3194, %v3193
      %v3389 = vpack.c.bf16 %v3196, %v3195
      %v3390 = vpack.c.bf16 %v3198, %v3197
      %v3391 = vpack.c.bf16 %v3200, %v3199
      %v3392 = vpack.c.bf16 %v3202, %v3201
      %v3393 = vpack.c.bf16 %v3204, %v3203
      %v3394 = vpack.c.bf16 %v3206, %v3205
      %v3395 = vpack.c.bf16 %v3208, %v3207
      %v3396 = vpack.c.bf16 %v3210, %v3209
      %v3397 = vpack.c.bf16 %v3212, %v3211
      %v3398 = vpack.c.bf16 %v3214, %v3213
      %v3399 = vpack.c.bf16 %v3216, %v3215
      %v3400 = vpack.c.bf16 %v3218, %v3217
      %v3401 = vpack.c.bf16 %v3220, %v3219
      %v3402 = vpack.c.bf16 %v3222, %v3221
      %v3403 = vpack.c.bf16 %v3224, %v3223
      %v3404 = vpack.c.bf16 %v3226, %v3225
      %v3405 = vpack.c.bf16 %v3228, %v3227
      %v3406 = vpack.c.bf16 %v3230, %v3229
      %v3407 = vpack.c.bf16 %v3232, %v3231
      %v3408 = vpack.c.bf16 %v3234, %v3233
      %v3409 = vpack.c.bf16 %v3236, %v3235
      %v3410 = vpack.c.bf16 %v3238, %v3237
      %v3411 = vpack.c.bf16 %v3240, %v3239
      %v3412 = vpack.c.bf16 %v3242, %v3241
      %v3413 = vpack.c.bf16 %v3244, %v3243
      %v3414 = vpack.c.bf16 %v3246, %v3245
      %v3415 = vpack.c.bf16 %v3248, %v3247
      %v3416 = vpack.c.bf16 %v3250, %v3249
      %v3417 = vpack.c.bf16 %v3252, %v3251
      %v3418 = vpack.c.bf16 %v3254, %v3253
      %v3419 = vpack.c.bf16 %v3256, %v3255
      %v3420 = vpack.c.bf16 %v3258, %v3257
      %v3421 = vpack.c.bf16 %v3260, %v3259
      %v3422 = vpack.c.bf16 %v3262, %v3261
      %v3423 = vpack.c.bf16 %v3264, %v3263
      %v3424 = vpack.c.bf16 %v3266, %v3265
      %v3425 = vpack.c.bf16 %v3268, %v3267
      %v3426 = vpack.c.bf16 %v3270, %v3269
      %v3427 = vpack.c.bf16 %v3272, %v3271
      %v3428 = vpack.c.bf16 %v3274, %v3273
      %v3429 = vpack.c.bf16 %v3276, %v3275
      %v3430 = vpack.c.bf16 %v3278, %v3277
      %v3431 = vpack.c.bf16 %v3280, %v3279
      %v3432 = vpack.c.bf16 %v3282, %v3281
      %v3433 = vpack.c.bf16 %v3284, %v3283
      %v3434 = vpack.c.bf16 %v3286, %v3285
      %v3435 = vpack.c.bf16 %v3288, %v3287
      %v3436 = vpack.c.bf16 %v3290, %v3289
      %v3437 = vpack.c.bf16 %v3292, %v3291
      %v3438 = vpack.c.bf16 %v3294, %v3293
      %v3439 = vpack.c.bf16 %v3296, %v3295
      %v3440 = vpack.c.bf16 %v3298, %v3297
      %v3441 = vpack.c.bf16 %v3300, %v3299
      %v3442 = vpack.c.bf16 %v3302, %v3301
      %v3443 = vpack.c.bf16 %v3304, %v3303
      %v3444 = vpack.c.bf16 %v3306, %v3305
      %v3445 = vpack.c.bf16 %v3308, %v3307
      %v3446 = vpack.c.bf16 %v3310, %v3309
      %v3447 = vpack.c.bf16 %v3312, %v3311
      %v3448 = vpack.c.bf16 %v3314, %v3313
      %v3449 = vpack.c.bf16 %v3316, %v3315
      %v3450 = vpack.c.bf16 %v3318, %v3317
      %v3451 = vpack.c.bf16 %v3320, %v3319
      %v3452 = vpack.c.bf16 %v3322, %v3321
      %v3453 = vpack.c.bf16 %v3324, %v3323
      %v3454 = vpack.c.bf16 %v3326, %v3325
      %v3583 = vunpack.c.l.b16 %v3327
      %v3584 = vunpack.c.h.b16 %v3327
      %v3585 = vunpack.c.l.b16 %v3328
      %v3586 = vunpack.c.h.b16 %v3328
      %v3587 = vunpack.c.l.b16 %v3329
      %v3588 = vunpack.c.h.b16 %v3329
      %v3589 = vunpack.c.l.b16 %v3330
      %v3590 = vunpack.c.h.b16 %v3330
      %v3591 = vunpack.c.l.b16 %v3331
      %v3592 = vunpack.c.h.b16 %v3331
      %v3593 = vunpack.c.l.b16 %v3332
      %v3594 = vunpack.c.h.b16 %v3332
      %v3595 = vunpack.c.l.b16 %v3333
      %v3596 = vunpack.c.h.b16 %v3333
      %v3597 = vunpack.c.l.b16 %v3334
      %v3598 = vunpack.c.h.b16 %v3334
      %v3599 = vunpack.c.l.b16 %v3335
      %v3600 = vunpack.c.h.b16 %v3335
      %v3601 = vunpack.c.l.b16 %v3336
      %v3602 = vunpack.c.h.b16 %v3336
      %v3603 = vunpack.c.l.b16 %v3337
      %v3604 = vunpack.c.h.b16 %v3337
      %v3605 = vunpack.c.l.b16 %v3338
      %v3606 = vunpack.c.h.b16 %v3338
      %v3607 = vunpack.c.l.b16 %v3339
      %v3608 = vunpack.c.h.b16 %v3339
      %v3609 = vunpack.c.l.b16 %v3340
      %v3610 = vunpack.c.h.b16 %v3340
      %v3611 = vunpack.c.l.b16 %v3341
      %v3612 = vunpack.c.h.b16 %v3341
      %v3613 = vunpack.c.l.b16 %v3342
      %v3614 = vunpack.c.h.b16 %v3342
      %v3615 = vunpack.c.l.b16 %v3343
      %v3616 = vunpack.c.h.b16 %v3343
      %v3617 = vunpack.c.l.b16 %v3344
      %v3618 = vunpack.c.h.b16 %v3344
      %v3619 = vunpack.c.l.b16 %v3345
      %v3620 = vunpack.c.h.b16 %v3345
      %v3621 = vunpack.c.l.b16 %v3346
      %v3622 = vunpack.c.h.b16 %v3346
      %v3623 = vunpack.c.l.b16 %v3347
      %v3624 = vunpack.c.h.b16 %v3347
      %v3625 = vunpack.c.l.b16 %v3348
      %v3626 = vunpack.c.h.b16 %v3348
      %v3627 = vunpack.c.l.b16 %v3349
      %v3628 = vunpack.c.h.b16 %v3349
      %v3629 = vunpack.c.l.b16 %v3350
      %v3630 = vunpack.c.h.b16 %v3350
      %v3631 = vunpack.c.l.b16 %v3351
      %v3632 = vunpack.c.h.b16 %v3351
      %v3633 = vunpack.c.l.b16 %v3352
      %v3634 = vunpack.c.h.b16 %v3352
      %v3635 = vunpack.c.l.b16 %v3353
      %v3636 = vunpack.c.h.b16 %v3353
      %v3637 = vunpack.c.l.b16 %v3354
      %v3638 = vunpack.c.h.b16 %v3354
      %v3639 = vunpack.c.l.b16 %v3355
      %v3640 = vunpack.c.h.b16 %v3355
      %v3641 = vunpack.c.l.b16 %v3356
      %v3642 = vunpack.c.h.b16 %v3356
      %v3643 = vunpack.c.l.b16 %v3357
      %v3644 = vunpack.c.h.b16 %v3357
      %v3645 = vunpack.c.l.b16 %v3358
      %v3646 = vunpack.c.h.b16 %v3358
      %v3647 = vunpack.c.l.b16 %v3359
      %v3648 = vunpack.c.h.b16 %v3359
      %v3649 = vunpack.c.l.b16 %v3360
      %v3650 = vunpack.c.h.b16 %v3360
      %v3651 = vunpack.c.l.b16 %v3361
      %v3652 = vunpack.c.h.b16 %v3361
      %v3653 = vunpack.c.l.b16 %v3362
      %v3654 = vunpack.c.h.b16 %v3362
      %v3655 = vunpack.c.l.b16 %v3363
      %v3656 = vunpack.c.h.b16 %v3363
      %v3657 = vunpack.c.l.b16 %v3364
      %v3658 = vunpack.c.h.b16 %v3364
      %v3659 = vunpack.c.l.b16 %v3365
      %v3660 = vunpack.c.h.b16 %v3365
      %v3661 = vunpack.c.l.b16 %v3366
      %v3662 = vunpack.c.h.b16 %v3366
      %v3663 = vunpack.c.l.b16 %v3367
      %v3664 = vunpack.c.h.b16 %v3367
      %v3665 = vunpack.c.l.b16 %v3368
      %v3666 = vunpack.c.h.b16 %v3368
      %v3667 = vunpack.c.l.b16 %v3369
      %v3668 = vunpack.c.h.b16 %v3369
      %v3669 = vunpack.c.l.b16 %v3370
      %v3670 = vunpack.c.h.b16 %v3370
      %v3671 = vunpack.c.l.b16 %v3371
      %v3672 = vunpack.c.h.b16 %v3371
      %v3673 = vunpack.c.l.b16 %v3372
      %v3674 = vunpack.c.h.b16 %v3372
      %v3675 = vunpack.c.l.b16 %v3373
      %v3676 = vunpack.c.h.b16 %v3373
      %v3677 = vunpack.c.l.b16 %v3374
      %v3678 = vunpack.c.h.b16 %v3374
      %v3679 = vunpack.c.l.b16 %v3375
      %v3680 = vunpack.c.h.b16 %v3375
      %v3681 = vunpack.c.l.b16 %v3376
      %v3682 = vunpack.c.h.b16 %v3376
      %v3683 = vunpack.c.l.b16 %v3377
      %v3684 = vunpack.c.h.b16 %v3377
      %v3685 = vunpack.c.l.b16 %v3378
      %v3686 = vunpack.c.h.b16 %v3378
      %v3687 = vunpack.c.l.b16 %v3379
      %v3688 = vunpack.c.h.b16 %v3379
      %v3689 = vunpack.c.l.b16 %v3380
      %v3690 = vunpack.c.h.b16 %v3380
      %v3691 = vunpack.c.l.b16 %v3381
      %v3692 = vunpack.c.h.b16 %v3381
      %v3693 = vunpack.c.l.b16 %v3382
      %v3694 = vunpack.c.h.b16 %v3382
      %v3695 = vunpack.c.l.b16 %v3383
      %v3696 = vunpack.c.h.b16 %v3383
      %v3697 = vunpack.c.l.b16 %v3384
      %v3698 = vunpack.c.h.b16 %v3384
      %v3699 = vunpack.c.l.b16 %v3385
      %v3700 = vunpack.c.h.b16 %v3385
      %v3701 = vunpack.c.l.b16 %v3386
      %v3702 = vunpack.c.h.b16 %v3386
      %v3703 = vunpack.c.l.b16 %v3387
      %v3704 = vunpack.c.h.b16 %v3387
      %v3705 = vunpack.c.l.b16 %v3388
      %v3706 = vunpack.c.h.b16 %v3388
      %v3707 = vunpack.c.l.b16 %v3389
      %v3708 = vunpack.c.h.b16 %v3389
      %v3709 = vunpack.c.l.b16 %v3390
      %v3710 = vunpack.c.h.b16 %v3390
      %v3711 = vunpack.c.l.b16 %v3391
      %v3712 = vunpack.c.h.b16 %v3391
      %v3713 = vunpack.c.l.b16 %v3392
      %v3714 = vunpack.c.h.b16 %v3392
      %v3715 = vunpack.c.l.b16 %v3393
      %v3716 = vunpack.c.h.b16 %v3393
      %v3717 = vunpack.c.l.b16 %v3394
      %v3718 = vunpack.c.h.b16 %v3394
      %v3719 = vunpack.c.l.b16 %v3395
      %v3720 = vunpack.c.h.b16 %v3395
      %v3721 = vunpack.c.l.b16 %v3396
      %v3722 = vunpack.c.h.b16 %v3396
      %v3723 = vunpack.c.l.b16 %v3397
      %v3724 = vunpack.c.h.b16 %v3397
      %v3725 = vunpack.c.l.b16 %v3398
      %v3726 = vunpack.c.h.b16 %v3398
      %v3727 = vunpack.c.l.b16 %v3399
      %v3728 = vunpack.c.h.b16 %v3399
      %v3729 = vunpack.c.l.b16 %v3400
      %v3730 = vunpack.c.h.b16 %v3400
      %v3731 = vunpack.c.l.b16 %v3401
      %v3732 = vunpack.c.h.b16 %v3401
      %v3733 = vunpack.c.l.b16 %v3402
      %v3734 = vunpack.c.h.b16 %v3402
      %v3735 = vunpack.c.l.b16 %v3403
      %v3736 = vunpack.c.h.b16 %v3403
      %v3737 = vunpack.c.l.b16 %v3404
      %v3738 = vunpack.c.h.b16 %v3404
      %v3739 = vunpack.c.l.b16 %v3405
      %v3740 = vunpack.c.h.b16 %v3405
      %v3741 = vunpack.c.l.b16 %v3406
      %v3742 = vunpack.c.h.b16 %v3406
      %v3743 = vunpack.c.l.b16 %v3407
      %v3744 = vunpack.c.h.b16 %v3407
      %v3745 = vunpack.c.l.b16 %v3408
      %v3746 = vunpack.c.h.b16 %v3408
      %v3747 = vunpack.c.l.b16 %v3409
      %v3748 = vunpack.c.h.b16 %v3409
      %v3749 = vunpack.c.l.b16 %v3410
      %v3750 = vunpack.c.h.b16 %v3410
      %v3751 = vunpack.c.l.b16 %v3411
      %v3752 = vunpack.c.h.b16 %v3411
      %v3753 = vunpack.c.l.b16 %v3412
      %v3754 = vunpack.c.h.b16 %v3412
      %v3755 = vunpack.c.l.b16 %v3413
      %v3756 = vunpack.c.h.b16 %v3413
      %v3757 = vunpack.c.l.b16 %v3414
      %v3758 = vunpack.c.h.b16 %v3414
      %v3759 = vunpack.c.l.b16 %v3415
      %v3760 = vunpack.c.h.b16 %v3415
      %v3761 = vunpack.c.l.b16 %v3416
      %v3762 = vunpack.c.h.b16 %v3416
      %v3763 = vunpack.c.l.b16 %v3417
      %v3764 = vunpack.c.h.b16 %v3417
      %v3765 = vunpack.c.l.b16 %v3418
      %v3766 = vunpack.c.h.b16 %v3418
      %v3767 = vunpack.c.l.b16 %v3419
      %v3768 = vunpack.c.h.b16 %v3419
      %v3769 = vunpack.c.l.b16 %v3420
      %v3770 = vunpack.c.h.b16 %v3420
      %v3771 = vunpack.c.l.b16 %v3421
      %v3772 = vunpack.c.h.b16 %v3421
      %v3773 = vunpack.c.l.b16 %v3422
      %v3774 = vunpack.c.h.b16 %v3422
      %v3775 = vunpack.c.l.b16 %v3423
      %v3776 = vunpack.c.h.b16 %v3423
      %v3777 = vunpack.c.l.b16 %v3424
      %v3778 = vunpack.c.h.b16 %v3424
      %v3779 = vunpack.c.l.b16 %v3425
      %v3780 = vunpack.c.h.b16 %v3425
      %v3781 = vunpack.c.l.b16 %v3426
      %v3782 = vunpack.c.h.b16 %v3426
      %v3783 = vunpack.c.l.b16 %v3427
      %v3784 = vunpack.c.h.b16 %v3427
      %v3785 = vunpack.c.l.b16 %v3428
      %v3786 = vunpack.c.h.b16 %v3428
      %v3787 = vunpack.c.l.b16 %v3429
      %v3788 = vunpack.c.h.b16 %v3429
      %v3789 = vunpack.c.l.b16 %v3430
      %v3790 = vunpack.c.h.b16 %v3430
      %v3791 = vunpack.c.l.b16 %v3431
      %v3792 = vunpack.c.h.b16 %v3431
      %v3793 = vunpack.c.l.b16 %v3432
      %v3794 = vunpack.c.h.b16 %v3432
      %v3795 = vunpack.c.l.b16 %v3433
      %v3796 = vunpack.c.h.b16 %v3433
      %v3797 = vunpack.c.l.b16 %v3434
      %v3798 = vunpack.c.h.b16 %v3434
      %v3799 = vunpack.c.l.b16 %v3435
      %v3800 = vunpack.c.h.b16 %v3435
      %v3801 = vunpack.c.l.b16 %v3436
      %v3802 = vunpack.c.h.b16 %v3436
      %v3803 = vunpack.c.l.b16 %v3437
      %v3804 = vunpack.c.h.b16 %v3437
      %v3805 = vunpack.c.l.b16 %v3438
      %v3806 = vunpack.c.h.b16 %v3438
      %v3807 = vunpack.c.l.b16 %v3439
      %v3808 = vunpack.c.h.b16 %v3439
      %v3809 = vunpack.c.l.b16 %v3440
      %v3810 = vunpack.c.h.b16 %v3440
      %v3811 = vunpack.c.l.b16 %v3441
      %v3812 = vunpack.c.h.b16 %v3441
      %v3813 = vunpack.c.l.b16 %v3442
      %v3814 = vunpack.c.h.b16 %v3442
      %v3815 = vunpack.c.l.b16 %v3443
      %v3816 = vunpack.c.h.b16 %v3443
      %v3817 = vunpack.c.l.b16 %v3444
      %v3818 = vunpack.c.h.b16 %v3444
      %v3819 = vunpack.c.l.b16 %v3445
      %v3820 = vunpack.c.h.b16 %v3445
      %v3821 = vunpack.c.l.b16 %v3446
      %v3822 = vunpack.c.h.b16 %v3446
      %v3823 = vunpack.c.l.b16 %v3447
      %v3824 = vunpack.c.h.b16 %v3447
      %v3825 = vunpack.c.l.b16 %v3448
      %v3826 = vunpack.c.h.b16 %v3448
      %v3827 = vunpack.c.l.b16 %v3449
      %v3828 = vunpack.c.h.b16 %v3449
      %v3829 = vunpack.c.l.b16 %v3450
      %v3830 = vunpack.c.h.b16 %v3450
      %v3831 = vunpack.c.l.b16 %v3451
      %v3832 = vunpack.c.h.b16 %v3451
      %v3833 = vunpack.c.l.b16 %v3452
      %v3834 = vunpack.c.h.b16 %v3452
      %v3835 = vunpack.c.l.b16 %v3453
      %v3836 = vunpack.c.h.b16 %v3453
      %v3837 = vunpack.c.l.b16 %v3454
      %v3838 = vunpack.c.h.b16 %v3454
      %v3839 = vpack.c.b16 %v3583, %v3583
      %v3840 = vpack.c.b16 %v3584, %v3584
      %v3841 = vpack.c.b16 %v3585, %v3585
      %v3842 = vpack.c.b16 %v3586, %v3586
      %v3843 = vpack.c.b16 %v3587, %v3587
      %v3844 = vpack.c.b16 %v3588, %v3588
      %v3845 = vpack.c.b16 %v3589, %v3589
      %v3846 = vpack.c.b16 %v3590, %v3590
      %v3847 = vpack.c.b16 %v3591, %v3591
      %v3848 = vpack.c.b16 %v3592, %v3592
      %v3849 = vpack.c.b16 %v3593, %v3593
      %v3850 = vpack.c.b16 %v3594, %v3594
      %v3851 = vpack.c.b16 %v3595, %v3595
      %v3852 = vpack.c.b16 %v3596, %v3596
      %v3853 = vpack.c.b16 %v3597, %v3597
      %v3854 = vpack.c.b16 %v3598, %v3598
      %v3855 = vpack.c.b16 %v3599, %v3599
      %v3856 = vpack.c.b16 %v3600, %v3600
      %v3857 = vpack.c.b16 %v3601, %v3601
      %v3858 = vpack.c.b16 %v3602, %v3602
      %v3859 = vpack.c.b16 %v3603, %v3603
      %v3860 = vpack.c.b16 %v3604, %v3604
      %v3861 = vpack.c.b16 %v3605, %v3605
      %v3862 = vpack.c.b16 %v3606, %v3606
      %v3863 = vpack.c.b16 %v3607, %v3607
      %v3864 = vpack.c.b16 %v3608, %v3608
      %v3865 = vpack.c.b16 %v3609, %v3609
      %v3866 = vpack.c.b16 %v3610, %v3610
      %v3867 = vpack.c.b16 %v3611, %v3611
      %v3868 = vpack.c.b16 %v3612, %v3612
      %v3869 = vpack.c.b16 %v3613, %v3613
      %v3870 = vpack.c.b16 %v3614, %v3614
      %v3871 = vpack.c.b16 %v3615, %v3615
      %v3872 = vpack.c.b16 %v3616, %v3616
      %v3873 = vpack.c.b16 %v3617, %v3617
      %v3874 = vpack.c.b16 %v3618, %v3618
      %v3875 = vpack.c.b16 %v3619, %v3619
      %v3876 = vpack.c.b16 %v3620, %v3620
      %v3877 = vpack.c.b16 %v3621, %v3621
      %v3878 = vpack.c.b16 %v3622, %v3622
      %v3879 = vpack.c.b16 %v3623, %v3623
      %v3880 = vpack.c.b16 %v3624, %v3624
      %v3881 = vpack.c.b16 %v3625, %v3625
      %v3882 = vpack.c.b16 %v3626, %v3626
      %v3883 = vpack.c.b16 %v3627, %v3627
      %v3884 = vpack.c.b16 %v3628, %v3628
      %v3885 = vpack.c.b16 %v3629, %v3629
      %v3886 = vpack.c.b16 %v3630, %v3630
      %v3887 = vpack.c.b16 %v3631, %v3631
      %v3888 = vpack.c.b16 %v3632, %v3632
      %v3889 = vpack.c.b16 %v3633, %v3633
      %v3890 = vpack.c.b16 %v3634, %v3634
      %v3891 = vpack.c.b16 %v3635, %v3635
      %v3892 = vpack.c.b16 %v3636, %v3636
      %v3893 = vpack.c.b16 %v3637, %v3637
      %v3894 = vpack.c.b16 %v3638, %v3638
      %v3895 = vpack.c.b16 %v3639, %v3639
      %v3896 = vpack.c.b16 %v3640, %v3640
      %v3897 = vpack.c.b16 %v3641, %v3641
      %v3898 = vpack.c.b16 %v3642, %v3642
      %v3899 = vpack.c.b16 %v3643, %v3643
      %v3900 = vpack.c.b16 %v3644, %v3644
      %v3901 = vpack.c.b16 %v3645, %v3645
      %v3902 = vpack.c.b16 %v3646, %v3646
      %v3903 = vpack.c.b16 %v3647, %v3647
      %v3904 = vpack.c.b16 %v3648, %v3648
      %v3905 = vpack.c.b16 %v3649, %v3649
      %v3906 = vpack.c.b16 %v3650, %v3650
      %v3907 = vpack.c.b16 %v3651, %v3651
      %v3908 = vpack.c.b16 %v3652, %v3652
      %v3909 = vpack.c.b16 %v3653, %v3653
      %v3910 = vpack.c.b16 %v3654, %v3654
      %v3911 = vpack.c.b16 %v3655, %v3655
      %v3912 = vpack.c.b16 %v3656, %v3656
      %v3913 = vpack.c.b16 %v3657, %v3657
      %v3914 = vpack.c.b16 %v3658, %v3658
      %v3915 = vpack.c.b16 %v3659, %v3659
      %v3916 = vpack.c.b16 %v3660, %v3660
      %v3917 = vpack.c.b16 %v3661, %v3661
      %v3918 = vpack.c.b16 %v3662, %v3662
      %v3919 = vpack.c.b16 %v3663, %v3663
      %v3920 = vpack.c.b16 %v3664, %v3664
      %v3921 = vpack.c.b16 %v3665, %v3665
      %v3922 = vpack.c.b16 %v3666, %v3666
      %v3923 = vpack.c.b16 %v3667, %v3667
      %v3924 = vpack.c.b16 %v3668, %v3668
      %v3925 = vpack.c.b16 %v3669, %v3669
      %v3926 = vpack.c.b16 %v3670, %v3670
      %v3927 = vpack.c.b16 %v3671, %v3671
      %v3928 = vpack.c.b16 %v3672, %v3672
      %v3929 = vpack.c.b16 %v3673, %v3673
      %v3930 = vpack.c.b16 %v3674, %v3674
      %v3931 = vpack.c.b16 %v3675, %v3675
      %v3932 = vpack.c.b16 %v3676, %v3676
      %v3933 = vpack.c.b16 %v3677, %v3677
      %v3934 = vpack.c.b16 %v3678, %v3678
      %v3935 = vpack.c.b16 %v3679, %v3679
      %v3936 = vpack.c.b16 %v3680, %v3680
      %v3937 = vpack.c.b16 %v3681, %v3681
      %v3938 = vpack.c.b16 %v3682, %v3682
      %v3939 = vpack.c.b16 %v3683, %v3683
      %v3940 = vpack.c.b16 %v3684, %v3684
      %v3941 = vpack.c.b16 %v3685, %v3685
      %v3942 = vpack.c.b16 %v3686, %v3686
      %v3943 = vpack.c.b16 %v3687, %v3687
      %v3944 = vpack.c.b16 %v3688, %v3688
      %v3945 = vpack.c.b16 %v3689, %v3689
      %v3946 = vpack.c.b16 %v3690, %v3690
      %v3947 = vpack.c.b16 %v3691, %v3691
      %v3948 = vpack.c.b16 %v3692, %v3692
      %v3949 = vpack.c.b16 %v3693, %v3693
      %v3950 = vpack.c.b16 %v3694, %v3694
      %v3951 = vpack.c.b16 %v3695, %v3695
      %v3952 = vpack.c.b16 %v3696, %v3696
      %v3953 = vpack.c.b16 %v3697, %v3697
      %v3954 = vpack.c.b16 %v3698, %v3698
      %v3955 = vpack.c.b16 %v3699, %v3699
      %v3956 = vpack.c.b16 %v3700, %v3700
      %v3957 = vpack.c.b16 %v3701, %v3701
      %v3958 = vpack.c.b16 %v3702, %v3702
      %v3959 = vpack.c.b16 %v3703, %v3703
      %v3960 = vpack.c.b16 %v3704, %v3704
      %v3961 = vpack.c.b16 %v3705, %v3705
      %v3962 = vpack.c.b16 %v3706, %v3706
      %v3963 = vpack.c.b16 %v3707, %v3707
      %v3964 = vpack.c.b16 %v3708, %v3708
      %v3965 = vpack.c.b16 %v3709, %v3709
      %v3966 = vpack.c.b16 %v3710, %v3710
      %v3967 = vpack.c.b16 %v3711, %v3711
      %v3968 = vpack.c.b16 %v3712, %v3712
      %v3969 = vpack.c.b16 %v3713, %v3713
      %v3970 = vpack.c.b16 %v3714, %v3714
      %v3971 = vpack.c.b16 %v3715, %v3715
      %v3972 = vpack.c.b16 %v3716, %v3716
      %v3973 = vpack.c.b16 %v3717, %v3717
      %v3974 = vpack.c.b16 %v3718, %v3718
      %v3975 = vpack.c.b16 %v3719, %v3719
      %v3976 = vpack.c.b16 %v3720, %v3720
      %v3977 = vpack.c.b16 %v3721, %v3721
      %v3978 = vpack.c.b16 %v3722, %v3722
      %v3979 = vpack.c.b16 %v3723, %v3723
      %v3980 = vpack.c.b16 %v3724, %v3724
      %v3981 = vpack.c.b16 %v3725, %v3725
      %v3982 = vpack.c.b16 %v3726, %v3726
      %v3983 = vpack.c.b16 %v3727, %v3727
      %v3984 = vpack.c.b16 %v3728, %v3728
      %v3985 = vpack.c.b16 %v3729, %v3729
      %v3986 = vpack.c.b16 %v3730, %v3730
      %v3987 = vpack.c.b16 %v3731, %v3731
      %v3988 = vpack.c.b16 %v3732, %v3732
      %v3989 = vpack.c.b16 %v3733, %v3733
      %v3990 = vpack.c.b16 %v3734, %v3734
      %v3991 = vpack.c.b16 %v3735, %v3735
      %v3992 = vpack.c.b16 %v3736, %v3736
      %v3993 = vpack.c.b16 %v3737, %v3737
      %v3994 = vpack.c.b16 %v3738, %v3738
      %v3995 = vpack.c.b16 %v3739, %v3739
      %v3996 = vpack.c.b16 %v3740, %v3740
      %v3997 = vpack.c.b16 %v3741, %v3741
      %v3998 = vpack.c.b16 %v3742, %v3742
      %v3999 = vpack.c.b16 %v3743, %v3743
      %v4000 = vpack.c.b16 %v3744, %v3744
      %v4001 = vpack.c.b16 %v3745, %v3745
      %v4002 = vpack.c.b16 %v3746, %v3746
      %v4003 = vpack.c.b16 %v3747, %v3747
      %v4004 = vpack.c.b16 %v3748, %v3748
      %v4005 = vpack.c.b16 %v3749, %v3749
      %v4006 = vpack.c.b16 %v3750, %v3750
      %v4007 = vpack.c.b16 %v3751, %v3751
      %v4008 = vpack.c.b16 %v3752, %v3752
      %v4009 = vpack.c.b16 %v3753, %v3753
      %v4010 = vpack.c.b16 %v3754, %v3754
      %v4011 = vpack.c.b16 %v3755, %v3755
      %v4012 = vpack.c.b16 %v3756, %v3756
      %v4013 = vpack.c.b16 %v3757, %v3757
      %v4014 = vpack.c.b16 %v3758, %v3758
      %v4015 = vpack.c.b16 %v3759, %v3759
      %v4016 = vpack.c.b16 %v3760, %v3760
      %v4017 = vpack.c.b16 %v3761, %v3761
      %v4018 = vpack.c.b16 %v3762, %v3762
      %v4019 = vpack.c.b16 %v3763, %v3763
      %v4020 = vpack.c.b16 %v3764, %v3764
      %v4021 = vpack.c.b16 %v3765, %v3765
      %v4022 = vpack.c.b16 %v3766, %v3766
      %v4023 = vpack.c.b16 %v3767, %v3767
      %v4024 = vpack.c.b16 %v3768, %v3768
      %v4025 = vpack.c.b16 %v3769, %v3769
      %v4026 = vpack.c.b16 %v3770, %v3770
      %v4027 = vpack.c.b16 %v3771, %v3771
      %v4028 = vpack.c.b16 %v3772, %v3772
      %v4029 = vpack.c.b16 %v3773, %v3773
      %v4030 = vpack.c.b16 %v3774, %v3774
      %v4031 = vpack.c.b16 %v3775, %v3775
      %v4032 = vpack.c.b16 %v3776, %v3776
      %v4033 = vpack.c.b16 %v3777, %v3777
      %v4034 = vpack.c.b16 %v3778, %v3778
      %v4035 = vpack.c.b16 %v3779, %v3779
      %v4036 = vpack.c.b16 %v3780, %v3780
      %v4037 = vpack.c.b16 %v3781, %v3781
      %v4038 = vpack.c.b16 %v3782, %v3782
      %v4039 = vpack.c.b16 %v3783, %v3783
      %v4040 = vpack.c.b16 %v3784, %v3784
      %v4041 = vpack.c.b16 %v3785, %v3785
      %v4042 = vpack.c.b16 %v3786, %v3786
      %v4043 = vpack.c.b16 %v3787, %v3787
      %v4044 = vpack.c.b16 %v3788, %v3788
      %v4045 = vpack.c.b16 %v3789, %v3789
      %v4046 = vpack.c.b16 %v3790, %v3790
      %v4047 = vpack.c.b16 %v3791, %v3791
      %v4048 = vpack.c.b16 %v3792, %v3792
      %v4049 = vpack.c.b16 %v3793, %v3793
      %v4050 = vpack.c.b16 %v3794, %v3794
      %v4051 = vpack.c.b16 %v3795, %v3795
      %v4052 = vpack.c.b16 %v3796, %v3796
      %v4053 = vpack.c.b16 %v3797, %v3797
      %v4054 = vpack.c.b16 %v3798, %v3798
      %v4055 = vpack.c.b16 %v3799, %v3799
      %v4056 = vpack.c.b16 %v3800, %v3800
      %v4057 = vpack.c.b16 %v3801, %v3801
      %v4058 = vpack.c.b16 %v3802, %v3802
      %v4059 = vpack.c.b16 %v3803, %v3803
      %v4060 = vpack.c.b16 %v3804, %v3804
      %v4061 = vpack.c.b16 %v3805, %v3805
      %v4062 = vpack.c.b16 %v3806, %v3806
      %v4063 = vpack.c.b16 %v3807, %v3807
      %v4064 = vpack.c.b16 %v3808, %v3808
      %v4065 = vpack.c.b16 %v3809, %v3809
      %v4066 = vpack.c.b16 %v3810, %v3810
      %v4067 = vpack.c.b16 %v3811, %v3811
      %v4068 = vpack.c.b16 %v3812, %v3812
      %v4069 = vpack.c.b16 %v3813, %v3813
      %v4070 = vpack.c.b16 %v3814, %v3814
      %v4071 = vpack.c.b16 %v3815, %v3815
      %v4072 = vpack.c.b16 %v3816, %v3816
      %v4073 = vpack.c.b16 %v3817, %v3817
      %v4074 = vpack.c.b16 %v3818, %v3818
      %v4075 = vpack.c.b16 %v3819, %v3819
      %v4076 = vpack.c.b16 %v3820, %v3820
      %v4077 = vpack.c.b16 %v3821, %v3821
      %v4078 = vpack.c.b16 %v3822, %v3822
      %v4079 = vpack.c.b16 %v3823, %v3823
      %v4080 = vpack.c.b16 %v3824, %v3824
      %v4081 = vpack.c.b16 %v3825, %v3825
      %v4082 = vpack.c.b16 %v3826, %v3826
      %v4083 = vpack.c.b16 %v3827, %v3827
      %v4084 = vpack.c.b16 %v3828, %v3828
      %v4085 = vpack.c.b16 %v3829, %v3829
      %v4086 = vpack.c.b16 %v3830, %v3830
      %v4087 = vpack.c.b16 %v3831, %v3831
      %v4088 = vpack.c.b16 %v3832, %v3832
      %v4089 = vpack.c.b16 %v3833, %v3833
      %v4090 = vpack.c.b16 %v3834, %v3834
      %v4091 = vpack.c.b16 %v3835, %v3835
      %v4092 = vpack.c.b16 %v3836, %v3836
      %v4093 = vpack.c.b16 %v3837, %v3837
      %v4094 = vpack.c.b16 %v3838, %v3838
      %vm4351 = vcmask 60416
      %4352 = vst.msk [vmem:[%s199] sm:$0xf] %vm4351, %v3839
      %4353 = vst.msk [vmem:[%s199 + $0x4] sm:$0xf] %vm4351, %v3840
      %4354 = vst.msk [vmem:[%s199 + $0x8] sm:$0xf] %vm4351, %v3841
      %4355 = vst.msk [vmem:[%s199 + $0xc] sm:$0xf] %vm4351, %v3842
      %4356 = vst.msk [vmem:[%s199 + $0x10] sm:$0xf] %vm4351, %v3843
      %4357 = vst.msk [vmem:[%s199 + $0x14] sm:$0xf] %vm4351, %v3844
      %4358 = vst.msk [vmem:[%s199 + $0x18] sm:$0xf] %vm4351, %v3845
      %4359 = vst.msk [vmem:[%s199 + $0x1c] sm:$0xf] %vm4351, %v3846
      %4360 = vst.msk [vmem:[%s199 + $0x20] sm:$0xf] %vm4351, %v3847
      %4361 = vst.msk [vmem:[%s199 + $0x24] sm:$0xf] %vm4351, %v3848
      %4362 = vst.msk [vmem:[%s199 + $0x28] sm:$0xf] %vm4351, %v3849
      %4363 = vst.msk [vmem:[%s199 + $0x2c] sm:$0xf] %vm4351, %v3850
      %4364 = vst.msk [vmem:[%s199 + $0x30] sm:$0xf] %vm4351, %v3851
      %4365 = vst.msk [vmem:[%s199 + $0x34] sm:$0xf] %vm4351, %v3852
      %4366 = vst.msk [vmem:[%s199 + $0x38] sm:$0xf] %vm4351, %v3853
      %4367 = vst.msk [vmem:[%s199 + $0x3c] sm:$0xf] %vm4351, %v3854
      %4368 = vst.msk [vmem:[%s199 + $0x40] sm:$0xf] %vm4351, %v3855
      %4369 = vst.msk [vmem:[%s199 + $0x44] sm:$0xf] %vm4351, %v3856
      %4370 = vst.msk [vmem:[%s199 + $0x48] sm:$0xf] %vm4351, %v3857
      %4371 = vst.msk [vmem:[%s199 + $0x4c] sm:$0xf] %vm4351, %v3858
      %4372 = vst.msk [vmem:[%s199 + $0x50] sm:$0xf] %vm4351, %v3859
      %4373 = vst.msk [vmem:[%s199 + $0x54] sm:$0xf] %vm4351, %v3860
      %4374 = vst.msk [vmem:[%s199 + $0x58] sm:$0xf] %vm4351, %v3861
      %4375 = vst.msk [vmem:[%s199 + $0x5c] sm:$0xf] %vm4351, %v3862
      %4376 = vst.msk [vmem:[%s199 + $0x60] sm:$0xf] %vm4351, %v3863
      %4377 = vst.msk [vmem:[%s199 + $0x64] sm:$0xf] %vm4351, %v3864
      %4378 = vst.msk [vmem:[%s199 + $0x68] sm:$0xf] %vm4351, %v3865
      %4379 = vst.msk [vmem:[%s199 + $0x6c] sm:$0xf] %vm4351, %v3866
      %4380 = vst.msk [vmem:[%s199 + $0x70] sm:$0xf] %vm4351, %v3867
      %4381 = vst.msk [vmem:[%s199 + $0x74] sm:$0xf] %vm4351, %v3868
      %4382 = vst.msk [vmem:[%s199 + $0x78] sm:$0xf] %vm4351, %v3869
      %4383 = vst.msk [vmem:[%s199 + $0x7c] sm:$0xf] %vm4351, %v3870
      %4384 = vst.msk [vmem:[%s199 + $0x80] sm:$0xf] %vm4351, %v3871
      %4385 = vst.msk [vmem:[%s199 + $0x84] sm:$0xf] %vm4351, %v3872
      %4386 = vst.msk [vmem:[%s199 + $0x88] sm:$0xf] %vm4351, %v3873
      %4387 = vst.msk [vmem:[%s199 + $0x8c] sm:$0xf] %vm4351, %v3874
      %4388 = vst.msk [vmem:[%s199 + $0x90] sm:$0xf] %vm4351, %v3875
      %4389 = vst.msk [vmem:[%s199 + $0x94] sm:$0xf] %vm4351, %v3876
      %4390 = vst.msk [vmem:[%s199 + $0x98] sm:$0xf] %vm4351, %v3877
      %4391 = vst.msk [vmem:[%s199 + $0x9c] sm:$0xf] %vm4351, %v3878
      %4392 = vst.msk [vmem:[%s199 + $0xa0] sm:$0xf] %vm4351, %v3879
      %4393 = vst.msk [vmem:[%s199 + $0xa4] sm:$0xf] %vm4351, %v3880
      %4394 = vst.msk [vmem:[%s199 + $0xa8] sm:$0xf] %vm4351, %v3881
      %4395 = vst.msk [vmem:[%s199 + $0xac] sm:$0xf] %vm4351, %v3882
      %4396 = vst.msk [vmem:[%s199 + $0xb0] sm:$0xf] %vm4351, %v3883
      %4397 = vst.msk [vmem:[%s199 + $0xb4] sm:$0xf] %vm4351, %v3884
      %4398 = vst.msk [vmem:[%s199 + $0xb8] sm:$0xf] %vm4351, %v3885
      %4399 = vst.msk [vmem:[%s199 + $0xbc] sm:$0xf] %vm4351, %v3886
      %4400 = vst.msk [vmem:[%s199 + $0xc0] sm:$0xf] %vm4351, %v3887
      %4401 = vst.msk [vmem:[%s199 + $0xc4] sm:$0xf] %vm4351, %v3888
      %4402 = vst.msk [vmem:[%s199 + $0xc8] sm:$0xf] %vm4351, %v3889
      %4403 = vst.msk [vmem:[%s199 + $0xcc] sm:$0xf] %vm4351, %v3890
      %4404 = vst.msk [vmem:[%s199 + $0xd0] sm:$0xf] %vm4351, %v3891
      %4405 = vst.msk [vmem:[%s199 + $0xd4] sm:$0xf] %vm4351, %v3892
      %4406 = vst.msk [vmem:[%s199 + $0xd8] sm:$0xf] %vm4351, %v3893
      %4407 = vst.msk [vmem:[%s199 + $0xdc] sm:$0xf] %vm4351, %v3894
      %4408 = vst.msk [vmem:[%s199 + $0xe0] sm:$0xf] %vm4351, %v3895
      %4409 = vst.msk [vmem:[%s199 + $0xe4] sm:$0xf] %vm4351, %v3896
      %4410 = vst.msk [vmem:[%s199 + $0xe8] sm:$0xf] %vm4351, %v3897
      %4411 = vst.msk [vmem:[%s199 + $0xec] sm:$0xf] %vm4351, %v3898
      %4412 = vst.msk [vmem:[%s199 + $0xf0] sm:$0xf] %vm4351, %v3899
      %4413 = vst.msk [vmem:[%s199 + $0xf4] sm:$0xf] %vm4351, %v3900
      %4414 = vst.msk [vmem:[%s199 + $0xf8] sm:$0xf] %vm4351, %v3901
      %4415 = vst.msk [vmem:[%s199 + $0xfc] sm:$0xf] %vm4351, %v3902
      %4416 = vst.msk [vmem:[%s199 + $0x100] sm:$0xf] %vm4351, %v3903
      %4417 = vst.msk [vmem:[%s199 + $0x104] sm:$0xf] %vm4351, %v3904
      %4418 = vst.msk [vmem:[%s199 + $0x108] sm:$0xf] %vm4351, %v3905
      %4419 = vst.msk [vmem:[%s199 + $0x10c] sm:$0xf] %vm4351, %v3906
      %4420 = vst.msk [vmem:[%s199 + $0x110] sm:$0xf] %vm4351, %v3907
      %4421 = vst.msk [vmem:[%s199 + $0x114] sm:$0xf] %vm4351, %v3908
      %4422 = vst.msk [vmem:[%s199 + $0x118] sm:$0xf] %vm4351, %v3909
      %4423 = vst.msk [vmem:[%s199 + $0x11c] sm:$0xf] %vm4351, %v3910
      %4424 = vst.msk [vmem:[%s199 + $0x120] sm:$0xf] %vm4351, %v3911
      %4425 = vst.msk [vmem:[%s199 + $0x124] sm:$0xf] %vm4351, %v3912
      %4426 = vst.msk [vmem:[%s199 + $0x128] sm:$0xf] %vm4351, %v3913
      %4427 = vst.msk [vmem:[%s199 + $0x12c] sm:$0xf] %vm4351, %v3914
      %4428 = vst.msk [vmem:[%s199 + $0x130] sm:$0xf] %vm4351, %v3915
      %4429 = vst.msk [vmem:[%s199 + $0x134] sm:$0xf] %vm4351, %v3916
      %4430 = vst.msk [vmem:[%s199 + $0x138] sm:$0xf] %vm4351, %v3917
      %4431 = vst.msk [vmem:[%s199 + $0x13c] sm:$0xf] %vm4351, %v3918
      %4432 = vst.msk [vmem:[%s199 + $0x140] sm:$0xf] %vm4351, %v3919
      %4433 = vst.msk [vmem:[%s199 + $0x144] sm:$0xf] %vm4351, %v3920
      %4434 = vst.msk [vmem:[%s199 + $0x148] sm:$0xf] %vm4351, %v3921
      %4435 = vst.msk [vmem:[%s199 + $0x14c] sm:$0xf] %vm4351, %v3922
      %4436 = vst.msk [vmem:[%s199 + $0x150] sm:$0xf] %vm4351, %v3923
      %4437 = vst.msk [vmem:[%s199 + $0x154] sm:$0xf] %vm4351, %v3924
      %4438 = vst.msk [vmem:[%s199 + $0x158] sm:$0xf] %vm4351, %v3925
      %4439 = vst.msk [vmem:[%s199 + $0x15c] sm:$0xf] %vm4351, %v3926
      %4440 = vst.msk [vmem:[%s199 + $0x160] sm:$0xf] %vm4351, %v3927
      %4441 = vst.msk [vmem:[%s199 + $0x164] sm:$0xf] %vm4351, %v3928
      %4442 = vst.msk [vmem:[%s199 + $0x168] sm:$0xf] %vm4351, %v3929
      %4443 = vst.msk [vmem:[%s199 + $0x16c] sm:$0xf] %vm4351, %v3930
      %4444 = vst.msk [vmem:[%s199 + $0x170] sm:$0xf] %vm4351, %v3931
      %4445 = vst.msk [vmem:[%s199 + $0x174] sm:$0xf] %vm4351, %v3932
      %4446 = vst.msk [vmem:[%s199 + $0x178] sm:$0xf] %vm4351, %v3933
      %4447 = vst.msk [vmem:[%s199 + $0x17c] sm:$0xf] %vm4351, %v3934
      %4448 = vst.msk [vmem:[%s199 + $0x180] sm:$0xf] %vm4351, %v3935
      %4449 = vst.msk [vmem:[%s199 + $0x184] sm:$0xf] %vm4351, %v3936
      %4450 = vst.msk [vmem:[%s199 + $0x188] sm:$0xf] %vm4351, %v3937
      %4451 = vst.msk [vmem:[%s199 + $0x18c] sm:$0xf] %vm4351, %v3938
      %4452 = vst.msk [vmem:[%s199 + $0x190] sm:$0xf] %vm4351, %v3939
      %4453 = vst.msk [vmem:[%s199 + $0x194] sm:$0xf] %vm4351, %v3940
      %4454 = vst.msk [vmem:[%s199 + $0x198] sm:$0xf] %vm4351, %v3941
      %4455 = vst.msk [vmem:[%s199 + $0x19c] sm:$0xf] %vm4351, %v3942
      %4456 = vst.msk [vmem:[%s199 + $0x1a0] sm:$0xf] %vm4351, %v3943
      %4457 = vst.msk [vmem:[%s199 + $0x1a4] sm:$0xf] %vm4351, %v3944
      %4458 = vst.msk [vmem:[%s199 + $0x1a8] sm:$0xf] %vm4351, %v3945
      %4459 = vst.msk [vmem:[%s199 + $0x1ac] sm:$0xf] %vm4351, %v3946
      %4460 = vst.msk [vmem:[%s199 + $0x1b0] sm:$0xf] %vm4351, %v3947
      %4461 = vst.msk [vmem:[%s199 + $0x1b4] sm:$0xf] %vm4351, %v3948
      %4462 = vst.msk [vmem:[%s199 + $0x1b8] sm:$0xf] %vm4351, %v3949
      %4463 = vst.msk [vmem:[%s199 + $0x1bc] sm:$0xf] %vm4351, %v3950
      %4464 = vst.msk [vmem:[%s199 + $0x1c0] sm:$0xf] %vm4351, %v3951
      %4465 = vst.msk [vmem:[%s199 + $0x1c4] sm:$0xf] %vm4351, %v3952
      %4466 = vst.msk [vmem:[%s199 + $0x1c8] sm:$0xf] %vm4351, %v3953
      %4467 = vst.msk [vmem:[%s199 + $0x1cc] sm:$0xf] %vm4351, %v3954
      %4468 = vst.msk [vmem:[%s199 + $0x1d0] sm:$0xf] %vm4351, %v3955
      %4469 = vst.msk [vmem:[%s199 + $0x1d4] sm:$0xf] %vm4351, %v3956
      %4470 = vst.msk [vmem:[%s199 + $0x1d8] sm:$0xf] %vm4351, %v3957
      %4471 = vst.msk [vmem:[%s199 + $0x1dc] sm:$0xf] %vm4351, %v3958
      %4472 = vst.msk [vmem:[%s199 + $0x1e0] sm:$0xf] %vm4351, %v3959
      %4473 = vst.msk [vmem:[%s199 + $0x1e4] sm:$0xf] %vm4351, %v3960
      %4474 = vst.msk [vmem:[%s199 + $0x1e8] sm:$0xf] %vm4351, %v3961
      %4475 = vst.msk [vmem:[%s199 + $0x1ec] sm:$0xf] %vm4351, %v3962
      %4476 = vst.msk [vmem:[%s199 + $0x1f0] sm:$0xf] %vm4351, %v3963
      %4477 = vst.msk [vmem:[%s199 + $0x1f4] sm:$0xf] %vm4351, %v3964
      %4478 = vst.msk [vmem:[%s199 + $0x1f8] sm:$0xf] %vm4351, %v3965
      %4479 = vst.msk [vmem:[%s199 + $0x1fc] sm:$0xf] %vm4351, %v3966
      %4480 = vst.msk [vmem:[%s199 + $0x200] sm:$0xf] %vm4351, %v3967
      %4481 = vst.msk [vmem:[%s199 + $0x204] sm:$0xf] %vm4351, %v3968
      %4482 = vst.msk [vmem:[%s199 + $0x208] sm:$0xf] %vm4351, %v3969
      %4483 = vst.msk [vmem:[%s199 + $0x20c] sm:$0xf] %vm4351, %v3970
      %4484 = vst.msk [vmem:[%s199 + $0x210] sm:$0xf] %vm4351, %v3971
      %4485 = vst.msk [vmem:[%s199 + $0x214] sm:$0xf] %vm4351, %v3972
      %4486 = vst.msk [vmem:[%s199 + $0x218] sm:$0xf] %vm4351, %v3973
      %4487 = vst.msk [vmem:[%s199 + $0x21c] sm:$0xf] %vm4351, %v3974
      %4488 = vst.msk [vmem:[%s199 + $0x220] sm:$0xf] %vm4351, %v3975
      %4489 = vst.msk [vmem:[%s199 + $0x224] sm:$0xf] %vm4351, %v3976
      %4490 = vst.msk [vmem:[%s199 + $0x228] sm:$0xf] %vm4351, %v3977
      %4491 = vst.msk [vmem:[%s199 + $0x22c] sm:$0xf] %vm4351, %v3978
      %4492 = vst.msk [vmem:[%s199 + $0x230] sm:$0xf] %vm4351, %v3979
      %4493 = vst.msk [vmem:[%s199 + $0x234] sm:$0xf] %vm4351, %v3980
      %4494 = vst.msk [vmem:[%s199 + $0x238] sm:$0xf] %vm4351, %v3981
      %4495 = vst.msk [vmem:[%s199 + $0x23c] sm:$0xf] %vm4351, %v3982
      %4496 = vst.msk [vmem:[%s199 + $0x240] sm:$0xf] %vm4351, %v3983
      %4497 = vst.msk [vmem:[%s199 + $0x244] sm:$0xf] %vm4351, %v3984
      %4498 = vst.msk [vmem:[%s199 + $0x248] sm:$0xf] %vm4351, %v3985
      %4499 = vst.msk [vmem:[%s199 + $0x24c] sm:$0xf] %vm4351, %v3986
      %4500 = vst.msk [vmem:[%s199 + $0x250] sm:$0xf] %vm4351, %v3987
      %4501 = vst.msk [vmem:[%s199 + $0x254] sm:$0xf] %vm4351, %v3988
      %4502 = vst.msk [vmem:[%s199 + $0x258] sm:$0xf] %vm4351, %v3989
      %4503 = vst.msk [vmem:[%s199 + $0x25c] sm:$0xf] %vm4351, %v3990
      %4504 = vst.msk [vmem:[%s199 + $0x260] sm:$0xf] %vm4351, %v3991
      %4505 = vst.msk [vmem:[%s199 + $0x264] sm:$0xf] %vm4351, %v3992
      %4506 = vst.msk [vmem:[%s199 + $0x268] sm:$0xf] %vm4351, %v3993
      %4507 = vst.msk [vmem:[%s199 + $0x26c] sm:$0xf] %vm4351, %v3994
      %4508 = vst.msk [vmem:[%s199 + $0x270] sm:$0xf] %vm4351, %v3995
      %4509 = vst.msk [vmem:[%s199 + $0x274] sm:$0xf] %vm4351, %v3996
      %4510 = vst.msk [vmem:[%s199 + $0x278] sm:$0xf] %vm4351, %v3997
      %4511 = vst.msk [vmem:[%s199 + $0x27c] sm:$0xf] %vm4351, %v3998
      %4512 = vst.msk [vmem:[%s199 + $0x280] sm:$0xf] %vm4351, %v3999
      %4513 = vst.msk [vmem:[%s199 + $0x284] sm:$0xf] %vm4351, %v4000
      %4514 = vst.msk [vmem:[%s199 + $0x288] sm:$0xf] %vm4351, %v4001
      %4515 = vst.msk [vmem:[%s199 + $0x28c] sm:$0xf] %vm4351, %v4002
      %4516 = vst.msk [vmem:[%s199 + $0x290] sm:$0xf] %vm4351, %v4003
      %4517 = vst.msk [vmem:[%s199 + $0x294] sm:$0xf] %vm4351, %v4004
      %4518 = vst.msk [vmem:[%s199 + $0x298] sm:$0xf] %vm4351, %v4005
      %4519 = vst.msk [vmem:[%s199 + $0x29c] sm:$0xf] %vm4351, %v4006
      %4520 = vst.msk [vmem:[%s199 + $0x2a0] sm:$0xf] %vm4351, %v4007
      %4521 = vst.msk [vmem:[%s199 + $0x2a4] sm:$0xf] %vm4351, %v4008
      %4522 = vst.msk [vmem:[%s199 + $0x2a8] sm:$0xf] %vm4351, %v4009
      %4523 = vst.msk [vmem:[%s199 + $0x2ac] sm:$0xf] %vm4351, %v4010
      %4524 = vst.msk [vmem:[%s199 + $0x2b0] sm:$0xf] %vm4351, %v4011
      %4525 = vst.msk [vmem:[%s199 + $0x2b4] sm:$0xf] %vm4351, %v4012
      %4526 = vst.msk [vmem:[%s199 + $0x2b8] sm:$0xf] %vm4351, %v4013
      %4527 = vst.msk [vmem:[%s199 + $0x2bc] sm:$0xf] %vm4351, %v4014
      %4528 = vst.msk [vmem:[%s199 + $0x2c0] sm:$0xf] %vm4351, %v4015
      %4529 = vst.msk [vmem:[%s199 + $0x2c4] sm:$0xf] %vm4351, %v4016
      %4530 = vst.msk [vmem:[%s199 + $0x2c8] sm:$0xf] %vm4351, %v4017
      %4531 = vst.msk [vmem:[%s199 + $0x2cc] sm:$0xf] %vm4351, %v4018
      %4532 = vst.msk [vmem:[%s199 + $0x2d0] sm:$0xf] %vm4351, %v4019
      %4533 = vst.msk [vmem:[%s199 + $0x2d4] sm:$0xf] %vm4351, %v4020
      %4534 = vst.msk [vmem:[%s199 + $0x2d8] sm:$0xf] %vm4351, %v4021
      %4535 = vst.msk [vmem:[%s199 + $0x2dc] sm:$0xf] %vm4351, %v4022
      %4536 = vst.msk [vmem:[%s199 + $0x2e0] sm:$0xf] %vm4351, %v4023
      %4537 = vst.msk [vmem:[%s199 + $0x2e4] sm:$0xf] %vm4351, %v4024
      %4538 = vst.msk [vmem:[%s199 + $0x2e8] sm:$0xf] %vm4351, %v4025
      %4539 = vst.msk [vmem:[%s199 + $0x2ec] sm:$0xf] %vm4351, %v4026
      %4540 = vst.msk [vmem:[%s199 + $0x2f0] sm:$0xf] %vm4351, %v4027
      %4541 = vst.msk [vmem:[%s199 + $0x2f4] sm:$0xf] %vm4351, %v4028
      %4542 = vst.msk [vmem:[%s199 + $0x2f8] sm:$0xf] %vm4351, %v4029
      %4543 = vst.msk [vmem:[%s199 + $0x2fc] sm:$0xf] %vm4351, %v4030
      %4544 = vst.msk [vmem:[%s199 + $0x300] sm:$0xf] %vm4351, %v4031
      %4545 = vst.msk [vmem:[%s199 + $0x304] sm:$0xf] %vm4351, %v4032
      %4546 = vst.msk [vmem:[%s199 + $0x308] sm:$0xf] %vm4351, %v4033
      %4547 = vst.msk [vmem:[%s199 + $0x30c] sm:$0xf] %vm4351, %v4034
      %4548 = vst.msk [vmem:[%s199 + $0x310] sm:$0xf] %vm4351, %v4035
      %4549 = vst.msk [vmem:[%s199 + $0x314] sm:$0xf] %vm4351, %v4036
      %4550 = vst.msk [vmem:[%s199 + $0x318] sm:$0xf] %vm4351, %v4037
      %4551 = vst.msk [vmem:[%s199 + $0x31c] sm:$0xf] %vm4351, %v4038
      %4552 = vst.msk [vmem:[%s199 + $0x320] sm:$0xf] %vm4351, %v4039
      %4553 = vst.msk [vmem:[%s199 + $0x324] sm:$0xf] %vm4351, %v4040
      %4554 = vst.msk [vmem:[%s199 + $0x328] sm:$0xf] %vm4351, %v4041
      %4555 = vst.msk [vmem:[%s199 + $0x32c] sm:$0xf] %vm4351, %v4042
      %4556 = vst.msk [vmem:[%s199 + $0x330] sm:$0xf] %vm4351, %v4043
      %4557 = vst.msk [vmem:[%s199 + $0x334] sm:$0xf] %vm4351, %v4044
      %4558 = vst.msk [vmem:[%s199 + $0x338] sm:$0xf] %vm4351, %v4045
      %4559 = vst.msk [vmem:[%s199 + $0x33c] sm:$0xf] %vm4351, %v4046
      %4560 = vst.msk [vmem:[%s199 + $0x340] sm:$0xf] %vm4351, %v4047
      %4561 = vst.msk [vmem:[%s199 + $0x344] sm:$0xf] %vm4351, %v4048
      %4562 = vst.msk [vmem:[%s199 + $0x348] sm:$0xf] %vm4351, %v4049
      %4563 = vst.msk [vmem:[%s199 + $0x34c] sm:$0xf] %vm4351, %v4050
      %4564 = vst.msk [vmem:[%s199 + $0x350] sm:$0xf] %vm4351, %v4051
      %4565 = vst.msk [vmem:[%s199 + $0x354] sm:$0xf] %vm4351, %v4052
      %4566 = vst.msk [vmem:[%s199 + $0x358] sm:$0xf] %vm4351, %v4053
      %4567 = vst.msk [vmem:[%s199 + $0x35c] sm:$0xf] %vm4351, %v4054
      %4568 = vst.msk [vmem:[%s199 + $0x360] sm:$0xf] %vm4351, %v4055
      %4569 = vst.msk [vmem:[%s199 + $0x364] sm:$0xf] %vm4351, %v4056
      %4570 = vst.msk [vmem:[%s199 + $0x368] sm:$0xf] %vm4351, %v4057
      %4571 = vst.msk [vmem:[%s199 + $0x36c] sm:$0xf] %vm4351, %v4058
      %4572 = vst.msk [vmem:[%s199 + $0x370] sm:$0xf] %vm4351, %v4059
      %4573 = vst.msk [vmem:[%s199 + $0x374] sm:$0xf] %vm4351, %v4060
      %4574 = vst.msk [vmem:[%s199 + $0x378] sm:$0xf] %vm4351, %v4061
      %4575 = vst.msk [vmem:[%s199 + $0x37c] sm:$0xf] %vm4351, %v4062
      %4576 = vst.msk [vmem:[%s199 + $0x380] sm:$0xf] %vm4351, %v4063
      %4577 = vst.msk [vmem:[%s199 + $0x384] sm:$0xf] %vm4351, %v4064
      %4578 = vst.msk [vmem:[%s199 + $0x388] sm:$0xf] %vm4351, %v4065
      %4579 = vst.msk [vmem:[%s199 + $0x38c] sm:$0xf] %vm4351, %v4066
      %4580 = vst.msk [vmem:[%s199 + $0x390] sm:$0xf] %vm4351, %v4067
      %4581 = vst.msk [vmem:[%s199 + $0x394] sm:$0xf] %vm4351, %v4068
      %4582 = vst.msk [vmem:[%s199 + $0x398] sm:$0xf] %vm4351, %v4069
      %4583 = vst.msk [vmem:[%s199 + $0x39c] sm:$0xf] %vm4351, %v4070
      %4584 = vst.msk [vmem:[%s199 + $0x3a0] sm:$0xf] %vm4351, %v4071
      %4585 = vst.msk [vmem:[%s199 + $0x3a4] sm:$0xf] %vm4351, %v4072
      %4586 = vst.msk [vmem:[%s199 + $0x3a8] sm:$0xf] %vm4351, %v4073
      %4587 = vst.msk [vmem:[%s199 + $0x3ac] sm:$0xf] %vm4351, %v4074
      %4588 = vst.msk [vmem:[%s199 + $0x3b0] sm:$0xf] %vm4351, %v4075
      %4589 = vst.msk [vmem:[%s199 + $0x3b4] sm:$0xf] %vm4351, %v4076
      %4590 = vst.msk [vmem:[%s199 + $0x3b8] sm:$0xf] %vm4351, %v4077
      %4591 = vst.msk [vmem:[%s199 + $0x3bc] sm:$0xf] %vm4351, %v4078
      %4592 = vst.msk [vmem:[%s199 + $0x3c0] sm:$0xf] %vm4351, %v4079
      %4593 = vst.msk [vmem:[%s199 + $0x3c4] sm:$0xf] %vm4351, %v4080
      %4594 = vst.msk [vmem:[%s199 + $0x3c8] sm:$0xf] %vm4351, %v4081
      %4595 = vst.msk [vmem:[%s199 + $0x3cc] sm:$0xf] %vm4351, %v4082
      %4596 = vst.msk [vmem:[%s199 + $0x3d0] sm:$0xf] %vm4351, %v4083
      %4597 = vst.msk [vmem:[%s199 + $0x3d4] sm:$0xf] %vm4351, %v4084
      %4598 = vst.msk [vmem:[%s199 + $0x3d8] sm:$0xf] %vm4351, %v4085
      %4599 = vst.msk [vmem:[%s199 + $0x3dc] sm:$0xf] %vm4351, %v4086
      %4600 = vst.msk [vmem:[%s199 + $0x3e0] sm:$0xf] %vm4351, %v4087
      %4601 = vst.msk [vmem:[%s199 + $0x3e4] sm:$0xf] %vm4351, %v4088
      %4602 = vst.msk [vmem:[%s199 + $0x3e8] sm:$0xf] %vm4351, %v4089
      %4603 = vst.msk [vmem:[%s199 + $0x3ec] sm:$0xf] %vm4351, %v4090
      %4604 = vst.msk [vmem:[%s199 + $0x3f0] sm:$0xf] %vm4351, %v4091
      %4605 = vst.msk [vmem:[%s199 + $0x3f4] sm:$0xf] %vm4351, %v4092
      %4606 = vst.msk [vmem:[%s199 + $0x3f8] sm:$0xf] %vm4351, %v4093
      %4607 = vst.msk [vmem:[%s199 + $0x3fc] sm:$0xf] %vm4351, %v4094
      %s4608 = smul.u32 256, %s15
      %p4609 = scmp.lt.s32.totalorder %s4608, 511
      %s4610 = scalar_select %p4609, %s4608, 511
      %s4611 = smul.addr %s4610, 4
      %s4612 = scalar_lea.vmem %s4, %s4611
      // Predicated region
      $region37: #{tpu_custom_call.1} parent=35 // pred_check
        %p4613 = pneg %p122
      $region38: #{tpu_custom_call.1} parent=35 // pred_check_branch
        %4615 = sbr.rel (%p4613) target = $region40
      $region39: #{tpu_custom_call.1} parent=35 // pred_region
        %s4616 = smul.u32 256, %s15
      $region40: #{tpu_custom_call.1} parent=35 // pred_fallthru
        _
    $region36: #{tpu_custom_call.1} parent=5 // pred_fallthru
      _
    %p4617 = scmp.le.s32.totalorder 2, %s10
    // Predicated region
    $region41: #{tpu_custom_call.1} parent=5 // pred_check
      %p4618 = pneg %p4617
    $region42: #{tpu_custom_call.1} parent=5 // pred_check_branch
      %4620 = sbr.rel (%p4618) target = $region44
    $region43: #{tpu_custom_call.1} parent=5 // pred_region
      %s4621 = ssub.s32 %s10, 2
      // Predicated region
      $region45: #{tpu_custom_call.1} parent=43 // pred_check
        %p4622 = pneg %p128
      $region46: #{tpu_custom_call.1} parent=43 // pred_check_branch
        %4624 = sbr.rel (%p4622) target = $region48
      $region47: #{tpu_custom_call.1} parent=43 // pred_region
        %s4625 = smul.u32 256, %s16
        %p4626 = scmp.lt.s32.totalorder %s4625, 511
        %s4627 = scalar_select %p4626, %s4625, 511
        %s4628 = smul.addr %s4627, 4
        %s4629 = scalar_lea.vmem %s4, %s4628
      $region48: #{tpu_custom_call.1} parent=43 // pred_fallthru
        _
    $region44: #{tpu_custom_call.1} parent=5 // pred_fallthru
      _
  $region6: #{tpu_custom_call.1} parent=0 // loop_footer
    %s14 = sadd.s32 1, %s10
  $region7: #{tpu_custom_call.1} parent=0 // loop_footer_branch
    %9 = sbr.rel target = $region3
  $region8: #{tpu_custom_call.1} parent=0 // loop_exit
    _

</llo_original>
